<compile_context>
chip_gen: v6e
topology: v6e:2x2x1
jax: 0.10.0
libtpu: 0.0.40
codegen_flags: <defaults>
</compile_context>

<pallas_src>
import functools
import math

import jax
import jax.numpy as jnp
from jax import lax
from jax.experimental import pallas as pl
from jax.experimental.pallas import tpu as pltpu


# ----------------------------- kernel helpers ------------------------------ #

def _shift_rows(z, direction, n):
    """Per-sequence row shift with zero boundary, on the XLU (pltpu.roll).

    z: (M, C) f32 with M = Bt*n -- Bt length-n sequences stacked along rows.
    direction=+1: result[r] = z[r-1], zero at the first row of every sequence.
    direction=-1: result[r] = z[r+1], zero at the last  row of every sequence.
    """
    m, c = z.shape
    rolled = pltpu.roll(z, shift=direction % m, axis=0)      # jnp.roll semantics
    pos = lax.broadcasted_iota(jnp.int32, (m, c), 0) % n
    edge = 0 if direction == 1 else n - 1
    return jnp.where(pos == edge, 0.0, rolled)


def _conv_block(h, w_ref, b_ref, n, pool):
    """3-tap 1-D conv + bias, optional 2x seq max-pool (pre-tanh), tanh.

    h:     (Bt*n, cin)    f32 activations (Bt sequences folded into matmul M)
    w_ref: (3, cin, cout) bf16 taps
    b_ref: (1, cout)      f32 bias
    """
    hb = h.astype(jnp.bfloat16)
    # Aligned MXU matmuls; tap shifts are applied to the outputs (roll+mask),
    # so no sublane-misaligned activation copies are materialized.
    z0 = jnp.dot(hb, w_ref[0], preferred_element_type=jnp.float32)
    z1 = jnp.dot(hb, w_ref[1], preferred_element_type=jnp.float32)
    z2 = jnp.dot(hb, w_ref[2], preferred_element_type=jnp.float32)
    y = _shift_rows(z0, 1, n) + z1 + _shift_rows(z2, -1, n) + b_ref[...]
    if pool:
        m, c = y.shape
        # Sequences have even length, so row pairs never cross sequences.
        # Pool before tanh: tanh(max(a,b)) == max(tanh(a), tanh(b)).
        y = jnp.max(y.reshape(m // 2, 2, c), axis=1)
    return jnp.tanh(y)


def _fused_conv_kernel(x_ref,
                       fc0_w_ref, fc0_b_ref,
                       c1_w_ref, c1_b_ref,
                       c2_w_ref, c2_b_ref,
                       c3_w_ref, c3_b_ref,
                       c4_w_ref, c4_b_ref,
                       c5_w_ref, c5_b_ref,
                       fc1_w_ref, fc1_b_ref,
                       o_ref, *, seq_len):
    n = seq_len
    x = x_ref[0]                                             # (Bt*N, 2) f32
    # fc0 (K == 2): two VPU broadcast MACs -- skip a badly-filled MXU dot.
    h = (x[:, 0:1] * fc0_w_ref[0:1, :]
         + x[:, 1:2] * fc0_w_ref[1:2, :]
         + fc0_b_ref[...])                                   # (Bt*N, 64) f32

    h = _conv_block(h, c1_w_ref, c1_b_ref, n, True); n //= 2   # (Bt*N/2,  128)
    h = _conv_block(h, c2_w_ref, c2_b_ref, n, True); n //= 2   # (Bt*N/4,  128)
    h = _conv_block(h, c3_w_ref, c3_b_ref, n, True); n //= 2   # (Bt*N/8,  256)
    h = _conv_block(h, c4_w_ref, c4_b_ref, n, True); n //= 2   # (Bt*N/16, 128)
    h = _conv_block(h, c5_w_ref, c5_b_ref, n, False)            # (Bt*N/16, 64)

    # fc1 (1 output feature): VPU mul + lane reduction, not a 1-column MXU dot.
    y = jnp.sum(h * fc1_w_ref[...], axis=-1, keepdims=True) + fc1_b_ref[...]
    # The store is only Bt*N/16 floats; a lane-dense slab would need an
    # in-kernel sublane->lane relayout that costs more than it saves here.
    o_ref[0] = y.astype(o_ref.dtype)                          # (Bt*N/16, 1)


# ----------------------------- wrapper -------------------------------------- #

def _full_spec(a):
    """Grid-invariant full-array block: loaded once, resident across the grid.

    NOTE: pipeline_mode=pl.Buffered(1) would single-buffer these constant
    blocks (~0.6 MB saved); skipped since VMEM is far under budget here.
    """
    zeros = (0,) * a.ndim
    return pl.BlockSpec(a.shape, lambda i: zeros)


def _pick_batch_tile(batch, seq, target_rows=1024):
    """Largest Bt dividing `batch` with Bt*seq <= target_rows, keeping >= 2
    grid steps whenever batch >= 2 (v7x has 2 TensorCores to shard across)."""
    bt = 1
    for cand in range(1, batch + 1):
        if batch % cand:
            continue
        if cand * seq > target_rows:
            break
        if batch >= 2 and batch // cand < 2:
            break
        bt = cand
    return bt


def forward(x, p):
    B, N, _ = x.shape
    assert N % 16 == 0 and N >= 16, "N must be a multiple of 16"
    n_out = N // 16
    bt = _pick_batch_tile(B, N)
    grid_b = B // bt

    # Fold the batch tile into the matmul M dimension: (B, N, 2) ->
    # (B/Bt, Bt*N, 2).  Pure metadata reshape on the XLA side.
    x_folded = x.reshape(grid_b, bt * N, 2)

    args = (x_folded,
            p["fc0_w"], p["fc0_b"],
            p["conv1_w"], p["conv1_b"],
            p["conv2_w"], p["conv2_b"],
            p["conv3_w"], p["conv3_b"],
            p["conv4_w"], p["conv4_b"],
            p["conv5_w"], p["conv5_b"],
            p["fc1_w"], p["fc1_b"])

    in_specs = [pl.BlockSpec((1, bt * N, 2), lambda i: (i, 0, 0))]
    in_specs += [_full_spec(a) for a in args[1:]]

    out = pl.pallas_call(
        functools.partial(_fused_conv_kernel, seq_len=N),
        out_shape=jax.ShapeDtypeStruct((grid_b, bt * n_out, 1), x.dtype),
        grid=(grid_b,),
        in_specs=in_specs,
        out_specs=pl.BlockSpec((1, bt * n_out, 1), lambda i: (i, 0, 0)),
        compiler_params=pltpu.CompilerParams(
            dimension_semantics=("parallel",),
            vmem_limit_bytes=32 * 1024 * 1024),
    )(*args)
    # Rows of (B/Bt, Bt*n_out, 1) are already in global (b, j) order.
    return out.reshape(B, n_out, 1)


# ----------------------------- params / reference --------------------------- #

def init_params(key):
    ks = jax.random.split(key, 14)

    def uniform(k, shape, fan_in):
        bound = 1.0 / math.sqrt(fan_in)
        return jax.random.uniform(k, shape, jnp.float32, -bound, bound)

    def conv_init(kw, kb, cin, cout):
        fan_in = cin * 3 * 3
        w_full = uniform(kw, (cout, cin, 3, 3), fan_in)
        # W==1 with padding==1: only the middle kernel column (kw index 1) ever
        # touches real data -> Conv2d is exactly a 3-tap 1-D conv along seq.
        w_taps = jnp.transpose(w_full[:, :, :, 1], (2, 1, 0)).astype(jnp.bfloat16)
        b = uniform(kb, (1, cout), fan_in)
        return w_taps, b

    p = {}
    p["fc0_w"] = uniform(ks[0], (2, 64), 2)
    p["fc0_b"] = uniform(ks[1], (1, 64), 2)
    p["conv1_w"], p["conv1_b"] = conv_init(ks[2], ks[3], 64, 128)
    p["conv2_w"], p["conv2_b"] = conv_init(ks[4], ks[5], 128, 128)
    p["conv3_w"], p["conv3_b"] = conv_init(ks[6], ks[7], 128, 256)
    p["conv4_w"], p["conv4_b"] = conv_init(ks[8], ks[9], 256, 128)
    p["conv5_w"], p["conv5_b"] = conv_init(ks[10], ks[11], 128, 64)
    p["fc1_w"] = uniform(ks[12], (1, 64), 64)   # row vector for the lane reduce
    p["fc1_b"] = uniform(ks[13], (1, 1), 64)
    return p


def ref_forward(x, p):
    # Pure-JAX reference with the original op order (tanh then pool).
    h = x @ p["fc0_w"] + p["fc0_b"]
    for name, pool in [("conv1", True), ("conv2", True), ("conv3", True),
                       ("conv4", True), ("conv5", False)]:
        w, b = p[name + "_w"], p[name + "_b"]
        n = h.shape[1]
        hp = jnp.pad(h.astype(jnp.bfloat16), ((0, 0), (1, 1), (0, 0)))
        y = (jnp.einsum("bnc,co->bno", hp[:, 0:n], w[0],
                        preferred_element_type=jnp.float32)
             + jnp.einsum("bnc,co->bno", hp[:, 1:n + 1], w[1],
                          preferred_element_type=jnp.float32)
             + jnp.einsum("bnc,co->bno", hp[:, 2:n + 2], w[2],
                          preferred_element_type=jnp.float32)
             + b)
        y = jnp.tanh(y)
        if pool:
            y = jnp.max(y.reshape(y.shape[0], n // 2, 2, y.shape[2]), axis=2)
        h = y
    return h @ p["fc1_w"].T + p["fc1_b"]


# ----------------------------- main ----------------------------------------- #

if __name__ == "__main__":
    B, N = 8, 32  # N must be a multiple of 16 (four sequence halvings)
    x = jax.random.normal(jax.random.PRNGKey(0), (B, N, 2), jnp.float32)
    params = init_params(jax.random.PRNGKey(42))

    out = jax.block_until_ready(jax.jit(forward)(x, params))

    assert out.shape == (B, N // 16, 1), out.shape
    ref = ref_forward(x, params)
    assert jnp.allclose(out, ref, atol=2e-2, rtol=2e-2), (
        float(jnp.max(jnp.abs(out - ref))))

    print("KERNEL_OK")
</pallas_src>

<mosaic_0001>
module attributes {stable_mosaic.version = 11 : i64} {
  func.func @_fused_conv_kernel(%arg0: i32, %arg1: memref<1x128x2xf32, #tpu.memory_space<vmem>>, %arg2: memref<2x64xf32, #tpu.memory_space<vmem>>, %arg3: memref<1x64xf32, #tpu.memory_space<vmem>>, %arg4: memref<3x64x128xbf16, #tpu.memory_space<vmem>>, %arg5: memref<1x128xf32, #tpu.memory_space<vmem>>, %arg6: memref<3x128x128xbf16, #tpu.memory_space<vmem>>, %arg7: memref<1x128xf32, #tpu.memory_space<vmem>>, %arg8: memref<3x128x256xbf16, #tpu.memory_space<vmem>>, %arg9: memref<1x256xf32, #tpu.memory_space<vmem>>, %arg10: memref<3x256x128xbf16, #tpu.memory_space<vmem>>, %arg11: memref<1x128xf32, #tpu.memory_space<vmem>>, %arg12: memref<3x128x64xbf16, #tpu.memory_space<vmem>>, %arg13: memref<1x64xf32, #tpu.memory_space<vmem>>, %arg14: memref<1x64xf32, #tpu.memory_space<vmem>>, %arg15: memref<1x1xf32, #tpu.memory_space<vmem>>, %arg16: memref<1x8x1xf32, #tpu.memory_space<vmem>>) attributes {dimension_semantics = [#tpu.dimension_semantics<parallel>], iteration_bounds = array<i64: 2>, scalar_prefetch = 0 : i64, scratch_operands = 0 : i64, tpu.core_type = #tpu.core_type<tc>, window_params = [{transform_indices = @transform_0, window_bounds = array<i64: 1, 128, 2>}, {pipeline_mode = #tpu.pipeline_mode<synchronous>, transform_indices = @transform_1, window_bounds = array<i64: 2, 64>}, {pipeline_mode = #tpu.pipeline_mode<synchronous>, transform_indices = @transform_2, window_bounds = array<i64: 1, 64>}, {pipeline_mode = #tpu.pipeline_mode<synchronous>, transform_indices = @transform_3, window_bounds = array<i64: 3, 64, 128>}, {pipeline_mode = #tpu.pipeline_mode<synchronous>, transform_indices = @transform_4, window_bounds = array<i64: 1, 128>}, {pipeline_mode = #tpu.pipeline_mode<synchronous>, transform_indices = @transform_5, window_bounds = array<i64: 3, 128, 128>}, {pipeline_mode = #tpu.pipeline_mode<synchronous>, transform_indices = @transform_6, window_bounds = array<i64: 1, 128>}, {pipeline_mode = #tpu.pipeline_mode<synchronous>, transform_indices = @transform_7, window_bounds = array<i64: 3, 128, 256>}, {pipeline_mode = #tpu.pipeline_mode<synchronous>, transform_indices = @transform_8, window_bounds = array<i64: 1, 256>}, {pipeline_mode = #tpu.pipeline_mode<synchronous>, transform_indices = @transform_9, window_bounds = array<i64: 3, 256, 128>}, {pipeline_mode = #tpu.pipeline_mode<synchronous>, transform_indices = @transform_10, window_bounds = array<i64: 1, 128>}, {pipeline_mode = #tpu.pipeline_mode<synchronous>, transform_indices = @transform_11, window_bounds = array<i64: 3, 128, 64>}, {pipeline_mode = #tpu.pipeline_mode<synchronous>, transform_indices = @transform_12, window_bounds = array<i64: 1, 64>}, {pipeline_mode = #tpu.pipeline_mode<synchronous>, transform_indices = @transform_13, window_bounds = array<i64: 1, 64>}, {pipeline_mode = #tpu.pipeline_mode<synchronous>, transform_indices = @transform_14, window_bounds = array<i64: 1, 1>}, {transform_indices = @transform_15, window_bounds = array<i64: 1, 8, 1>}]} {
    %c0 = arith.constant 0 : index
    %c0_0 = arith.constant 0 : index
    %c0_1 = arith.constant 0 : index
    %0 = vector.load %arg1[%c0, %c0_0, %c0_1] : memref<1x128x2xf32, #tpu.memory_space<vmem>>, vector<1x128x2xf32>
    %1 = vector.shape_cast %0 : vector<1x128x2xf32> to vector<128x2xf32>
    %2 = vector.extract_strided_slice %1 {offsets = [0, 0], sizes = [128, 1], strides = [1, 1]} : vector<128x2xf32> to vector<128x1xf32>
    %c0_2 = arith.constant 0 : index
    %c0_3 = arith.constant 0 : index
    %3 = vector.load %arg2[%c0_2, %c0_3] : memref<2x64xf32, #tpu.memory_space<vmem>>, vector<1x64xf32>
    %4 = vector.broadcast %2 : vector<128x1xf32> to vector<128x64xf32>
    %5 = vector.broadcast %3 : vector<1x64xf32> to vector<128x64xf32>
    %6 = arith.mulf %4, %5 : vector<128x64xf32>
    %7 = vector.extract_strided_slice %1 {offsets = [0, 1], sizes = [128, 1], strides = [1, 1]} : vector<128x2xf32> to vector<128x1xf32>
    %c1 = arith.constant 1 : index
    %c0_4 = arith.constant 0 : index
    %8 = vector.load %arg2[%c1, %c0_4] : memref<2x64xf32, #tpu.memory_space<vmem>>, vector<1x64xf32>
    %9 = vector.broadcast %7 : vector<128x1xf32> to vector<128x64xf32>
    %10 = vector.broadcast %8 : vector<1x64xf32> to vector<128x64xf32>
    %11 = arith.mulf %9, %10 : vector<128x64xf32>
    %12 = arith.addf %6, %11 : vector<128x64xf32>
    %c0_5 = arith.constant 0 : index
    %c0_6 = arith.constant 0 : index
    %13 = vector.load %arg3[%c0_5, %c0_6] : memref<1x64xf32, #tpu.memory_space<vmem>>, vector<1x64xf32>
    %14 = vector.broadcast %13 : vector<1x64xf32> to vector<128x64xf32>
    %15 = arith.addf %12, %14 : vector<128x64xf32>
    %16 = arith.truncf %15 : vector<128x64xf32> to vector<128x64xbf16>
    %c0_7 = arith.constant 0 : index
    %c0_8 = arith.constant 0 : index
    %c0_9 = arith.constant 0 : index
    %17 = vector.load %arg4[%c0_7, %c0_8, %c0_9] : memref<3x64x128xbf16, #tpu.memory_space<vmem>>, vector<1x64x128xbf16>
    %18 = vector.shape_cast %17 : vector<1x64x128xbf16> to vector<64x128xbf16>
    %cst = arith.constant dense<0.000000e+00> : vector<128x128xf32>
    %19 = tpu.matmul %16, %18, %cst {dimension_numbers = #tpu.dot_dimension_numbers<[1], [0], [0], [1], [0, 0, 1, 1], [], []>} : vector<128x64xbf16>, vector<64x128xbf16>, vector<128x128xf32> -> vector<128x128xf32>
    %c1_10 = arith.constant 1 : index
    %c0_11 = arith.constant 0 : index
    %c0_12 = arith.constant 0 : index
    %20 = vector.load %arg4[%c1_10, %c0_11, %c0_12] : memref<3x64x128xbf16, #tpu.memory_space<vmem>>, vector<1x64x128xbf16>
    %21 = vector.shape_cast %20 : vector<1x64x128xbf16> to vector<64x128xbf16>
    %cst_13 = arith.constant dense<0.000000e+00> : vector<128x128xf32>
    %22 = tpu.matmul %16, %21, %cst_13 {dimension_numbers = #tpu.dot_dimension_numbers<[1], [0], [0], [1], [0, 0, 1, 1], [], []>} : vector<128x64xbf16>, vector<64x128xbf16>, vector<128x128xf32> -> vector<128x128xf32>
    %c2 = arith.constant 2 : index
    %c0_14 = arith.constant 0 : index
    %c0_15 = arith.constant 0 : index
    %23 = vector.load %arg4[%c2, %c0_14, %c0_15] : memref<3x64x128xbf16, #tpu.memory_space<vmem>>, vector<1x64x128xbf16>
    %24 = vector.shape_cast %23 : vector<1x64x128xbf16> to vector<64x128xbf16>
    %cst_16 = arith.constant dense<0.000000e+00> : vector<128x128xf32>
    %25 = tpu.matmul %16, %24, %cst_16 {dimension_numbers = #tpu.dot_dimension_numbers<[1], [0], [0], [1], [0, 0, 1, 1], [], []>} : vector<128x64xbf16>, vector<64x128xbf16>, vector<128x128xf32> -> vector<128x128xf32>
    %c1_i32 = arith.constant 1 : i32
    %26 = tpu.dynamic_rotate %19 by %c1_i32 dim 0 : vector<128x128xf32>, i32 -> vector<128x128xf32>
    %27 = tpu.iota {dimensions = array<i32: 0>} : vector<128x128xi32>
    %c32_i32 = arith.constant 32 : i32
    %c0_i32 = arith.constant 0 : i32
    %28 = arith.cmpi eq, %c32_i32, %c0_i32 : i32
    %c1_i32_17 = arith.constant 1 : i32
    %29 = arith.select %28, %c1_i32_17, %c32_i32 : i32
    %30 = vector.broadcast %29 : i32 to vector<128x128xi32>
    %31 = arith.remsi %27, %30 : vector<128x128xi32>
    %c0_i32_18 = arith.constant 0 : i32
    %32 = vector.broadcast %c0_i32_18 : i32 to vector<128x128xi32>
    %33 = arith.cmpi ne, %31, %32 : vector<128x128xi32>
    %c0_i32_19 = arith.constant 0 : i32
    %34 = vector.broadcast %c0_i32_19 : i32 to vector<128x128xi32>
    %35 = arith.cmpi slt, %31, %34 : vector<128x128xi32>
    %c0_i32_20 = arith.constant 0 : i32
    %36 = arith.cmpi slt, %29, %c0_i32_20 : i32
    %37 = vector.broadcast %36 : i1 to vector<128x128xi1>
    %38 = vector.broadcast %37 : vector<128x128xi1> to vector<128x128xi1>
    %39 = arith.xori %35, %38 : vector<128x128xi1>
    %40 = arith.andi %39, %33 : vector<128x128xi1>
    %41 = vector.broadcast %29 : i32 to vector<128x128xi32>
    %42 = arith.addi %31, %41 : vector<128x128xi32>
    %43 = arith.select %40, %42, %31 : vector<128x128xi1>, vector<128x128xi32>
    %c0_i32_21 = arith.constant 0 : i32
    %44 = vector.broadcast %c0_i32_21 : i32 to vector<128x128xi32>
    %45 = arith.cmpi eq, %43, %44 : vector<128x128xi32>
    %cst_22 = arith.constant 0.000000e+00 : f32
    %46 = vector.broadcast %cst_22 : f32 to vector<128x128xf32>
    %47 = arith.select %45, %46, %26 : vector<128x128xi1>, vector<128x128xf32>
    %48 = arith.addf %47, %22 : vector<128x128xf32>
    %c127_i32 = arith.constant 127 : i32
    %49 = tpu.dynamic_rotate %25 by %c127_i32 dim 0 : vector<128x128xf32>, i32 -> vector<128x128xf32>
    %50 = tpu.iota {dimensions = array<i32: 0>} : vector<128x128xi32>
    %c32_i32_23 = arith.constant 32 : i32
    %c0_i32_24 = arith.constant 0 : i32
    %51 = arith.cmpi eq, %c32_i32_23, %c0_i32_24 : i32
    %c1_i32_25 = arith.constant 1 : i32
    %52 = arith.select %51, %c1_i32_25, %c32_i32_23 : i32
    %53 = vector.broadcast %52 : i32 to vector<128x128xi32>
    %54 = arith.remsi %50, %53 : vector<128x128xi32>
    %c0_i32_26 = arith.constant 0 : i32
    %55 = vector.broadcast %c0_i32_26 : i32 to vector<128x128xi32>
    %56 = arith.cmpi ne, %54, %55 : vector<128x128xi32>
    %c0_i32_27 = arith.constant 0 : i32
    %57 = vector.broadcast %c0_i32_27 : i32 to vector<128x128xi32>
    %58 = arith.cmpi slt, %54, %57 : vector<128x128xi32>
    %c0_i32_28 = arith.constant 0 : i32
    %59 = arith.cmpi slt, %52, %c0_i32_28 : i32
    %60 = vector.broadcast %59 : i1 to vector<128x128xi1>
    %61 = vector.broadcast %60 : vector<128x128xi1> to vector<128x128xi1>
    %62 = arith.xori %58, %61 : vector<128x128xi1>
    %63 = arith.andi %62, %56 : vector<128x128xi1>
    %64 = vector.broadcast %52 : i32 to vector<128x128xi32>
    %65 = arith.addi %54, %64 : vector<128x128xi32>
    %66 = arith.select %63, %65, %54 : vector<128x128xi1>, vector<128x128xi32>
    %c31_i32 = arith.constant 31 : i32
    %67 = vector.broadcast %c31_i32 : i32 to vector<128x128xi32>
    %68 = arith.cmpi eq, %66, %67 : vector<128x128xi32>
    %cst_29 = arith.constant 0.000000e+00 : f32
    %69 = vector.broadcast %cst_29 : f32 to vector<128x128xf32>
    %70 = arith.select %68, %69, %49 : vector<128x128xi1>, vector<128x128xf32>
    %71 = arith.addf %48, %70 : vector<128x128xf32>
    %c0_30 = arith.constant 0 : index
    %c0_31 = arith.constant 0 : index
    %72 = vector.load %arg5[%c0_30, %c0_31] : memref<1x128xf32, #tpu.memory_space<vmem>>, vector<1x128xf32>
    %73 = vector.broadcast %72 : vector<1x128xf32> to vector<128x128xf32>
    %74 = arith.addf %71, %73 : vector<128x128xf32>
    %75 = vector.shape_cast %74 : vector<128x128xf32> to vector<64x2x128xf32>
    %cst_32 = arith.constant dense<0xFF800000> : vector<64x128xf32>
    %76 = vector.multi_reduction <maximumf>, %75, %cst_32 [1] : vector<64x2x128xf32> to vector<64x128xf32>
    %77 = math.tanh %76 : vector<64x128xf32>
    %78 = arith.truncf %77 : vector<64x128xf32> to vector<64x128xbf16>
    %c0_33 = arith.constant 0 : index
    %c0_34 = arith.constant 0 : index
    %c0_35 = arith.constant 0 : index
    %79 = vector.load %arg6[%c0_33, %c0_34, %c0_35] : memref<3x128x128xbf16, #tpu.memory_space<vmem>>, vector<1x128x128xbf16>
    %80 = vector.shape_cast %79 : vector<1x128x128xbf16> to vector<128x128xbf16>
    %cst_36 = arith.constant dense<0.000000e+00> : vector<64x128xf32>
    %81 = tpu.matmul %78, %80, %cst_36 {dimension_numbers = #tpu.dot_dimension_numbers<[1], [0], [0], [1], [0, 0, 1, 1], [], []>} : vector<64x128xbf16>, vector<128x128xbf16>, vector<64x128xf32> -> vector<64x128xf32>
    %c1_37 = arith.constant 1 : index
    %c0_38 = arith.constant 0 : index
    %c0_39 = arith.constant 0 : index
    %82 = vector.load %arg6[%c1_37, %c0_38, %c0_39] : memref<3x128x128xbf16, #tpu.memory_space<vmem>>, vector<1x128x128xbf16>
    %83 = vector.shape_cast %82 : vector<1x128x128xbf16> to vector<128x128xbf16>
    %cst_40 = arith.constant dense<0.000000e+00> : vector<64x128xf32>
    %84 = tpu.matmul %78, %83, %cst_40 {dimension_numbers = #tpu.dot_dimension_numbers<[1], [0], [0], [1], [0, 0, 1, 1], [], []>} : vector<64x128xbf16>, vector<128x128xbf16>, vector<64x128xf32> -> vector<64x128xf32>
    %c2_41 = arith.constant 2 : index
    %c0_42 = arith.constant 0 : index
    %c0_43 = arith.constant 0 : index
    %85 = vector.load %arg6[%c2_41, %c0_42, %c0_43] : memref<3x128x128xbf16, #tpu.memory_space<vmem>>, vector<1x128x128xbf16>
    %86 = vector.shape_cast %85 : vector<1x128x128xbf16> to vector<128x128xbf16>
    %cst_44 = arith.constant dense<0.000000e+00> : vector<64x128xf32>
    %87 = tpu.matmul %78, %86, %cst_44 {dimension_numbers = #tpu.dot_dimension_numbers<[1], [0], [0], [1], [0, 0, 1, 1], [], []>} : vector<64x128xbf16>, vector<128x128xbf16>, vector<64x128xf32> -> vector<64x128xf32>
    %c1_i32_45 = arith.constant 1 : i32
    %88 = tpu.dynamic_rotate %81 by %c1_i32_45 dim 0 : vector<64x128xf32>, i32 -> vector<64x128xf32>
    %89 = tpu.iota {dimensions = array<i32: 0>} : vector<64x128xi32>
    %c16_i32 = arith.constant 16 : i32
    %c0_i32_46 = arith.constant 0 : i32
    %90 = arith.cmpi eq, %c16_i32, %c0_i32_46 : i32
    %c1_i32_47 = arith.constant 1 : i32
    %91 = arith.select %90, %c1_i32_47, %c16_i32 : i32
    %92 = vector.broadcast %91 : i32 to vector<64x128xi32>
    %93 = arith.remsi %89, %92 : vector<64x128xi32>
    %c0_i32_48 = arith.constant 0 : i32
    %94 = vector.broadcast %c0_i32_48 : i32 to vector<64x128xi32>
    %95 = arith.cmpi ne, %93, %94 : vector<64x128xi32>
    %c0_i32_49 = arith.constant 0 : i32
    %96 = vector.broadcast %c0_i32_49 : i32 to vector<64x128xi32>
    %97 = arith.cmpi slt, %93, %96 : vector<64x128xi32>
    %c0_i32_50 = arith.constant 0 : i32
    %98 = arith.cmpi slt, %91, %c0_i32_50 : i32
    %99 = vector.broadcast %98 : i1 to vector<64x128xi1>
    %100 = vector.broadcast %99 : vector<64x128xi1> to vector<64x128xi1>
    %101 = arith.xori %97, %100 : vector<64x128xi1>
    %102 = arith.andi %101, %95 : vector<64x128xi1>
    %103 = vector.broadcast %91 : i32 to vector<64x128xi32>
    %104 = arith.addi %93, %103 : vector<64x128xi32>
    %105 = arith.select %102, %104, %93 : vector<64x128xi1>, vector<64x128xi32>
    %c0_i32_51 = arith.constant 0 : i32
    %106 = vector.broadcast %c0_i32_51 : i32 to vector<64x128xi32>
    %107 = arith.cmpi eq, %105, %106 : vector<64x128xi32>
    %cst_52 = arith.constant 0.000000e+00 : f32
    %108 = vector.broadcast %cst_52 : f32 to vector<64x128xf32>
    %109 = arith.select %107, %108, %88 : vector<64x128xi1>, vector<64x128xf32>
    %110 = arith.addf %109, %84 : vector<64x128xf32>
    %c63_i32 = arith.constant 63 : i32
    %111 = tpu.dynamic_rotate %87 by %c63_i32 dim 0 : vector<64x128xf32>, i32 -> vector<64x128xf32>
    %112 = tpu.iota {dimensions = array<i32: 0>} : vector<64x128xi32>
    %c16_i32_53 = arith.constant 16 : i32
    %c0_i32_54 = arith.constant 0 : i32
    %113 = arith.cmpi eq, %c16_i32_53, %c0_i32_54 : i32
    %c1_i32_55 = arith.constant 1 : i32
    %114 = arith.select %113, %c1_i32_55, %c16_i32_53 : i32
    %115 = vector.broadcast %114 : i32 to vector<64x128xi32>
    %116 = arith.remsi %112, %115 : vector<64x128xi32>
    %c0_i32_56 = arith.constant 0 : i32
    %117 = vector.broadcast %c0_i32_56 : i32 to vector<64x128xi32>
    %118 = arith.cmpi ne, %116, %117 : vector<64x128xi32>
    %c0_i32_57 = arith.constant 0 : i32
    %119 = vector.broadcast %c0_i32_57 : i32 to vector<64x128xi32>
    %120 = arith.cmpi slt, %116, %119 : vector<64x128xi32>
    %c0_i32_58 = arith.constant 0 : i32
    %121 = arith.cmpi slt, %114, %c0_i32_58 : i32
    %122 = vector.broadcast %121 : i1 to vector<64x128xi1>
    %123 = vector.broadcast %122 : vector<64x128xi1> to vector<64x128xi1>
    %124 = arith.xori %120, %123 : vector<64x128xi1>
    %125 = arith.andi %124, %118 : vector<64x128xi1>
    %126 = vector.broadcast %114 : i32 to vector<64x128xi32>
    %127 = arith.addi %116, %126 : vector<64x128xi32>
    %128 = arith.select %125, %127, %116 : vector<64x128xi1>, vector<64x128xi32>
    %c15_i32 = arith.constant 15 : i32
    %129 = vector.broadcast %c15_i32 : i32 to vector<64x128xi32>
    %130 = arith.cmpi eq, %128, %129 : vector<64x128xi32>
    %cst_59 = arith.constant 0.000000e+00 : f32
    %131 = vector.broadcast %cst_59 : f32 to vector<64x128xf32>
    %132 = arith.select %130, %131, %111 : vector<64x128xi1>, vector<64x128xf32>
    %133 = arith.addf %110, %132 : vector<64x128xf32>
    %c0_60 = arith.constant 0 : index
    %c0_61 = arith.constant 0 : index
    %134 = vector.load %arg7[%c0_60, %c0_61] : memref<1x128xf32, #tpu.memory_space<vmem>>, vector<1x128xf32>
    %135 = vector.broadcast %134 : vector<1x128xf32> to vector<64x128xf32>
    %136 = arith.addf %133, %135 : vector<64x128xf32>
    %137 = vector.shape_cast %136 : vector<64x128xf32> to vector<32x2x128xf32>
    %cst_62 = arith.constant dense<0xFF800000> : vector<32x128xf32>
    %138 = vector.multi_reduction <maximumf>, %137, %cst_62 [1] : vector<32x2x128xf32> to vector<32x128xf32>
    %139 = math.tanh %138 : vector<32x128xf32>
    %140 = arith.truncf %139 : vector<32x128xf32> to vector<32x128xbf16>
    %c0_63 = arith.constant 0 : index
    %c0_64 = arith.constant 0 : index
    %c0_65 = arith.constant 0 : index
    %141 = vector.load %arg8[%c0_63, %c0_64, %c0_65] : memref<3x128x256xbf16, #tpu.memory_space<vmem>>, vector<1x128x256xbf16>
    %142 = vector.shape_cast %141 : vector<1x128x256xbf16> to vector<128x256xbf16>
    %cst_66 = arith.constant dense<0.000000e+00> : vector<32x256xf32>
    %143 = tpu.matmul %140, %142, %cst_66 {dimension_numbers = #tpu.dot_dimension_numbers<[1], [0], [0], [1], [0, 0, 1, 1], [], []>} : vector<32x128xbf16>, vector<128x256xbf16>, vector<32x256xf32> -> vector<32x256xf32>
    %c1_67 = arith.constant 1 : index
    %c0_68 = arith.constant 0 : index
    %c0_69 = arith.constant 0 : index
    %144 = vector.load %arg8[%c1_67, %c0_68, %c0_69] : memref<3x128x256xbf16, #tpu.memory_space<vmem>>, vector<1x128x256xbf16>
    %145 = vector.shape_cast %144 : vector<1x128x256xbf16> to vector<128x256xbf16>
    %cst_70 = arith.constant dense<0.000000e+00> : vector<32x256xf32>
    %146 = tpu.matmul %140, %145, %cst_70 {dimension_numbers = #tpu.dot_dimension_numbers<[1], [0], [0], [1], [0, 0, 1, 1], [], []>} : vector<32x128xbf16>, vector<128x256xbf16>, vector<32x256xf32> -> vector<32x256xf32>
    %c2_71 = arith.constant 2 : index
    %c0_72 = arith.constant 0 : index
    %c0_73 = arith.constant 0 : index
    %147 = vector.load %arg8[%c2_71, %c0_72, %c0_73] : memref<3x128x256xbf16, #tpu.memory_space<vmem>>, vector<1x128x256xbf16>
    %148 = vector.shape_cast %147 : vector<1x128x256xbf16> to vector<128x256xbf16>
    %cst_74 = arith.constant dense<0.000000e+00> : vector<32x256xf32>
    %149 = tpu.matmul %140, %148, %cst_74 {dimension_numbers = #tpu.dot_dimension_numbers<[1], [0], [0], [1], [0, 0, 1, 1], [], []>} : vector<32x128xbf16>, vector<128x256xbf16>, vector<32x256xf32> -> vector<32x256xf32>
    %c1_i32_75 = arith.constant 1 : i32
    %150 = tpu.dynamic_rotate %143 by %c1_i32_75 dim 0 : vector<32x256xf32>, i32 -> vector<32x256xf32>
    %151 = tpu.iota {dimensions = array<i32: 0>} : vector<32x256xi32>
    %c8_i32 = arith.constant 8 : i32
    %c0_i32_76 = arith.constant 0 : i32
    %152 = arith.cmpi eq, %c8_i32, %c0_i32_76 : i32
    %c1_i32_77 = arith.constant 1 : i32
    %153 = arith.select %152, %c1_i32_77, %c8_i32 : i32
    %154 = vector.broadcast %153 : i32 to vector<32x256xi32>
    %155 = arith.remsi %151, %154 : vector<32x256xi32>
    %c0_i32_78 = arith.constant 0 : i32
    %156 = vector.broadcast %c0_i32_78 : i32 to vector<32x256xi32>
    %157 = arith.cmpi ne, %155, %156 : vector<32x256xi32>
    %c0_i32_79 = arith.constant 0 : i32
    %158 = vector.broadcast %c0_i32_79 : i32 to vector<32x256xi32>
    %159 = arith.cmpi slt, %155, %158 : vector<32x256xi32>
    %c0_i32_80 = arith.constant 0 : i32
    %160 = arith.cmpi slt, %153, %c0_i32_80 : i32
    %161 = vector.broadcast %160 : i1 to vector<32x256xi1>
    %162 = vector.broadcast %161 : vector<32x256xi1> to vector<32x256xi1>
    %163 = arith.xori %159, %162 : vector<32x256xi1>
    %164 = arith.andi %163, %157 : vector<32x256xi1>
    %165 = vector.broadcast %153 : i32 to vector<32x256xi32>
    %166 = arith.addi %155, %165 : vector<32x256xi32>
    %167 = arith.select %164, %166, %155 : vector<32x256xi1>, vector<32x256xi32>
    %c0_i32_81 = arith.constant 0 : i32
    %168 = vector.broadcast %c0_i32_81 : i32 to vector<32x256xi32>
    %169 = arith.cmpi eq, %167, %168 : vector<32x256xi32>
    %cst_82 = arith.constant 0.000000e+00 : f32
    %170 = vector.broadcast %cst_82 : f32 to vector<32x256xf32>
    %171 = arith.select %169, %170, %150 : vector<32x256xi1>, vector<32x256xf32>
    %172 = arith.addf %171, %146 : vector<32x256xf32>
    %c31_i32_83 = arith.constant 31 : i32
    %173 = tpu.dynamic_rotate %149 by %c31_i32_83 dim 0 : vector<32x256xf32>, i32 -> vector<32x256xf32>
    %174 = tpu.iota {dimensions = array<i32: 0>} : vector<32x256xi32>
    %c8_i32_84 = arith.constant 8 : i32
    %c0_i32_85 = arith.constant 0 : i32
    %175 = arith.cmpi eq, %c8_i32_84, %c0_i32_85 : i32
    %c1_i32_86 = arith.constant 1 : i32
    %176 = arith.select %175, %c1_i32_86, %c8_i32_84 : i32
    %177 = vector.broadcast %176 : i32 to vector<32x256xi32>
    %178 = arith.remsi %174, %177 : vector<32x256xi32>
    %c0_i32_87 = arith.constant 0 : i32
    %179 = vector.broadcast %c0_i32_87 : i32 to vector<32x256xi32>
    %180 = arith.cmpi ne, %178, %179 : vector<32x256xi32>
    %c0_i32_88 = arith.constant 0 : i32
    %181 = vector.broadcast %c0_i32_88 : i32 to vector<32x256xi32>
    %182 = arith.cmpi slt, %178, %181 : vector<32x256xi32>
    %c0_i32_89 = arith.constant 0 : i32
    %183 = arith.cmpi slt, %176, %c0_i32_89 : i32
    %184 = vector.broadcast %183 : i1 to vector<32x256xi1>
    %185 = vector.broadcast %184 : vector<32x256xi1> to vector<32x256xi1>
    %186 = arith.xori %182, %185 : vector<32x256xi1>
    %187 = arith.andi %186, %180 : vector<32x256xi1>
    %188 = vector.broadcast %176 : i32 to vector<32x256xi32>
    %189 = arith.addi %178, %188 : vector<32x256xi32>
    %190 = arith.select %187, %189, %178 : vector<32x256xi1>, vector<32x256xi32>
    %c7_i32 = arith.constant 7 : i32
    %191 = vector.broadcast %c7_i32 : i32 to vector<32x256xi32>
    %192 = arith.cmpi eq, %190, %191 : vector<32x256xi32>
    %cst_90 = arith.constant 0.000000e+00 : f32
    %193 = vector.broadcast %cst_90 : f32 to vector<32x256xf32>
    %194 = arith.select %192, %193, %173 : vector<32x256xi1>, vector<32x256xf32>
    %195 = arith.addf %172, %194 : vector<32x256xf32>
    %c0_91 = arith.constant 0 : index
    %c0_92 = arith.constant 0 : index
    %196 = vector.load %arg9[%c0_91, %c0_92] : memref<1x256xf32, #tpu.memory_space<vmem>>, vector<1x256xf32>
    %197 = vector.broadcast %196 : vector<1x256xf32> to vector<32x256xf32>
    %198 = arith.addf %195, %197 : vector<32x256xf32>
    %199 = vector.shape_cast %198 : vector<32x256xf32> to vector<16x2x256xf32>
    %cst_93 = arith.constant dense<0xFF800000> : vector<16x256xf32>
    %200 = vector.multi_reduction <maximumf>, %199, %cst_93 [1] : vector<16x2x256xf32> to vector<16x256xf32>
    %201 = math.tanh %200 : vector<16x256xf32>
    %202 = arith.truncf %201 : vector<16x256xf32> to vector<16x256xbf16>
    %c0_94 = arith.constant 0 : index
    %c0_95 = arith.constant 0 : index
    %c0_96 = arith.constant 0 : index
    %203 = vector.load %arg10[%c0_94, %c0_95, %c0_96] : memref<3x256x128xbf16, #tpu.memory_space<vmem>>, vector<1x256x128xbf16>
    %204 = vector.shape_cast %203 : vector<1x256x128xbf16> to vector<256x128xbf16>
    %cst_97 = arith.constant dense<0.000000e+00> : vector<16x128xf32>
    %205 = tpu.matmul %202, %204, %cst_97 {dimension_numbers = #tpu.dot_dimension_numbers<[1], [0], [0], [1], [0, 0, 1, 1], [], []>} : vector<16x256xbf16>, vector<256x128xbf16>, vector<16x128xf32> -> vector<16x128xf32>
    %c1_98 = arith.constant 1 : index
    %c0_99 = arith.constant 0 : index
    %c0_100 = arith.constant 0 : index
    %206 = vector.load %arg10[%c1_98, %c0_99, %c0_100] : memref<3x256x128xbf16, #tpu.memory_space<vmem>>, vector<1x256x128xbf16>
    %207 = vector.shape_cast %206 : vector<1x256x128xbf16> to vector<256x128xbf16>
    %cst_101 = arith.constant dense<0.000000e+00> : vector<16x128xf32>
    %208 = tpu.matmul %202, %207, %cst_101 {dimension_numbers = #tpu.dot_dimension_numbers<[1], [0], [0], [1], [0, 0, 1, 1], [], []>} : vector<16x256xbf16>, vector<256x128xbf16>, vector<16x128xf32> -> vector<16x128xf32>
    %c2_102 = arith.constant 2 : index
    %c0_103 = arith.constant 0 : index
    %c0_104 = arith.constant 0 : index
    %209 = vector.load %arg10[%c2_102, %c0_103, %c0_104] : memref<3x256x128xbf16, #tpu.memory_space<vmem>>, vector<1x256x128xbf16>
    %210 = vector.shape_cast %209 : vector<1x256x128xbf16> to vector<256x128xbf16>
    %cst_105 = arith.constant dense<0.000000e+00> : vector<16x128xf32>
    %211 = tpu.matmul %202, %210, %cst_105 {dimension_numbers = #tpu.dot_dimension_numbers<[1], [0], [0], [1], [0, 0, 1, 1], [], []>} : vector<16x256xbf16>, vector<256x128xbf16>, vector<16x128xf32> -> vector<16x128xf32>
    %c1_i32_106 = arith.constant 1 : i32
    %212 = tpu.dynamic_rotate %205 by %c1_i32_106 dim 0 : vector<16x128xf32>, i32 -> vector<16x128xf32>
    %213 = tpu.iota {dimensions = array<i32: 0>} : vector<16x128xi32>
    %c4_i32 = arith.constant 4 : i32
    %c0_i32_107 = arith.constant 0 : i32
    %214 = arith.cmpi eq, %c4_i32, %c0_i32_107 : i32
    %c1_i32_108 = arith.constant 1 : i32
    %215 = arith.select %214, %c1_i32_108, %c4_i32 : i32
    %216 = vector.broadcast %215 : i32 to vector<16x128xi32>
    %217 = arith.remsi %213, %216 : vector<16x128xi32>
    %c0_i32_109 = arith.constant 0 : i32
    %218 = vector.broadcast %c0_i32_109 : i32 to vector<16x128xi32>
    %219 = arith.cmpi ne, %217, %218 : vector<16x128xi32>
    %c0_i32_110 = arith.constant 0 : i32
    %220 = vector.broadcast %c0_i32_110 : i32 to vector<16x128xi32>
    %221 = arith.cmpi slt, %217, %220 : vector<16x128xi32>
    %c0_i32_111 = arith.constant 0 : i32
    %222 = arith.cmpi slt, %215, %c0_i32_111 : i32
    %223 = vector.broadcast %222 : i1 to vector<16x128xi1>
    %224 = vector.broadcast %223 : vector<16x128xi1> to vector<16x128xi1>
    %225 = arith.xori %221, %224 : vector<16x128xi1>
    %226 = arith.andi %225, %219 : vector<16x128xi1>
    %227 = vector.broadcast %215 : i32 to vector<16x128xi32>
    %228 = arith.addi %217, %227 : vector<16x128xi32>
    %229 = arith.select %226, %228, %217 : vector<16x128xi1>, vector<16x128xi32>
    %c0_i32_112 = arith.constant 0 : i32
    %230 = vector.broadcast %c0_i32_112 : i32 to vector<16x128xi32>
    %231 = arith.cmpi eq, %229, %230 : vector<16x128xi32>
    %cst_113 = arith.constant 0.000000e+00 : f32
    %232 = vector.broadcast %cst_113 : f32 to vector<16x128xf32>
    %233 = arith.select %231, %232, %212 : vector<16x128xi1>, vector<16x128xf32>
    %234 = arith.addf %233, %208 : vector<16x128xf32>
    %c15_i32_114 = arith.constant 15 : i32
    %235 = tpu.dynamic_rotate %211 by %c15_i32_114 dim 0 : vector<16x128xf32>, i32 -> vector<16x128xf32>
    %236 = tpu.iota {dimensions = array<i32: 0>} : vector<16x128xi32>
    %c4_i32_115 = arith.constant 4 : i32
    %c0_i32_116 = arith.constant 0 : i32
    %237 = arith.cmpi eq, %c4_i32_115, %c0_i32_116 : i32
    %c1_i32_117 = arith.constant 1 : i32
    %238 = arith.select %237, %c1_i32_117, %c4_i32_115 : i32
    %239 = vector.broadcast %238 : i32 to vector<16x128xi32>
    %240 = arith.remsi %236, %239 : vector<16x128xi32>
    %c0_i32_118 = arith.constant 0 : i32
    %241 = vector.broadcast %c0_i32_118 : i32 to vector<16x128xi32>
    %242 = arith.cmpi ne, %240, %241 : vector<16x128xi32>
    %c0_i32_119 = arith.constant 0 : i32
    %243 = vector.broadcast %c0_i32_119 : i32 to vector<16x128xi32>
    %244 = arith.cmpi slt, %240, %243 : vector<16x128xi32>
    %c0_i32_120 = arith.constant 0 : i32
    %245 = arith.cmpi slt, %238, %c0_i32_120 : i32
    %246 = vector.broadcast %245 : i1 to vector<16x128xi1>
    %247 = vector.broadcast %246 : vector<16x128xi1> to vector<16x128xi1>
    %248 = arith.xori %244, %247 : vector<16x128xi1>
    %249 = arith.andi %248, %242 : vector<16x128xi1>
    %250 = vector.broadcast %238 : i32 to vector<16x128xi32>
    %251 = arith.addi %240, %250 : vector<16x128xi32>
    %252 = arith.select %249, %251, %240 : vector<16x128xi1>, vector<16x128xi32>
    %c3_i32 = arith.constant 3 : i32
    %253 = vector.broadcast %c3_i32 : i32 to vector<16x128xi32>
    %254 = arith.cmpi eq, %252, %253 : vector<16x128xi32>
    %cst_121 = arith.constant 0.000000e+00 : f32
    %255 = vector.broadcast %cst_121 : f32 to vector<16x128xf32>
    %256 = arith.select %254, %255, %235 : vector<16x128xi1>, vector<16x128xf32>
    %257 = arith.addf %234, %256 : vector<16x128xf32>
    %c0_122 = arith.constant 0 : index
    %c0_123 = arith.constant 0 : index
    %258 = vector.load %arg11[%c0_122, %c0_123] : memref<1x128xf32, #tpu.memory_space<vmem>>, vector<1x128xf32>
    %259 = vector.broadcast %258 : vector<1x128xf32> to vector<16x128xf32>
    %260 = arith.addf %257, %259 : vector<16x128xf32>
    %261 = vector.shape_cast %260 : vector<16x128xf32> to vector<8x2x128xf32>
    %cst_124 = arith.constant dense<0xFF800000> : vector<8x128xf32>
    %262 = vector.multi_reduction <maximumf>, %261, %cst_124 [1] : vector<8x2x128xf32> to vector<8x128xf32>
    %263 = math.tanh %262 : vector<8x128xf32>
    %264 = arith.truncf %263 : vector<8x128xf32> to vector<8x128xbf16>
    %c0_125 = arith.constant 0 : index
    %c0_126 = arith.constant 0 : index
    %c0_127 = arith.constant 0 : index
    %265 = vector.load %arg12[%c0_125, %c0_126, %c0_127] : memref<3x128x64xbf16, #tpu.memory_space<vmem>>, vector<1x128x64xbf16>
    %266 = vector.shape_cast %265 : vector<1x128x64xbf16> to vector<128x64xbf16>
    %cst_128 = arith.constant dense<0.000000e+00> : vector<8x64xf32>
    %267 = tpu.matmul %264, %266, %cst_128 {dimension_numbers = #tpu.dot_dimension_numbers<[1], [0], [0], [1], [0, 0, 1, 1], [], []>} : vector<8x128xbf16>, vector<128x64xbf16>, vector<8x64xf32> -> vector<8x64xf32>
    %c1_129 = arith.constant 1 : index
    %c0_130 = arith.constant 0 : index
    %c0_131 = arith.constant 0 : index
    %268 = vector.load %arg12[%c1_129, %c0_130, %c0_131] : memref<3x128x64xbf16, #tpu.memory_space<vmem>>, vector<1x128x64xbf16>
    %269 = vector.shape_cast %268 : vector<1x128x64xbf16> to vector<128x64xbf16>
    %cst_132 = arith.constant dense<0.000000e+00> : vector<8x64xf32>
    %270 = tpu.matmul %264, %269, %cst_132 {dimension_numbers = #tpu.dot_dimension_numbers<[1], [0], [0], [1], [0, 0, 1, 1], [], []>} : vector<8x128xbf16>, vector<128x64xbf16>, vector<8x64xf32> -> vector<8x64xf32>
    %c2_133 = arith.constant 2 : index
    %c0_134 = arith.constant 0 : index
    %c0_135 = arith.constant 0 : index
    %271 = vector.load %arg12[%c2_133, %c0_134, %c0_135] : memref<3x128x64xbf16, #tpu.memory_space<vmem>>, vector<1x128x64xbf16>
    %272 = vector.shape_cast %271 : vector<1x128x64xbf16> to vector<128x64xbf16>
    %cst_136 = arith.constant dense<0.000000e+00> : vector<8x64xf32>
    %273 = tpu.matmul %264, %272, %cst_136 {dimension_numbers = #tpu.dot_dimension_numbers<[1], [0], [0], [1], [0, 0, 1, 1], [], []>} : vector<8x128xbf16>, vector<128x64xbf16>, vector<8x64xf32> -> vector<8x64xf32>
    %c1_i32_137 = arith.constant 1 : i32
    %274 = tpu.dynamic_rotate %267 by %c1_i32_137 dim 0 : vector<8x64xf32>, i32 -> vector<8x64xf32>
    %275 = tpu.iota {dimensions = array<i32: 0>} : vector<8x64xi32>
    %c2_i32 = arith.constant 2 : i32
    %c0_i32_138 = arith.constant 0 : i32
    %276 = arith.cmpi eq, %c2_i32, %c0_i32_138 : i32
    %c1_i32_139 = arith.constant 1 : i32
    %277 = arith.select %276, %c1_i32_139, %c2_i32 : i32
    %278 = vector.broadcast %277 : i32 to vector<8x64xi32>
    %279 = arith.remsi %275, %278 : vector<8x64xi32>
    %c0_i32_140 = arith.constant 0 : i32
    %280 = vector.broadcast %c0_i32_140 : i32 to vector<8x64xi32>
    %281 = arith.cmpi ne, %279, %280 : vector<8x64xi32>
    %c0_i32_141 = arith.constant 0 : i32
    %282 = vector.broadcast %c0_i32_141 : i32 to vector<8x64xi32>
    %283 = arith.cmpi slt, %279, %282 : vector<8x64xi32>
    %c0_i32_142 = arith.constant 0 : i32
    %284 = arith.cmpi slt, %277, %c0_i32_142 : i32
    %285 = vector.broadcast %284 : i1 to vector<8x64xi1>
    %286 = vector.broadcast %285 : vector<8x64xi1> to vector<8x64xi1>
    %287 = arith.xori %283, %286 : vector<8x64xi1>
    %288 = arith.andi %287, %281 : vector<8x64xi1>
    %289 = vector.broadcast %277 : i32 to vector<8x64xi32>
    %290 = arith.addi %279, %289 : vector<8x64xi32>
    %291 = arith.select %288, %290, %279 : vector<8x64xi1>, vector<8x64xi32>
    %c0_i32_143 = arith.constant 0 : i32
    %292 = vector.broadcast %c0_i32_143 : i32 to vector<8x64xi32>
    %293 = arith.cmpi eq, %291, %292 : vector<8x64xi32>
    %cst_144 = arith.constant 0.000000e+00 : f32
    %294 = vector.broadcast %cst_144 : f32 to vector<8x64xf32>
    %295 = arith.select %293, %294, %274 : vector<8x64xi1>, vector<8x64xf32>
    %296 = arith.addf %295, %270 : vector<8x64xf32>
    %c7_i32_145 = arith.constant 7 : i32
    %297 = tpu.dynamic_rotate %273 by %c7_i32_145 dim 0 : vector<8x64xf32>, i32 -> vector<8x64xf32>
    %298 = tpu.iota {dimensions = array<i32: 0>} : vector<8x64xi32>
    %c2_i32_146 = arith.constant 2 : i32
    %c0_i32_147 = arith.constant 0 : i32
    %299 = arith.cmpi eq, %c2_i32_146, %c0_i32_147 : i32
    %c1_i32_148 = arith.constant 1 : i32
    %300 = arith.select %299, %c1_i32_148, %c2_i32_146 : i32
    %301 = vector.broadcast %300 : i32 to vector<8x64xi32>
    %302 = arith.remsi %298, %301 : vector<8x64xi32>
    %c0_i32_149 = arith.constant 0 : i32
    %303 = vector.broadcast %c0_i32_149 : i32 to vector<8x64xi32>
    %304 = arith.cmpi ne, %302, %303 : vector<8x64xi32>
    %c0_i32_150 = arith.constant 0 : i32
    %305 = vector.broadcast %c0_i32_150 : i32 to vector<8x64xi32>
    %306 = arith.cmpi slt, %302, %305 : vector<8x64xi32>
    %c0_i32_151 = arith.constant 0 : i32
    %307 = arith.cmpi slt, %300, %c0_i32_151 : i32
    %308 = vector.broadcast %307 : i1 to vector<8x64xi1>
    %309 = vector.broadcast %308 : vector<8x64xi1> to vector<8x64xi1>
    %310 = arith.xori %306, %309 : vector<8x64xi1>
    %311 = arith.andi %310, %304 : vector<8x64xi1>
    %312 = vector.broadcast %300 : i32 to vector<8x64xi32>
    %313 = arith.addi %302, %312 : vector<8x64xi32>
    %314 = arith.select %311, %313, %302 : vector<8x64xi1>, vector<8x64xi32>
    %c1_i32_152 = arith.constant 1 : i32
    %315 = vector.broadcast %c1_i32_152 : i32 to vector<8x64xi32>
    %316 = arith.cmpi eq, %314, %315 : vector<8x64xi32>
    %cst_153 = arith.constant 0.000000e+00 : f32
    %317 = vector.broadcast %cst_153 : f32 to vector<8x64xf32>
    %318 = arith.select %316, %317, %297 : vector<8x64xi1>, vector<8x64xf32>
    %319 = arith.addf %296, %318 : vector<8x64xf32>
    %c0_154 = arith.constant 0 : index
    %c0_155 = arith.constant 0 : index
    %320 = vector.load %arg13[%c0_154, %c0_155] : memref<1x64xf32, #tpu.memory_space<vmem>>, vector<1x64xf32>
    %321 = vector.broadcast %320 : vector<1x64xf32> to vector<8x64xf32>
    %322 = arith.addf %319, %321 : vector<8x64xf32>
    %323 = math.tanh %322 : vector<8x64xf32>
    %c0_156 = arith.constant 0 : index
    %c0_157 = arith.constant 0 : index
    %324 = vector.load %arg14[%c0_156, %c0_157] : memref<1x64xf32, #tpu.memory_space<vmem>>, vector<1x64xf32>
    %325 = vector.broadcast %324 : vector<1x64xf32> to vector<8x64xf32>
    %326 = arith.mulf %323, %325 : vector<8x64xf32>
    %cst_158 = arith.constant dense<0.000000e+00> : vector<8xf32>
    %327 = vector.multi_reduction <add>, %326, %cst_158 [1] : vector<8x64xf32> to vector<8xf32>
    %328 = vector.shape_cast %327 : vector<8xf32> to vector<8x1xf32>
    %c0_159 = arith.constant 0 : index
    %c0_160 = arith.constant 0 : index
    %329 = vector.load %arg15[%c0_159, %c0_160] : memref<1x1xf32, #tpu.memory_space<vmem>>, vector<1x1xf32>
    %330 = vector.broadcast %329 : vector<1x1xf32> to vector<8x1xf32>
    %331 = arith.addf %328, %330 : vector<8x1xf32>
    %c0_161 = arith.constant 0 : index
    %c0_162 = arith.constant 0 : index
    %c0_163 = arith.constant 0 : index
    %332 = vector.load %arg16[%c0_161, %c0_162, %c0_163] : memref<1x8x1xf32, #tpu.memory_space<vmem>>, vector<1x8x1xf32>
    %333 = vector.shape_cast %332 : vector<1x8x1xf32> to vector<8x1xf32>
    %334 = vector.shape_cast %331 : vector<8x1xf32> to vector<1x8x1xf32>
    tpu.vector_store %arg16[%c0_161, %c0_162, %c0_163], %334 {strides = array<i32>} : memref<1x8x1xf32, #tpu.memory_space<vmem>>, vector<1x8x1xf32>,
    return
  }
  func.func @transform_0(%arg0: i32) -> (i32, i32, i32) {
    %c0_i32 = arith.constant 0 : i32
    %c0_i32_0 = arith.constant 0 : i32
    %c0_i32_1 = arith.constant 0 : i32
    return %arg0, %c0_i32, %c0_i32_0 : i32, i32, i32
  }
  func.func @transform_1(%arg0: i32) -> (i32, i32) {
    %c0_i32 = arith.constant 0 : i32
    %c0_i32_0 = arith.constant 0 : i32
    %c0_i32_1 = arith.constant 0 : i32
    return %c0_i32, %c0_i32_0 : i32, i32
  }
  func.func @transform_2(%arg0: i32) -> (i32, i32) {
    %c0_i32 = arith.constant 0 : i32
    %c0_i32_0 = arith.constant 0 : i32
    %c0_i32_1 = arith.constant 0 : i32
    return %c0_i32, %c0_i32_0 : i32, i32
  }
  func.func @transform_3(%arg0: i32) -> (i32, i32, i32) {
    %c0_i32 = arith.constant 0 : i32
    %c0_i32_0 = arith.constant 0 : i32
    %c0_i32_1 = arith.constant 0 : i32
    %c0_i32_2 = arith.constant 0 : i32
    return %c0_i32, %c0_i32_0, %c0_i32_1 : i32, i32, i32
  }
  func.func @transform_4(%arg0: i32) -> (i32, i32) {
    %c0_i32 = arith.constant 0 : i32
    %c0_i32_0 = arith.constant 0 : i32
    %c0_i32_1 = arith.constant 0 : i32
    return %c0_i32, %c0_i32_0 : i32, i32
  }
  func.func @transform_5(%arg0: i32) -> (i32, i32, i32) {
    %c0_i32 = arith.constant 0 : i32
    %c0_i32_0 = arith.constant 0 : i32
    %c0_i32_1 = arith.constant 0 : i32
    %c0_i32_2 = arith.constant 0 : i32
    return %c0_i32, %c0_i32_0, %c0_i32_1 : i32, i32, i32
  }
  func.func @transform_6(%arg0: i32) -> (i32, i32) {
    %c0_i32 = arith.constant 0 : i32
    %c0_i32_0 = arith.constant 0 : i32
    %c0_i32_1 = arith.constant 0 : i32
    return %c0_i32, %c0_i32_0 : i32, i32
  }
  func.func @transform_7(%arg0: i32) -> (i32, i32, i32) {
    %c0_i32 = arith.constant 0 : i32
    %c0_i32_0 = arith.constant 0 : i32
    %c0_i32_1 = arith.constant 0 : i32
    %c0_i32_2 = arith.constant 0 : i32
    return %c0_i32, %c0_i32_0, %c0_i32_1 : i32, i32, i32
  }
  func.func @transform_8(%arg0: i32) -> (i32, i32) {
    %c0_i32 = arith.constant 0 : i32
    %c0_i32_0 = arith.constant 0 : i32
    %c0_i32_1 = arith.constant 0 : i32
    return %c0_i32, %c0_i32_0 : i32, i32
  }
  func.func @transform_9(%arg0: i32) -> (i32, i32, i32) {
    %c0_i32 = arith.constant 0 : i32
    %c0_i32_0 = arith.constant 0 : i32
    %c0_i32_1 = arith.constant 0 : i32
    %c0_i32_2 = arith.constant 0 : i32
    return %c0_i32, %c0_i32_0, %c0_i32_1 : i32, i32, i32
  }
  func.func @transform_10(%arg0: i32) -> (i32, i32) {
    %c0_i32 = arith.constant 0 : i32
    %c0_i32_0 = arith.constant 0 : i32
    %c0_i32_1 = arith.constant 0 : i32
    return %c0_i32, %c0_i32_0 : i32, i32
  }
  func.func @transform_11(%arg0: i32) -> (i32, i32, i32) {
    %c0_i32 = arith.constant 0 : i32
    %c0_i32_0 = arith.constant 0 : i32
    %c0_i32_1 = arith.constant 0 : i32
    %c0_i32_2 = arith.constant 0 : i32
    return %c0_i32, %c0_i32_0, %c0_i32_1 : i32, i32, i32
  }
  func.func @transform_12(%arg0: i32) -> (i32, i32) {
    %c0_i32 = arith.constant 0 : i32
    %c0_i32_0 = arith.constant 0 : i32
    %c0_i32_1 = arith.constant 0 : i32
    return %c0_i32, %c0_i32_0 : i32, i32
  }
  func.func @transform_13(%arg0: i32) -> (i32, i32) {
    %c0_i32 = arith.constant 0 : i32
    %c0_i32_0 = arith.constant 0 : i32
    %c0_i32_1 = arith.constant 0 : i32
    return %c0_i32, %c0_i32_0 : i32, i32
  }
  func.func @transform_14(%arg0: i32) -> (i32, i32) {
    %c0_i32 = arith.constant 0 : i32
    %c0_i32_0 = arith.constant 0 : i32
    %c0_i32_1 = arith.constant 0 : i32
    return %c0_i32, %c0_i32_0 : i32, i32
  }
  func.func @transform_15(%arg0: i32) -> (i32, i32, i32) {
    %c0_i32 = arith.constant 0 : i32
    %c0_i32_0 = arith.constant 0 : i32
    %c0_i32_1 = arith.constant 0 : i32
    return %arg0, %c0_i32, %c0_i32_0 : i32, i32, i32
  }
}

</mosaic_0001>

<llo_original>
// kernel: forward.1
$region0: #{forward.1}
  #allocation0 [shape = 'u32[]', space=smem, size = 0x4, offset = 0x4, fixed_abs, tag = 'smem constant byte address 0x4 - core index']
  #allocation1 [shape = 'u32[144,128]{1,0:T(1,128)}', space=vmem, size = 0x12000, scoped, tag = 'internal scratch']
  #allocation2 [shape = 'f32[1,1]{1,0:T(1,128)S(1)}', space=vmem, size = 0x200, scoped, tag = 'scoped memory for forward.1']
  %s0 = inlined_call_operand.vmem [shape: f32[2,128,2], index: 0, kind: input, shape index: {}]
  %s1 = inlined_call_operand.vmem [shape: f32[2,64], index: 1, kind: input, shape index: {}]
  %s2 = inlined_call_operand.vmem [shape: f32[1,64], index: 2, kind: input, shape index: {}]
  %s3 = inlined_call_operand.vmem [shape: bf16[3,64,128], index: 3, kind: input, shape index: {}]
  %s4 = inlined_call_operand.vmem [shape: f32[1,128], index: 4, kind: input, shape index: {}]
  %s5 = inlined_call_operand.hbm [shape: bf16[3,128,128], index: 5, kind: input, shape index: {}]
  %s6 = inlined_call_operand.vmem [shape: f32[1,128], index: 6, kind: input, shape index: {}]
  %s7 = inlined_call_operand.vmem [shape: bf16[3,128,256], index: 7, kind: input, shape index: {}]
  %s8 = inlined_call_operand.vmem [shape: f32[1,256], index: 8, kind: input, shape index: {}]
  %s9 = inlined_call_operand.hbm [shape: bf16[3,256,128], index: 9, kind: input, shape index: {}]
  %s10 = inlined_call_operand.vmem [shape: f32[1,128], index: 10, kind: input, shape index: {}]
  %s11 = inlined_call_operand.vmem [shape: bf16[3,128,64], index: 11, kind: input, shape index: {}]
  %s12 = inlined_call_operand.vmem [shape: f32[1,64], index: 12, kind: input, shape index: {}]
  %s13 = inlined_call_operand.vmem [shape: f32[1,64], index: 13, kind: input, shape index: {}]
  %s14 = inlined_call_operand.<no memory space> [shape: f32[1,1], index: 14, kind: input, shape index: {}]
  %s15 = inlined_call_operand.vmem [shape: f32[2,8,1], index: 15, kind: output, shape index: {}]
  %s16 = sld [smem:[#allocation0]]
  $region101: #{forward.1} parent=0
    _
  %s18 = ssub.s32 1, %s16
  %s19 = scalar_select 0, %s18, %s16
  %v20 = vstv %s14
  %21 = vst [vmem:[#allocation2] sm:$0x1] %v20
  $region1: #{forward.1} parent=0
    #allocation3 [shape = 'u8[98304]{0}', space=vmem, size = 0x18000, scoped, tag = 'input window, operand 5, single buffered']
    #allocation4 [shape = 's32[2]{0}', space=sflag, size = 0x8, scoped, tag = 'scoped memory for forward.1']
    #allocation5 [shape = 'u8[196608]{0}', space=vmem, size = 0x30000, scoped, tag = 'input window, operand 9, single buffered']
    #allocation6 [shape = 's32[1]{0}', space=sflag, size = 0x4, scoped, tag = 'scoped memory for forward.1']
    %22 = vsyncpa [#allocation4], 0
    %23 = vsyncpa [#allocation6], 0
    loop: start=0, step=1, limit=4
    $region2: #{forward.1} parent=1 // loop_pre_header
      _
    $region3: #{forward.1} parent=1 // loop_header
      %s25 = sphi 0, %s29
      %p26 = scmp.ge.s32.totalorder %s25, 4
      %s35 = sphi 0, %s37
      %s38 = sphi 0, %s35
      %s39 = sphi 0, %s38
      %s55 = sphi 0, %s39
      %s59 = sphi 0, %s59
      %s61 = sphi 0, %s59
      %s62 = sphi 0, %s61
      %s76 = sphi 0, %s62
      %s80 = sphi 0, %s80
      %s82 = sphi 0, %s80
      %s83 = sphi 0, %s82
      %s97 = sphi 0, %s83
      %s101 = sphi 0, %s101
      %s103 = sphi 0, %s101
      %s104 = sphi 0, %s103
      %s118 = sphi 0, %s104
      %s122 = sphi 0, %s122
      %s124 = sphi 0, %s122
      %s125 = sphi 0, %s124
      %s139 = sphi 0, %s125
      %s143 = sphi 0, %s143
      %s145 = sphi 0, %s143
      %s146 = sphi 0, %s145
      %s160 = sphi 0, %s146
      %s164 = sphi 0, %s164
      %s166 = sphi 0, %s164
      %s167 = sphi 0, %s166
      %s181 = sphi 0, %s167
      %s185 = sphi 0, %s185
      %s187 = sphi 0, %s185
      %s188 = sphi 0, %s187
      %s202 = sphi 0, %s188
      %s206 = sphi 0, %s206
      %s208 = sphi 0, %s206
      %s209 = sphi 0, %s208
      %s223 = sphi 0, %s209
      %s227 = sphi 0, %s227
      %s229 = sphi 0, %s227
      %s230 = sphi 0, %s229
      %s244 = sphi 0, %s230
      %s248 = sphi 0, %s248
      %s250 = sphi 0, %s248
      %s251 = sphi 0, %s250
      %s265 = sphi 0, %s251
      %s269 = sphi 0, %s269
      %s271 = sphi 0, %s269
      %s272 = sphi 0, %s271
      %s286 = sphi 0, %s272
      %s290 = sphi 0, %s290
      %s292 = sphi 0, %s290
      %s293 = sphi 0, %s292
      %s307 = sphi 0, %s293
      %s311 = sphi 0, %s311
      %s313 = sphi 0, %s311
      %s314 = sphi 0, %s313
      %s328 = sphi 0, %s314
      %s332 = sphi 0, %s332
      %s334 = sphi 0, %s332
      %s335 = sphi 0, %s334
      %s349 = sphi 0, %s335
      %s355 = sphi 0, %s357
      %s358 = sphi 0, %s355
      %s359 = sphi 0, %s358
      %s375 = sphi 0, %s359
    $region4: #{forward.1} parent=1 // loop_header_branch
      %28 = sbr.rel (%p26) target = $region8
    $region5: #{forward.1} parent=1 // loop_body
      %s30 = ssub.s32 %s25, 1
      %s31 = ssub.s32 %s25, 2
      %s32 = sadd.s32 %s25, 1
      %s33 = ssub.s32 %s25, %s32
      %p34 = scmp.eq.s32.totalorder %s33, 0
      %s36 = sadd.s32 %s35, 1
      %s37 = scalar_select %p34, %s35, %s36
      %p40 = pneg %p34
      %p41 = scmp.eq.s32.totalorder %s25, 1
      %p42 = por %p40, %p41
      %p43 = scmp.ne.s32.totalorder %s35, %s38
      %p44 = scmp.eq.s32.totalorder %s25, 0
      %p45 = por %p43, %p44
      %p46 = scmp.ne.s32.totalorder %s35, %s38
      %p47 = scmp.eq.s32.totalorder %s30, 1
      %p48 = por %p46, %p47
      %p49 = scmp.ne.s32.totalorder %s38, %s39
      %p50 = scmp.eq.s32.totalorder %s30, 0
      %p51 = por %p49, %p50
      %p52 = scmp.ne.s32.totalorder %s38, %s39
      %p53 = scmp.eq.s32.totalorder %s31, 1
      %p54 = por %p52, %p53
      %p56 = scmp.ne.s32.totalorder %s39, %s55
      %p57 = scmp.eq.s32.totalorder %s31, 0
      %p58 = por %p56, %p57
      %s60 = sadd.s32 %s59, 1
      %p63 = scmp.eq.s32.totalorder %s25, 1
      %p64 = scmp.ne.s32.totalorder %s59, %s61
      %p65 = scmp.eq.s32.totalorder %s25, 0
      %p66 = por %p64, %p65
      %p67 = scmp.ne.s32.totalorder %s59, %s61
      %p68 = scmp.eq.s32.totalorder %s30, 1
      %p69 = por %p67, %p68
      %p70 = scmp.ne.s32.totalorder %s61, %s62
      %p71 = scmp.eq.s32.totalorder %s30, 0
      %p72 = por %p70, %p71
      %p73 = scmp.ne.s32.totalorder %s61, %s62
      %p74 = scmp.eq.s32.totalorder %s31, 1
      %p75 = por %p73, %p74
      %p77 = scmp.ne.s32.totalorder %s62, %s76
      %p78 = scmp.eq.s32.totalorder %s31, 0
      %p79 = por %p77, %p78
      %s81 = sadd.s32 %s80, 1
      %p84 = scmp.eq.s32.totalorder %s25, 1
      %p85 = scmp.ne.s32.totalorder %s80, %s82
      %p86 = scmp.eq.s32.totalorder %s25, 0
      %p87 = por %p85, %p86
      %p88 = scmp.ne.s32.totalorder %s80, %s82
      %p89 = scmp.eq.s32.totalorder %s30, 1
      %p90 = por %p88, %p89
      %p91 = scmp.ne.s32.totalorder %s82, %s83
      %p92 = scmp.eq.s32.totalorder %s30, 0
      %p93 = por %p91, %p92
      %p94 = scmp.ne.s32.totalorder %s82, %s83
      %p95 = scmp.eq.s32.totalorder %s31, 1
      %p96 = por %p94, %p95
      %p98 = scmp.ne.s32.totalorder %s83, %s97
      %p99 = scmp.eq.s32.totalorder %s31, 0
      %p100 = por %p98, %p99
      %s102 = sadd.s32 %s101, 1
      %p105 = scmp.eq.s32.totalorder %s25, 1
      %p106 = scmp.ne.s32.totalorder %s101, %s103
      %p107 = scmp.eq.s32.totalorder %s25, 0
      %p108 = por %p106, %p107
      %p109 = scmp.ne.s32.totalorder %s101, %s103
      %p110 = scmp.eq.s32.totalorder %s30, 1
      %p111 = por %p109, %p110
      %p112 = scmp.ne.s32.totalorder %s103, %s104
      %p113 = scmp.eq.s32.totalorder %s30, 0
      %p114 = por %p112, %p113
      %p115 = scmp.ne.s32.totalorder %s103, %s104
      %p116 = scmp.eq.s32.totalorder %s31, 1
      %p117 = por %p115, %p116
      %p119 = scmp.ne.s32.totalorder %s104, %s118
      %p120 = scmp.eq.s32.totalorder %s31, 0
      %p121 = por %p119, %p120
      %s123 = sadd.s32 %s122, 1
      %p126 = scmp.eq.s32.totalorder %s25, 1
      %p127 = scmp.ne.s32.totalorder %s122, %s124
      %p128 = scmp.eq.s32.totalorder %s25, 0
      %p129 = por %p127, %p128
      %p130 = scmp.ne.s32.totalorder %s122, %s124
      %p131 = scmp.eq.s32.totalorder %s30, 1
      %p132 = por %p130, %p131
      %p133 = scmp.ne.s32.totalorder %s124, %s125
      %p134 = scmp.eq.s32.totalorder %s30, 0
      %p135 = por %p133, %p134
      %p136 = scmp.ne.s32.totalorder %s124, %s125
      %p137 = scmp.eq.s32.totalorder %s31, 1
      %p138 = por %p136, %p137
      %p140 = scmp.ne.s32.totalorder %s125, %s139
      %p141 = scmp.eq.s32.totalorder %s31, 0
      %p142 = por %p140, %p141
      %s144 = sadd.s32 %s143, 1
      %p147 = scmp.eq.s32.totalorder %s25, 1
      %p148 = scmp.ne.s32.totalorder %s143, %s145
      %p149 = scmp.eq.s32.totalorder %s25, 0
      %p150 = por %p148, %p149
      %p151 = scmp.ne.s32.totalorder %s143, %s145
      %p152 = scmp.eq.s32.totalorder %s30, 1
      %p153 = por %p151, %p152
      %p154 = scmp.ne.s32.totalorder %s145, %s146
      %p155 = scmp.eq.s32.totalorder %s30, 0
      %p156 = por %p154, %p155
      %p157 = scmp.ne.s32.totalorder %s145, %s146
      %p158 = scmp.eq.s32.totalorder %s31, 1
      %p159 = por %p157, %p158
      %p161 = scmp.ne.s32.totalorder %s146, %s160
      %p162 = scmp.eq.s32.totalorder %s31, 0
      %p163 = por %p161, %p162
      %s165 = sadd.s32 %s164, 1
      %p168 = scmp.eq.s32.totalorder %s25, 1
      %p169 = scmp.ne.s32.totalorder %s164, %s166
      %p170 = scmp.eq.s32.totalorder %s25, 0
      %p171 = por %p169, %p170
      %p172 = scmp.ne.s32.totalorder %s164, %s166
      %p173 = scmp.eq.s32.totalorder %s30, 1
      %p174 = por %p172, %p173
      %p175 = scmp.ne.s32.totalorder %s166, %s167
      %p176 = scmp.eq.s32.totalorder %s30, 0
      %p177 = por %p175, %p176
      %p178 = scmp.ne.s32.totalorder %s166, %s167
      %p179 = scmp.eq.s32.totalorder %s31, 1
      %p180 = por %p178, %p179
      %p182 = scmp.ne.s32.totalorder %s167, %s181
      %p183 = scmp.eq.s32.totalorder %s31, 0
      %p184 = por %p182, %p183
      %s186 = sadd.s32 %s185, 1
      %p189 = scmp.eq.s32.totalorder %s25, 1
      %p190 = scmp.ne.s32.totalorder %s185, %s187
      %p191 = scmp.eq.s32.totalorder %s25, 0
      %p192 = por %p190, %p191
      %p193 = scmp.ne.s32.totalorder %s185, %s187
      %p194 = scmp.eq.s32.totalorder %s30, 1
      %p195 = por %p193, %p194
      %p196 = scmp.ne.s32.totalorder %s187, %s188
      %p197 = scmp.eq.s32.totalorder %s30, 0
      %p198 = por %p196, %p197
      %p199 = scmp.ne.s32.totalorder %s187, %s188
      %p200 = scmp.eq.s32.totalorder %s31, 1
      %p201 = por %p199, %p200
      %p203 = scmp.ne.s32.totalorder %s188, %s202
      %p204 = scmp.eq.s32.totalorder %s31, 0
      %p205 = por %p203, %p204
      %s207 = sadd.s32 %s206, 1
      %p210 = scmp.eq.s32.totalorder %s25, 1
      %p211 = scmp.ne.s32.totalorder %s206, %s208
      %p212 = scmp.eq.s32.totalorder %s25, 0
      %p213 = por %p211, %p212
      %p214 = scmp.ne.s32.totalorder %s206, %s208
      %p215 = scmp.eq.s32.totalorder %s30, 1
      %p216 = por %p214, %p215
      %p217 = scmp.ne.s32.totalorder %s208, %s209
      %p218 = scmp.eq.s32.totalorder %s30, 0
      %p219 = por %p217, %p218
      %p220 = scmp.ne.s32.totalorder %s208, %s209
      %p221 = scmp.eq.s32.totalorder %s31, 1
      %p222 = por %p220, %p221
      %p224 = scmp.ne.s32.totalorder %s209, %s223
      %p225 = scmp.eq.s32.totalorder %s31, 0
      %p226 = por %p224, %p225
      %s228 = sadd.s32 %s227, 1
      %p231 = scmp.eq.s32.totalorder %s25, 1
      %p232 = scmp.ne.s32.totalorder %s227, %s229
      %p233 = scmp.eq.s32.totalorder %s25, 0
      %p234 = por %p232, %p233
      %p235 = scmp.ne.s32.totalorder %s227, %s229
      %p236 = scmp.eq.s32.totalorder %s30, 1
      %p237 = por %p235, %p236
      %p238 = scmp.ne.s32.totalorder %s229, %s230
      %p239 = scmp.eq.s32.totalorder %s30, 0
      %p240 = por %p238, %p239
      %p241 = scmp.ne.s32.totalorder %s229, %s230
      %p242 = scmp.eq.s32.totalorder %s31, 1
      %p243 = por %p241, %p242
      %p245 = scmp.ne.s32.totalorder %s230, %s244
      %p246 = scmp.eq.s32.totalorder %s31, 0
      %p247 = por %p245, %p246
      %s249 = sadd.s32 %s248, 1
      %p252 = scmp.eq.s32.totalorder %s25, 1
      %p253 = scmp.ne.s32.totalorder %s248, %s250
      %p254 = scmp.eq.s32.totalorder %s25, 0
      %p255 = por %p253, %p254
      %p256 = scmp.ne.s32.totalorder %s248, %s250
      %p257 = scmp.eq.s32.totalorder %s30, 1
      %p258 = por %p256, %p257
      %p259 = scmp.ne.s32.totalorder %s250, %s251
      %p260 = scmp.eq.s32.totalorder %s30, 0
      %p261 = por %p259, %p260
      %p262 = scmp.ne.s32.totalorder %s250, %s251
      %p263 = scmp.eq.s32.totalorder %s31, 1
      %p264 = por %p262, %p263
      %p266 = scmp.ne.s32.totalorder %s251, %s265
      %p267 = scmp.eq.s32.totalorder %s31, 0
      %p268 = por %p266, %p267
      %s270 = sadd.s32 %s269, 1
      %p273 = scmp.eq.s32.totalorder %s25, 1
      %p274 = scmp.ne.s32.totalorder %s269, %s271
      %p275 = scmp.eq.s32.totalorder %s25, 0
      %p276 = por %p274, %p275
      %p277 = scmp.ne.s32.totalorder %s269, %s271
      %p278 = scmp.eq.s32.totalorder %s30, 1
      %p279 = por %p277, %p278
      %p280 = scmp.ne.s32.totalorder %s271, %s272
      %p281 = scmp.eq.s32.totalorder %s30, 0
      %p282 = por %p280, %p281
      %p283 = scmp.ne.s32.totalorder %s271, %s272
      %p284 = scmp.eq.s32.totalorder %s31, 1
      %p285 = por %p283, %p284
      %p287 = scmp.ne.s32.totalorder %s272, %s286
      %p288 = scmp.eq.s32.totalorder %s31, 0
      %p289 = por %p287, %p288
      %s291 = sadd.s32 %s290, 1
      %p294 = scmp.eq.s32.totalorder %s25, 1
      %p295 = scmp.ne.s32.totalorder %s290, %s292
      %p296 = scmp.eq.s32.totalorder %s25, 0
      %p297 = por %p295, %p296
      %p298 = scmp.ne.s32.totalorder %s290, %s292
      %p299 = scmp.eq.s32.totalorder %s30, 1
      %p300 = por %p298, %p299
      %p301 = scmp.ne.s32.totalorder %s292, %s293
      %p302 = scmp.eq.s32.totalorder %s30, 0
      %p303 = por %p301, %p302
      %p304 = scmp.ne.s32.totalorder %s292, %s293
      %p305 = scmp.eq.s32.totalorder %s31, 1
      %p306 = por %p304, %p305
      %p308 = scmp.ne.s32.totalorder %s293, %s307
      %p309 = scmp.eq.s32.totalorder %s31, 0
      %p310 = por %p308, %p309
      %s312 = sadd.s32 %s311, 1
      %p315 = scmp.eq.s32.totalorder %s25, 1
      %p316 = scmp.ne.s32.totalorder %s311, %s313
      %p317 = scmp.eq.s32.totalorder %s25, 0
      %p318 = por %p316, %p317
      %p319 = scmp.ne.s32.totalorder %s311, %s313
      %p320 = scmp.eq.s32.totalorder %s30, 1
      %p321 = por %p319, %p320
      %p322 = scmp.ne.s32.totalorder %s313, %s314
      %p323 = scmp.eq.s32.totalorder %s30, 0
      %p324 = por %p322, %p323
      %p325 = scmp.ne.s32.totalorder %s313, %s314
      %p326 = scmp.eq.s32.totalorder %s31, 1
      %p327 = por %p325, %p326
      %p329 = scmp.ne.s32.totalorder %s314, %s328
      %p330 = scmp.eq.s32.totalorder %s31, 0
      %p331 = por %p329, %p330
      %s333 = sadd.s32 %s332, 1
      %p336 = scmp.eq.s32.totalorder %s25, 1
      %p337 = scmp.ne.s32.totalorder %s332, %s334
      %p338 = scmp.eq.s32.totalorder %s25, 0
      %p339 = por %p337, %p338
      %p340 = scmp.ne.s32.totalorder %s332, %s334
      %p341 = scmp.eq.s32.totalorder %s30, 1
      %p342 = por %p340, %p341
      %p343 = scmp.ne.s32.totalorder %s334, %s335
      %p344 = scmp.eq.s32.totalorder %s30, 0
      %p345 = por %p343, %p344
      %p346 = scmp.ne.s32.totalorder %s334, %s335
      %p347 = scmp.eq.s32.totalorder %s31, 1
      %p348 = por %p346, %p347
      %p350 = scmp.ne.s32.totalorder %s335, %s349
      %p351 = scmp.eq.s32.totalorder %s31, 0
      %p352 = por %p350, %p351
      %s353 = ssub.s32 %s25, %s32
      %p354 = scmp.eq.s32.totalorder %s353, 0
      %s356 = sadd.s32 %s355, 1
      %s357 = scalar_select %p354, %s355, %s356
      %p360 = pneg %p354
      %p361 = scmp.eq.s32.totalorder %s25, 1
      %p362 = por %p360, %p361
      %p363 = scmp.ne.s32.totalorder %s355, %s358
      %p364 = scmp.eq.s32.totalorder %s25, 0
      %p365 = por %p363, %p364
      %p366 = scmp.ne.s32.totalorder %s355, %s358
      %p367 = scmp.eq.s32.totalorder %s30, 1
      %p368 = por %p366, %p367
      %p369 = scmp.ne.s32.totalorder %s358, %s359
      %p370 = scmp.eq.s32.totalorder %s30, 0
      %p371 = por %p369, %p370
      %p372 = scmp.ne.s32.totalorder %s358, %s359
      %p373 = scmp.eq.s32.totalorder %s31, 1
      %p374 = por %p372, %p373
      %p376 = scmp.ne.s32.totalorder %s359, %s375
      %p377 = scmp.eq.s32.totalorder %s31, 0
      %p378 = por %p376, %p377
      %p379 = scmp.le.s32.totalorder 1, %s25
      %p380 = scmp.lt.s32.totalorder %s25, 3
      %p381 = pnand %p379, %p380
      %p382 = pneg %p381
      // Predicated region
      $region9: #{forward.1} parent=5 // pred_check
        _
      $region10: #{forward.1} parent=5 // pred_check_branch
        %384 = sbr.rel (%p381) target = $region12
      $region11: #{forward.1} parent=5 // pred_region
        %s385 = ssub.s32 %s25, 1
        // Predicated region
        $region13: #{forward.1} parent=11 // pred_check
          %p386 = pneg %p72
        $region14: #{forward.1} parent=11 // pred_check_branch
          %388 = sbr.rel (%p386) target = $region16
        $region15: #{forward.1} parent=11 // pred_region
          _
        $region16: #{forward.1} parent=11 // pred_fallthru
          _
        // Predicated region
        $region17: #{forward.1} parent=11 // pred_check
          %p389 = pneg %p93
        $region18: #{forward.1} parent=11 // pred_check_branch
          %391 = sbr.rel (%p389) target = $region20
        $region19: #{forward.1} parent=11 // pred_region
          _
        $region20: #{forward.1} parent=11 // pred_fallthru
          _
        // Predicated region
        $region21: #{forward.1} parent=11 // pred_check
          %p392 = pneg %p114
        $region22: #{forward.1} parent=11 // pred_check_branch
          %394 = sbr.rel (%p392) target = $region24
        $region23: #{forward.1} parent=11 // pred_region
          _
        $region24: #{forward.1} parent=11 // pred_fallthru
          _
        // Predicated region
        $region25: #{forward.1} parent=11 // pred_check
          %p395 = pneg %p135
        $region26: #{forward.1} parent=11 // pred_check_branch
          %397 = sbr.rel (%p395) target = $region28
        $region27: #{forward.1} parent=11 // pred_region
          _
        $region28: #{forward.1} parent=11 // pred_fallthru
          _
        // Predicated region
        $region29: #{forward.1} parent=11 // pred_check
          %p398 = pneg %p156
        $region30: #{forward.1} parent=11 // pred_check_branch
          %400 = sbr.rel (%p398) target = $region32
        $region31: #{forward.1} parent=11 // pred_region
          %s402 = ssub.s32 3072, 3072
          %403 = vsyncadd [#allocation4], %s402
          %s404 = sshll.u32 [#allocation3], 4
          %s405 = int_to_ptr.vmem [resolvable:$true] %s404
          %410 = dma.hbm_to_vmem [thread:$0]  %s5, 3072, %s405, [#allocation4], 64, 64, 4
        $region32: #{forward.1} parent=11 // pred_fallthru
          _
        // Predicated region
        $region33: #{forward.1} parent=11 // pred_check
          %p411 = pneg %p177
        $region34: #{forward.1} parent=11 // pred_check_branch
          %413 = sbr.rel (%p411) target = $region36
        $region35: #{forward.1} parent=11 // pred_region
          _
        $region36: #{forward.1} parent=11 // pred_fallthru
          _
        // Predicated region
        $region37: #{forward.1} parent=11 // pred_check
          %p414 = pneg %p198
        $region38: #{forward.1} parent=11 // pred_check_branch
          %416 = sbr.rel (%p414) target = $region40
        $region39: #{forward.1} parent=11 // pred_region
          _
        $region40: #{forward.1} parent=11 // pred_fallthru
          _
        // Predicated region
        $region41: #{forward.1} parent=11 // pred_check
          %p417 = pneg %p219
        $region42: #{forward.1} parent=11 // pred_check_branch
          %419 = sbr.rel (%p417) target = $region44
        $region43: #{forward.1} parent=11 // pred_region
          _
        $region44: #{forward.1} parent=11 // pred_fallthru
          _
        // Predicated region
        $region45: #{forward.1} parent=11 // pred_check
          %p420 = pneg %p240
        $region46: #{forward.1} parent=11 // pred_check_branch
          %422 = sbr.rel (%p420) target = $region48
        $region47: #{forward.1} parent=11 // pred_region
          %s424 = ssub.s32 6144, 6144
          %425 = vsyncadd [#allocation6], %s424
          %s426 = sshll.u32 [#allocation5], 4
          %s427 = int_to_ptr.vmem [resolvable:$true] %s426
          %432 = dma.hbm_to_vmem [thread:$0]  %s9, 6144, %s427, [#allocation6], 64, 64, 4
        $region48: #{forward.1} parent=11 // pred_fallthru
          _
        // Predicated region
        $region49: #{forward.1} parent=11 // pred_check
          %p433 = pneg %p261
        $region50: #{forward.1} parent=11 // pred_check_branch
          %435 = sbr.rel (%p433) target = $region52
        $region51: #{forward.1} parent=11 // pred_region
          _
        $region52: #{forward.1} parent=11 // pred_fallthru
          _
        // Predicated region
        $region53: #{forward.1} parent=11 // pred_check
          %p436 = pneg %p282
        $region54: #{forward.1} parent=11 // pred_check_branch
          %438 = sbr.rel (%p436) target = $region56
        $region55: #{forward.1} parent=11 // pred_region
          _
        $region56: #{forward.1} parent=11 // pred_fallthru
          _
        // Predicated region
        $region57: #{forward.1} parent=11 // pred_check
          %p439 = pneg %p303
        $region58: #{forward.1} parent=11 // pred_check_branch
          %441 = sbr.rel (%p439) target = $region60
        $region59: #{forward.1} parent=11 // pred_region
          _
        $region60: #{forward.1} parent=11 // pred_fallthru
          _
        // Predicated region
        $region61: #{forward.1} parent=11 // pred_check
          %p442 = pneg %p324
        $region62: #{forward.1} parent=11 // pred_check_branch
          %444 = sbr.rel (%p442) target = $region64
        $region63: #{forward.1} parent=11 // pred_region
          _
        $region64: #{forward.1} parent=11 // pred_fallthru
          _
        // Predicated region
        $region65: #{forward.1} parent=11 // pred_check
          %p445 = pneg %p345
        $region66: #{forward.1} parent=11 // pred_check_branch
          %447 = sbr.rel (%p445) target = $region68
        $region67: #{forward.1} parent=11 // pred_region
          _
        $region68: #{forward.1} parent=11 // pred_fallthru
          _
      $region12: #{forward.1} parent=5 // pred_fallthru
        _
      %p448 = scmp.lt.s32.totalorder %s25, 2
      // Predicated region
      $region69: #{forward.1} parent=5 // pred_check
        %p449 = pneg %p448
      $region70: #{forward.1} parent=5 // pred_check_branch
        %451 = sbr.rel (%p449) target = $region72
      $region71: #{forward.1} parent=5 // pred_region
        // Predicated region
        $region73: #{forward.1} parent=71 // pred_check
          %p452 = pneg %p45
        $region74: #{forward.1} parent=71 // pred_check_branch
          %454 = sbr.rel (%p452) target = $region76
        $region75: #{forward.1} parent=71 // pred_region
          %p455 = scmp.lt.s32.totalorder %s25, 1
          %s456 = scalar_select %p455, %s25, 1
          %s457 = smul.addr %s456, 16
          %s458 = smul.addr %s457, 8
          %s459 = scalar_lea.vmem %s0, %s458
        $region76: #{forward.1} parent=71 // pred_fallthru
          _
      $region72: #{forward.1} parent=5 // pred_fallthru
        _
      %p460 = scmp.le.s32.totalorder 1, %s25
      %p461 = scmp.lt.s32.totalorder %s25, 3
      %p462 = pnand %p460, %p461
      %p463 = pneg %p462
      // Predicated region
      $region77: #{forward.1} parent=5 // pred_check
        _
      $region78: #{forward.1} parent=5 // pred_check_branch
        %465 = sbr.rel (%p462) target = $region80
      $region79: #{forward.1} parent=5 // pred_region
        %s466 = ssub.s32 %s25, 1
        // Predicated region
        $region81: #{forward.1} parent=79 // pred_check
          %p467 = pneg %p156
        $region82: #{forward.1} parent=79 // pred_check_branch
          %469 = sbr.rel (%p467) target = $region84
        $region83: #{forward.1} parent=79 // pred_region
          %470 = dma.done [#allocation4], 3072
        $region84: #{forward.1} parent=79 // pred_fallthru
          _
        // Predicated region
        $region85: #{forward.1} parent=79 // pred_check
          %p471 = pneg %p240
        $region86: #{forward.1} parent=79 // pred_check_branch
          %473 = sbr.rel (%p471) target = $region88
        $region87: #{forward.1} parent=79 // pred_region
          %474 = dma.done [#allocation6], 6144
        $region88: #{forward.1} parent=79 // pred_fallthru
          _
        %p475 = scmp.lt.s32.totalorder %s30, 1
        %s476 = scalar_select %p475, %s30, 1
        %s477 = smul.addr %s476, 16
        %s478 = smul.addr %s477, 8
        %s479 = scalar_lea.vmem %s0, %s478
        %p480 = pneg %p51
        %p481 = pneg %p48
        %p482 = pneg %p72
        %p483 = pneg %p69
        %p484 = pneg %p93
        %p485 = pneg %p90
        %p486 = pneg %p114
        %p487 = pneg %p111
        %p488 = pneg %p135
        %p489 = pneg %p132
        %p490 = pneg %p156
        %p491 = pneg %p153
        %p492 = pneg %p177
        %p493 = pneg %p174
        %p494 = pneg %p198
        %p495 = pneg %p195
        %p496 = pneg %p219
        %p497 = pneg %p216
        %p498 = pneg %p240
        %p499 = pneg %p237
        %p500 = pneg %p261
        %p501 = pneg %p258
        %p502 = pneg %p282
        %p503 = pneg %p279
        %p504 = pneg %p303
        %p505 = pneg %p300
        %p506 = pneg %p324
        %p507 = pneg %p321
        %p508 = pneg %p345
        %p509 = pneg %p342
        %p510 = pneg %p371
        %p511 = pneg %p368
        %p512 = scmp.lt.s32.totalorder %s30, 1
        %s513 = scalar_select %p512, %s30, 1
        %s514 = smul.addr %s513, 8
        %s515 = scalar_lea.vmem %s15, %s514
        %p516 = scmp.lt.s32.totalorder %s30, 1
        %s517 = scalar_select %p516, %s30, 1
        %s518 = smul.addr %s517, 16
        %s519 = smul.addr %s518, 8
        %s520 = scalar_lea.vmem %s0, %s519
        %p521 = scmp.lt.s32.totalorder %s30, 1
        %s522 = scalar_select %p521, %s30, 1
        %s523 = smul.addr %s522, 8
        %s524 = scalar_lea.vmem %s15, %s523
        %v526 = vld [vmem:[%s520] sm:$0xff]
        %v527 = vld [vmem:[%s520 + $0x8] sm:$0xff]
        %v528 = vld [vmem:[%s520 + $0x10] sm:$0xff]
        %v529 = vld [vmem:[%s520 + $0x18] sm:$0xff]
        %v530 = vld [vmem:[%s520 + $0x20] sm:$0xff]
        %v531 = vld [vmem:[%s520 + $0x28] sm:$0xff]
        %v532 = vld [vmem:[%s520 + $0x30] sm:$0xff]
        %v533 = vld [vmem:[%s520 + $0x38] sm:$0xff]
        %v534 = vld [vmem:[%s520 + $0x40] sm:$0xff]
        %v535 = vld [vmem:[%s520 + $0x48] sm:$0xff]
        %v536 = vld [vmem:[%s520 + $0x50] sm:$0xff]
        %v537 = vld [vmem:[%s520 + $0x58] sm:$0xff]
        %v538 = vld [vmem:[%s520 + $0x60] sm:$0xff]
        %v539 = vld [vmem:[%s520 + $0x68] sm:$0xff]
        %v540 = vld [vmem:[%s520 + $0x70] sm:$0xff]
        %v541 = vld [vmem:[%s520 + $0x78] sm:$0xff]
        %v542 = vld [vmem:[%s1] sm:$0x1]
        %544 = vset.pattern.permute.xlu0 0
        %545 = vperm.xlu0 %544, %v526
        %v546 = vpop.permute.xlu0 %545
        %549 = vset.pattern.permute.xlu0 0
        %550 = vperm.xlu0 %549, %v527
        %v551 = vpop.permute.xlu0 %550
        %554 = vset.pattern.permute.xlu0 0
        %555 = vperm.xlu0 %554, %v528
        %v556 = vpop.permute.xlu0 %555
        %559 = vset.pattern.permute.xlu0 0
        %560 = vperm.xlu0 %559, %v529
        %v561 = vpop.permute.xlu0 %560
        %564 = vset.pattern.permute.xlu0 0
        %565 = vperm.xlu0 %564, %v530
        %v566 = vpop.permute.xlu0 %565
        %569 = vset.pattern.permute.xlu0 0
        %570 = vperm.xlu0 %569, %v531
        %v571 = vpop.permute.xlu0 %570
        %574 = vset.pattern.permute.xlu0 0
        %575 = vperm.xlu0 %574, %v532
        %v576 = vpop.permute.xlu0 %575
        %579 = vset.pattern.permute.xlu0 0
        %580 = vperm.xlu0 %579, %v533
        %v581 = vpop.permute.xlu0 %580
        %584 = vset.pattern.permute.xlu0 0
        %585 = vperm.xlu0 %584, %v534
        %v586 = vpop.permute.xlu0 %585
        %589 = vset.pattern.permute.xlu0 0
        %590 = vperm.xlu0 %589, %v535
        %v591 = vpop.permute.xlu0 %590
        %594 = vset.pattern.permute.xlu0 0
        %595 = vperm.xlu0 %594, %v536
        %v596 = vpop.permute.xlu0 %595
        %599 = vset.pattern.permute.xlu0 0
        %600 = vperm.xlu0 %599, %v537
        %v601 = vpop.permute.xlu0 %600
        %604 = vset.pattern.permute.xlu0 0
        %605 = vperm.xlu0 %604, %v538
        %v606 = vpop.permute.xlu0 %605
        %609 = vset.pattern.permute.xlu0 0
        %610 = vperm.xlu0 %609, %v539
        %v611 = vpop.permute.xlu0 %610
        %614 = vset.pattern.permute.xlu0 0
        %615 = vperm.xlu0 %614, %v540
        %v616 = vpop.permute.xlu0 %615
        %619 = vset.pattern.permute.xlu0 0
        %620 = vperm.xlu0 %619, %v541
        %v621 = vpop.permute.xlu0 %620
        %v623 = vlaneseq
        %v624 = vshrl.u32 %v623, 7
        %v625 = vsub.s32 0, %v624
        %v626 = vrot.slane %v542, %v625
        %v627 = vmul.f32 %v546, %v626
        %v628 = vmul.f32 %v551, %v626
        %v629 = vmul.f32 %v556, %v626
        %v630 = vmul.f32 %v561, %v626
        %v631 = vmul.f32 %v566, %v626
        %v632 = vmul.f32 %v571, %v626
        %v633 = vmul.f32 %v576, %v626
        %v634 = vmul.f32 %v581, %v626
        %v635 = vmul.f32 %v586, %v626
        %v636 = vmul.f32 %v591, %v626
        %v637 = vmul.f32 %v596, %v626
        %v638 = vmul.f32 %v601, %v626
        %v639 = vmul.f32 %v606, %v626
        %v640 = vmul.f32 %v611, %v626
        %v641 = vmul.f32 %v616, %v626
        %v642 = vmul.f32 %v621, %v626
        %v643 = vld [vmem:[%s1 + $0x1] sm:$0x1]
        %644 = vset.pattern.permute.xlu0 1
        %645 = vperm.xlu0 %644, %v526
        %v646 = vpop.permute.xlu0 %645
        %648 = vset.pattern.permute.xlu0 1
        %649 = vperm.xlu0 %648, %v527
        %v650 = vpop.permute.xlu0 %649
        %652 = vset.pattern.permute.xlu0 1
        %653 = vperm.xlu0 %652, %v528
        %v654 = vpop.permute.xlu0 %653
        %656 = vset.pattern.permute.xlu0 1
        %657 = vperm.xlu0 %656, %v529
        %v658 = vpop.permute.xlu0 %657
        %660 = vset.pattern.permute.xlu0 1
        %661 = vperm.xlu0 %660, %v530
        %v662 = vpop.permute.xlu0 %661
        %664 = vset.pattern.permute.xlu0 1
        %665 = vperm.xlu0 %664, %v531
        %v666 = vpop.permute.xlu0 %665
        %668 = vset.pattern.permute.xlu0 1
        %669 = vperm.xlu0 %668, %v532
        %v670 = vpop.permute.xlu0 %669
        %672 = vset.pattern.permute.xlu0 1
        %673 = vperm.xlu0 %672, %v533
        %v674 = vpop.permute.xlu0 %673
        %676 = vset.pattern.permute.xlu0 1
        %677 = vperm.xlu0 %676, %v534
        %v678 = vpop.permute.xlu0 %677
        %680 = vset.pattern.permute.xlu0 1
        %681 = vperm.xlu0 %680, %v535
        %v682 = vpop.permute.xlu0 %681
        %684 = vset.pattern.permute.xlu0 1
        %685 = vperm.xlu0 %684, %v536
        %v686 = vpop.permute.xlu0 %685
        %688 = vset.pattern.permute.xlu0 1
        %689 = vperm.xlu0 %688, %v537
        %v690 = vpop.permute.xlu0 %689
        %692 = vset.pattern.permute.xlu0 1
        %693 = vperm.xlu0 %692, %v538
        %v694 = vpop.permute.xlu0 %693
        %696 = vset.pattern.permute.xlu0 1
        %697 = vperm.xlu0 %696, %v539
        %v698 = vpop.permute.xlu0 %697
        %700 = vset.pattern.permute.xlu0 1
        %701 = vperm.xlu0 %700, %v540
        %v702 = vpop.permute.xlu0 %701
        %704 = vset.pattern.permute.xlu0 1
        %705 = vperm.xlu0 %704, %v541
        %v706 = vpop.permute.xlu0 %705
        %v708 = vlaneseq
        %v709 = vshrl.u32 %v708, 7
        %v710 = vsub.s32 0, %v709
        %v711 = vrot.slane %v643, %v710
        %v712 = vmul.f32 %v646, %v711
        %v713 = vmul.f32 %v650, %v711
        %v714 = vmul.f32 %v654, %v711
        %v715 = vmul.f32 %v658, %v711
        %v716 = vmul.f32 %v662, %v711
        %v717 = vmul.f32 %v666, %v711
        %v718 = vmul.f32 %v670, %v711
        %v719 = vmul.f32 %v674, %v711
        %v720 = vmul.f32 %v678, %v711
        %v721 = vmul.f32 %v682, %v711
        %v722 = vmul.f32 %v686, %v711
        %v723 = vmul.f32 %v690, %v711
        %v724 = vmul.f32 %v694, %v711
        %v725 = vmul.f32 %v698, %v711
        %v726 = vmul.f32 %v702, %v711
        %v727 = vmul.f32 %v706, %v711
        %v728 = vadd.f32 %v627, %v712
        %v729 = vadd.f32 %v628, %v713
        %v730 = vadd.f32 %v629, %v714
        %v731 = vadd.f32 %v630, %v715
        %v732 = vadd.f32 %v631, %v716
        %v733 = vadd.f32 %v632, %v717
        %v734 = vadd.f32 %v633, %v718
        %v735 = vadd.f32 %v634, %v719
        %v736 = vadd.f32 %v635, %v720
        %v737 = vadd.f32 %v636, %v721
        %v738 = vadd.f32 %v637, %v722
        %v739 = vadd.f32 %v638, %v723
        %v740 = vadd.f32 %v639, %v724
        %v741 = vadd.f32 %v640, %v725
        %v742 = vadd.f32 %v641, %v726
        %v743 = vadd.f32 %v642, %v727
        %v744 = vld [vmem:[%s2] sm:$0x1]
        %v746 = vlaneseq
        %v747 = vshrl.u32 %v746, 7
        %v748 = vsub.s32 0, %v747
        %v749 = vrot.slane %v744, %v748
        %v751 = vadd.f32 %v728, %v749
        %v752 = vadd.f32 %v729, %v749
        %v753 = vadd.f32 %v730, %v749
        %v754 = vadd.f32 %v731, %v749
        %v755 = vadd.f32 %v732, %v749
        %v756 = vadd.f32 %v733, %v749
        %v757 = vadd.f32 %v734, %v749
        %v758 = vadd.f32 %v735, %v749
        %v759 = vadd.f32 %v736, %v749
        %v760 = vadd.f32 %v737, %v749
        %v761 = vadd.f32 %v738, %v749
        %v762 = vadd.f32 %v739, %v749
        %v763 = vadd.f32 %v740, %v749
        %v764 = vadd.f32 %v741, %v749
        %v765 = vadd.f32 %v742, %v749
        %v766 = vadd.f32 %v743, %v749
        %v767 = vpack.c.bf16 %v752, %v751
        %v768 = vpack.c.bf16 %v754, %v753
        %v769 = vpack.c.bf16 %v756, %v755
        %v770 = vpack.c.bf16 %v758, %v757
        %v771 = vpack.c.bf16 %v760, %v759
        %v772 = vpack.c.bf16 %v762, %v761
        %v773 = vpack.c.bf16 %v764, %v763
        %v774 = vpack.c.bf16 %v766, %v765
        %v775 = vld [vmem:[%s3] sm:$0xf]
        %v776 = vld [vmem:[%s3 + $0x4] sm:$0xf]
        %v777 = vld [vmem:[%s3 + $0x8] sm:$0xf]
        %v778 = vld [vmem:[%s3 + $0xc] sm:$0xf]
        %v779 = vld [vmem:[%s3 + $0x10] sm:$0xf]
        %v780 = vld [vmem:[%s3 + $0x14] sm:$0xf]
        %v781 = vld [vmem:[%s3 + $0x18] sm:$0xf]
        %v782 = vld [vmem:[%s3 + $0x1c] sm:$0xf]
        %v791 = vunpack.c.l.b16 %v775
        %v792 = vunpack.c.l.b16 %v776
        %v793 = vunpack.c.l.b16 %v777
        %v794 = vunpack.c.l.b16 %v778
        %v795 = vunpack.c.l.b16 %v779
        %v796 = vunpack.c.l.b16 %v780
        %v797 = vunpack.c.l.b16 %v781
        %v798 = vunpack.c.l.b16 %v782
        %v799 = vpack.c.b16 %v792, %v791
        %v800 = vpack.c.b16 %v794, %v793
        %v801 = vpack.c.b16 %v796, %v795
        %v802 = vpack.c.b16 %v798, %v797
        %vm807 = vcmask 523264
        %v809 = vsel %vm807, %v767, 0
        %v812 = vsel %vm807, %v768, 0
        %v815 = vsel %vm807, %v769, 0
        %v818 = vsel %vm807, %v770, 0
        %v821 = vsel %vm807, %v771, 0
        %v824 = vsel %vm807, %v772, 0
        %v827 = vsel %vm807, %v773, 0
        %v830 = vsel %vm807, %v774, 0
        %832 = vmatprep.subr.bf16.mxu0 0
        %833 = vmatpush1.bf16.msra.mxu0 0
        %834 = vmatprep.subr.bf16.mxu0 0
        %835 = vmatpush1.bf16.msra.mxu0 0
        %836 = vmatprep.subr.bf16.mxu0 0
        %837 = vmatpush1.bf16.msra.mxu0 0
        %838 = vmatprep.subr.bf16.mxu0 0
        %839 = vmatpush1.bf16.msra.mxu0 0
        %840 = vmatprep.subr.bf16.mxu0 0
        %841 = vmatpush1.bf16.msra.mxu0 %v802
        %842 = vmatprep.subr.bf16.mxu0 0
        %843 = vmatpush1.bf16.msra.mxu0 %v801
        %844 = vmatprep.subr.bf16.mxu0 0
        %845 = vmatpush1.bf16.msra.mxu0 %v800
        %846 = vmatprep.subr.bf16.mxu0 0
        %847 = vmatpush1.bf16.msra.mxu0 %v799
        %848 = vmatprep.subr.bf16.mxu0 0
        %849 = vmatpush2.bf16.msra.mxu0 0
        %850 = vmatprep.subr.bf16.mxu0 0
        %851 = vmatpush2.bf16.msra.mxu0 0
        %852 = vmatprep.subr.bf16.mxu0 0
        %853 = vmatpush2.bf16.msra.mxu0 0
        %854 = vmatprep.subr.bf16.mxu0 0
        %855 = vmatpush2.bf16.msra.mxu0 0
        %856 = vmatprep.subr.bf16.mxu0 0
        %857 = vmatpush2.bf16.msra.mxu0 0
        %858 = vmatprep.subr.bf16.mxu0 0
        %859 = vmatpush2.bf16.msra.mxu0 0
        %860 = vmatprep.subr.bf16.mxu0 0
        %861 = vmatpush2.bf16.msra.mxu0 0
        %862 = vmatprep.subr.bf16.mxu0 0
        %863 = vmatpush2.bf16.msra.mxu0 0
        %864 = vmatprep.mubr.bf16.mxu0 0
        %865 = vmatmul.mubr.bf16.gmra.mxu0 %v809
        %v866 = vpop.f32.mrf.mxu0
        %v867 = vadd.f32 0.0, %v866
        %v868 = vpop.f32.mrf.mxu0
        %v869 = vpop.f32.mrf.mxu0
        %v870 = vadd.f32 0.0, %v869
        %v871 = vpop.f32.mrf.mxu0
        %872 = vmatprep.mubr.bf16.mxu0 0
        %873 = vmatmul.mubr.bf16.gmra.mxu0 %v812
        %v874 = vpop.f32.mrf.mxu0
        %v875 = vadd.f32 0.0, %v874
        %v876 = vpop.f32.mrf.mxu0
        %v877 = vpop.f32.mrf.mxu0
        %v878 = vadd.f32 0.0, %v877
        %v879 = vpop.f32.mrf.mxu0
        %880 = vmatprep.mubr.bf16.mxu0 0
        %881 = vmatmul.mubr.bf16.gmra.mxu0 %v815
        %v882 = vpop.f32.mrf.mxu0
        %v883 = vadd.f32 0.0, %v882
        %v884 = vpop.f32.mrf.mxu0
        %v885 = vpop.f32.mrf.mxu0
        %v886 = vadd.f32 0.0, %v885
        %v887 = vpop.f32.mrf.mxu0
        %888 = vmatprep.mubr.bf16.mxu0 0
        %889 = vmatmul.mubr.bf16.gmra.mxu0 %v818
        %v890 = vpop.f32.mrf.mxu0
        %v891 = vadd.f32 0.0, %v890
        %v892 = vpop.f32.mrf.mxu0
        %v893 = vpop.f32.mrf.mxu0
        %v894 = vadd.f32 0.0, %v893
        %v895 = vpop.f32.mrf.mxu0
        %896 = vmatprep.mubr.bf16.mxu0 0
        %897 = vmatmul.mubr.bf16.gmra.mxu0 %v821
        %v898 = vpop.f32.mrf.mxu0
        %v899 = vadd.f32 0.0, %v898
        %v900 = vpop.f32.mrf.mxu0
        %v901 = vpop.f32.mrf.mxu0
        %v902 = vadd.f32 0.0, %v901
        %v903 = vpop.f32.mrf.mxu0
        %904 = vmatprep.mubr.bf16.mxu0 0
        %905 = vmatmul.mubr.bf16.gmra.mxu0 %v824
        %v906 = vpop.f32.mrf.mxu0
        %v907 = vadd.f32 0.0, %v906
        %v908 = vpop.f32.mrf.mxu0
        %v909 = vpop.f32.mrf.mxu0
        %v910 = vadd.f32 0.0, %v909
        %v911 = vpop.f32.mrf.mxu0
        %912 = vmatprep.mubr.bf16.mxu0 0
        %913 = vmatmul.mubr.bf16.gmra.mxu0 %v827
        %v914 = vpop.f32.mrf.mxu0
        %v915 = vadd.f32 0.0, %v914
        %v916 = vpop.f32.mrf.mxu0
        %v917 = vpop.f32.mrf.mxu0
        %v918 = vadd.f32 0.0, %v917
        %v919 = vpop.f32.mrf.mxu0
        %920 = vmatprep.mubr.bf16.mxu0 0
        %921 = vmatmul.mubr.bf16.gmra.mxu0 %v830
        %v922 = vpop.f32.mrf.mxu0
        %v923 = vadd.f32 0.0, %v922
        %v924 = vpop.f32.mrf.mxu0
        %v925 = vpop.f32.mrf.mxu0
        %v926 = vadd.f32 0.0, %v925
        %v927 = vpop.f32.mrf.mxu0
        %928 = vdwg.mxu0
        %s929 = scalar_lea.vmem %s3, 32
        %v930 = vld [vmem:[%s929] sm:$0xf]
        %v931 = vld [vmem:[%s929 + $0x4] sm:$0xf]
        %v932 = vld [vmem:[%s929 + $0x8] sm:$0xf]
        %v933 = vld [vmem:[%s929 + $0xc] sm:$0xf]
        %v934 = vld [vmem:[%s929 + $0x10] sm:$0xf]
        %v935 = vld [vmem:[%s929 + $0x14] sm:$0xf]
        %v936 = vld [vmem:[%s929 + $0x18] sm:$0xf]
        %v937 = vld [vmem:[%s929 + $0x1c] sm:$0xf]
        %v946 = vunpack.c.l.b16 %v930
        %v947 = vunpack.c.l.b16 %v931
        %v948 = vunpack.c.l.b16 %v932
        %v949 = vunpack.c.l.b16 %v933
        %v950 = vunpack.c.l.b16 %v934
        %v951 = vunpack.c.l.b16 %v935
        %v952 = vunpack.c.l.b16 %v936
        %v953 = vunpack.c.l.b16 %v937
        %v954 = vpack.c.b16 %v947, %v946
        %v955 = vpack.c.b16 %v949, %v948
        %v956 = vpack.c.b16 %v951, %v950
        %v957 = vpack.c.b16 %v953, %v952
        %962 = vmatprep.subr.bf16.mxu0 0
        %963 = vmatpush1.bf16.msra.mxu0 0
        %964 = vmatprep.subr.bf16.mxu0 0
        %965 = vmatpush1.bf16.msra.mxu0 0
        %966 = vmatprep.subr.bf16.mxu0 0
        %967 = vmatpush1.bf16.msra.mxu0 0
        %968 = vmatprep.subr.bf16.mxu0 0
        %969 = vmatpush1.bf16.msra.mxu0 0
        %970 = vmatprep.subr.bf16.mxu0 0
        %971 = vmatpush1.bf16.msra.mxu0 %v957
        %972 = vmatprep.subr.bf16.mxu0 0
        %973 = vmatpush1.bf16.msra.mxu0 %v956
        %974 = vmatprep.subr.bf16.mxu0 0
        %975 = vmatpush1.bf16.msra.mxu0 %v955
        %976 = vmatprep.subr.bf16.mxu0 0
        %977 = vmatpush1.bf16.msra.mxu0 %v954
        %978 = vmatprep.subr.bf16.mxu0 0
        %979 = vmatpush2.bf16.msra.mxu0 0
        %980 = vmatprep.subr.bf16.mxu0 0
        %981 = vmatpush2.bf16.msra.mxu0 0
        %982 = vmatprep.subr.bf16.mxu0 0
        %983 = vmatpush2.bf16.msra.mxu0 0
        %984 = vmatprep.subr.bf16.mxu0 0
        %985 = vmatpush2.bf16.msra.mxu0 0
        %986 = vmatprep.subr.bf16.mxu0 0
        %987 = vmatpush2.bf16.msra.mxu0 0
        %988 = vmatprep.subr.bf16.mxu0 0
        %989 = vmatpush2.bf16.msra.mxu0 0
        %990 = vmatprep.subr.bf16.mxu0 0
        %991 = vmatpush2.bf16.msra.mxu0 0
        %992 = vmatprep.subr.bf16.mxu0 0
        %993 = vmatpush2.bf16.msra.mxu0 0
        %994 = vmatprep.mubr.bf16.mxu0 0
        %995 = vmatmul.mubr.bf16.gmra.mxu0 %v809
        %v996 = vpop.f32.mrf.mxu0
        %v997 = vadd.f32 0.0, %v996
        %v998 = vpop.f32.mrf.mxu0
        %v999 = vpop.f32.mrf.mxu0
        %v1000 = vadd.f32 0.0, %v999
        %v1001 = vpop.f32.mrf.mxu0
        %1002 = vmatprep.mubr.bf16.mxu0 0
        %1003 = vmatmul.mubr.bf16.gmra.mxu0 %v812
        %v1004 = vpop.f32.mrf.mxu0
        %v1005 = vadd.f32 0.0, %v1004
        %v1006 = vpop.f32.mrf.mxu0
        %v1007 = vpop.f32.mrf.mxu0
        %v1008 = vadd.f32 0.0, %v1007
        %v1009 = vpop.f32.mrf.mxu0
        %1010 = vmatprep.mubr.bf16.mxu0 0
        %1011 = vmatmul.mubr.bf16.gmra.mxu0 %v815
        %v1012 = vpop.f32.mrf.mxu0
        %v1013 = vadd.f32 0.0, %v1012
        %v1014 = vpop.f32.mrf.mxu0
        %v1015 = vpop.f32.mrf.mxu0
        %v1016 = vadd.f32 0.0, %v1015
        %v1017 = vpop.f32.mrf.mxu0
        %1018 = vmatprep.mubr.bf16.mxu0 0
        %1019 = vmatmul.mubr.bf16.gmra.mxu0 %v818
        %v1020 = vpop.f32.mrf.mxu0
        %v1021 = vadd.f32 0.0, %v1020
        %v1022 = vpop.f32.mrf.mxu0
        %v1023 = vpop.f32.mrf.mxu0
        %v1024 = vadd.f32 0.0, %v1023
        %v1025 = vpop.f32.mrf.mxu0
        %1026 = vmatprep.mubr.bf16.mxu0 0
        %1027 = vmatmul.mubr.bf16.gmra.mxu0 %v821
        %v1028 = vpop.f32.mrf.mxu0
        %v1029 = vadd.f32 0.0, %v1028
        %v1030 = vpop.f32.mrf.mxu0
        %v1031 = vpop.f32.mrf.mxu0
        %v1032 = vadd.f32 0.0, %v1031
        %v1033 = vpop.f32.mrf.mxu0
        %1034 = vmatprep.mubr.bf16.mxu0 0
        %1035 = vmatmul.mubr.bf16.gmra.mxu0 %v824
        %v1036 = vpop.f32.mrf.mxu0
        %v1037 = vadd.f32 0.0, %v1036
        %v1038 = vpop.f32.mrf.mxu0
        %v1039 = vpop.f32.mrf.mxu0
        %v1040 = vadd.f32 0.0, %v1039
        %v1041 = vpop.f32.mrf.mxu0
        %1042 = vmatprep.mubr.bf16.mxu0 0
        %1043 = vmatmul.mubr.bf16.gmra.mxu0 %v827
        %v1044 = vpop.f32.mrf.mxu0
        %v1045 = vadd.f32 0.0, %v1044
        %v1046 = vpop.f32.mrf.mxu0
        %v1047 = vpop.f32.mrf.mxu0
        %v1048 = vadd.f32 0.0, %v1047
        %v1049 = vpop.f32.mrf.mxu0
        %1050 = vmatprep.mubr.bf16.mxu0 0
        %1051 = vmatmul.mubr.bf16.gmra.mxu0 %v830
        %v1052 = vpop.f32.mrf.mxu0
        %v1053 = vadd.f32 0.0, %v1052
        %v1054 = vpop.f32.mrf.mxu0
        %v1055 = vpop.f32.mrf.mxu0
        %v1056 = vadd.f32 0.0, %v1055
        %v1057 = vpop.f32.mrf.mxu0
        %1058 = vdwg.mxu0
        %s1059 = scalar_lea.vmem %s3, 64
        %v1060 = vld [vmem:[%s1059] sm:$0xf]
        %v1061 = vld [vmem:[%s1059 + $0x4] sm:$0xf]
        %v1062 = vld [vmem:[%s1059 + $0x8] sm:$0xf]
        %v1063 = vld [vmem:[%s1059 + $0xc] sm:$0xf]
        %v1064 = vld [vmem:[%s1059 + $0x10] sm:$0xf]
        %v1065 = vld [vmem:[%s1059 + $0x14] sm:$0xf]
        %v1066 = vld [vmem:[%s1059 + $0x18] sm:$0xf]
        %v1067 = vld [vmem:[%s1059 + $0x1c] sm:$0xf]
        %v1076 = vunpack.c.l.b16 %v1060
        %v1077 = vunpack.c.l.b16 %v1061
        %v1078 = vunpack.c.l.b16 %v1062
        %v1079 = vunpack.c.l.b16 %v1063
        %v1080 = vunpack.c.l.b16 %v1064
        %v1081 = vunpack.c.l.b16 %v1065
        %v1082 = vunpack.c.l.b16 %v1066
        %v1083 = vunpack.c.l.b16 %v1067
        %v1084 = vpack.c.b16 %v1077, %v1076
        %v1085 = vpack.c.b16 %v1079, %v1078
        %v1086 = vpack.c.b16 %v1081, %v1080
        %v1087 = vpack.c.b16 %v1083, %v1082
        %1092 = vmatprep.subr.bf16.mxu0 0
        %1093 = vmatpush1.bf16.msra.mxu0 0
        %1094 = vmatprep.subr.bf16.mxu0 0
        %1095 = vmatpush1.bf16.msra.mxu0 0
        %1096 = vmatprep.subr.bf16.mxu0 0
        %1097 = vmatpush1.bf16.msra.mxu0 0
        %1098 = vmatprep.subr.bf16.mxu0 0
        %1099 = vmatpush1.bf16.msra.mxu0 0
        %1100 = vmatprep.subr.bf16.mxu0 0
        %1101 = vmatpush1.bf16.msra.mxu0 %v1087
        %1102 = vmatprep.subr.bf16.mxu0 0
        %1103 = vmatpush1.bf16.msra.mxu0 %v1086
        %1104 = vmatprep.subr.bf16.mxu0 0
        %1105 = vmatpush1.bf16.msra.mxu0 %v1085
        %1106 = vmatprep.subr.bf16.mxu0 0
        %1107 = vmatpush1.bf16.msra.mxu0 %v1084
        %1108 = vmatprep.subr.bf16.mxu0 0
        %1109 = vmatpush2.bf16.msra.mxu0 0
        %1110 = vmatprep.subr.bf16.mxu0 0
        %1111 = vmatpush2.bf16.msra.mxu0 0
        %1112 = vmatprep.subr.bf16.mxu0 0
        %1113 = vmatpush2.bf16.msra.mxu0 0
        %1114 = vmatprep.subr.bf16.mxu0 0
        %1115 = vmatpush2.bf16.msra.mxu0 0
        %1116 = vmatprep.subr.bf16.mxu0 0
        %1117 = vmatpush2.bf16.msra.mxu0 0
        %1118 = vmatprep.subr.bf16.mxu0 0
        %1119 = vmatpush2.bf16.msra.mxu0 0
        %1120 = vmatprep.subr.bf16.mxu0 0
        %1121 = vmatpush2.bf16.msra.mxu0 0
        %1122 = vmatprep.subr.bf16.mxu0 0
        %1123 = vmatpush2.bf16.msra.mxu0 0
        %1124 = vmatprep.mubr.bf16.mxu0 0
        %1125 = vmatmul.mubr.bf16.gmra.mxu0 %v809
        %v1126 = vpop.f32.mrf.mxu0
        %v1127 = vadd.f32 0.0, %v1126
        %v1128 = vpop.f32.mrf.mxu0
        %v1129 = vpop.f32.mrf.mxu0
        %v1130 = vadd.f32 0.0, %v1129
        %v1131 = vpop.f32.mrf.mxu0
        %1132 = vmatprep.mubr.bf16.mxu0 0
        %1133 = vmatmul.mubr.bf16.gmra.mxu0 %v812
        %v1134 = vpop.f32.mrf.mxu0
        %v1135 = vadd.f32 0.0, %v1134
        %v1136 = vpop.f32.mrf.mxu0
        %v1137 = vpop.f32.mrf.mxu0
        %v1138 = vadd.f32 0.0, %v1137
        %v1139 = vpop.f32.mrf.mxu0
        %1140 = vmatprep.mubr.bf16.mxu0 0
        %1141 = vmatmul.mubr.bf16.gmra.mxu0 %v815
        %v1142 = vpop.f32.mrf.mxu0
        %v1143 = vadd.f32 0.0, %v1142
        %v1144 = vpop.f32.mrf.mxu0
        %v1145 = vpop.f32.mrf.mxu0
        %v1146 = vadd.f32 0.0, %v1145
        %v1147 = vpop.f32.mrf.mxu0
        %1148 = vmatprep.mubr.bf16.mxu0 0
        %1149 = vmatmul.mubr.bf16.gmra.mxu0 %v818
        %v1150 = vpop.f32.mrf.mxu0
        %v1151 = vadd.f32 0.0, %v1150
        %v1152 = vpop.f32.mrf.mxu0
        %v1153 = vpop.f32.mrf.mxu0
        %v1154 = vadd.f32 0.0, %v1153
        %v1155 = vpop.f32.mrf.mxu0
        %1156 = vmatprep.mubr.bf16.mxu0 0
        %1157 = vmatmul.mubr.bf16.gmra.mxu0 %v821
        %v1158 = vpop.f32.mrf.mxu0
        %v1159 = vadd.f32 0.0, %v1158
        %v1160 = vpop.f32.mrf.mxu0
        %v1161 = vpop.f32.mrf.mxu0
        %v1162 = vadd.f32 0.0, %v1161
        %v1163 = vpop.f32.mrf.mxu0
        %1164 = vmatprep.mubr.bf16.mxu0 0
        %1165 = vmatmul.mubr.bf16.gmra.mxu0 %v824
        %v1166 = vpop.f32.mrf.mxu0
        %v1167 = vadd.f32 0.0, %v1166
        %v1168 = vpop.f32.mrf.mxu0
        %v1169 = vpop.f32.mrf.mxu0
        %v1170 = vadd.f32 0.0, %v1169
        %v1171 = vpop.f32.mrf.mxu0
        %1172 = vmatprep.mubr.bf16.mxu0 0
        %1173 = vmatmul.mubr.bf16.gmra.mxu0 %v827
        %v1174 = vpop.f32.mrf.mxu0
        %v1175 = vadd.f32 0.0, %v1174
        %v1176 = vpop.f32.mrf.mxu0
        %v1177 = vpop.f32.mrf.mxu0
        %v1178 = vadd.f32 0.0, %v1177
        %v1179 = vpop.f32.mrf.mxu0
        %1180 = vmatprep.mubr.bf16.mxu0 0
        %1181 = vmatmul.mubr.bf16.gmra.mxu0 %v830
        %v1182 = vpop.f32.mrf.mxu0
        %v1183 = vadd.f32 0.0, %v1182
        %v1184 = vpop.f32.mrf.mxu0
        %v1185 = vpop.f32.mrf.mxu0
        %v1186 = vadd.f32 0.0, %v1185
        %v1187 = vpop.f32.mrf.mxu0
        %1188 = vdwg.mxu0
        %v1189 = vrot.slane %v867, 7
        %v1190 = vrot.slane %v870, 7
        %v1191 = vrot.slane %v875, 7
        %v1192 = vrot.slane %v878, 7
        %v1193 = vrot.slane %v883, 7
        %v1194 = vrot.slane %v886, 7
        %v1195 = vrot.slane %v891, 7
        %v1196 = vrot.slane %v894, 7
        %v1197 = vrot.slane %v899, 7
        %v1198 = vrot.slane %v902, 7
        %v1199 = vrot.slane %v907, 7
        %v1200 = vrot.slane %v910, 7
        %v1201 = vrot.slane %v915, 7
        %v1202 = vrot.slane %v918, 7
        %v1203 = vrot.slane %v923, 7
        %v1204 = vrot.slane %v926, 7
        %v1205 = vlaneseq
        %v1206 = vshrl.u32 %v1205, 7
        %vm1207 = vcmp.lt.s32.totalorder %v1206, 1
        %v1208 = vsel %vm1207, %v1203, %v1204
        %v1209 = vsel %vm1207, %v1202, %v1203
        %v1210 = vsel %vm1207, %v1201, %v1202
        %v1211 = vsel %vm1207, %v1200, %v1201
        %v1212 = vsel %vm1207, %v1199, %v1200
        %v1213 = vsel %vm1207, %v1198, %v1199
        %v1214 = vsel %vm1207, %v1197, %v1198
        %v1215 = vsel %vm1207, %v1196, %v1197
        %v1216 = vsel %vm1207, %v1195, %v1196
        %v1217 = vsel %vm1207, %v1194, %v1195
        %v1218 = vsel %vm1207, %v1193, %v1194
        %v1219 = vsel %vm1207, %v1192, %v1193
        %v1220 = vsel %vm1207, %v1191, %v1192
        %v1221 = vsel %vm1207, %v1190, %v1191
        %v1222 = vsel %vm1207, %v1189, %v1190
        %v1223 = vsel %vm1207, %v1204, %v1189
        %v1224 = vadd.s32 %v1206, 8
        %v1225 = vadd.s32 %v1206, 16
        %v1226 = vadd.s32 %v1206, 24
        %v1227 = vadd.s32 %v1206, 32
        %v1228 = vadd.s32 %v1206, 40
        %v1229 = vadd.s32 %v1206, 48
        %v1230 = vadd.s32 %v1206, 56
        %v1231 = vadd.s32 %v1206, 64
        %v1232 = vadd.s32 %v1206, 72
        %v1233 = vadd.s32 %v1206, 80
        %v1234 = vadd.s32 %v1206, 88
        %v1235 = vadd.s32 %v1206, 96
        %v1236 = vadd.s32 %v1206, 104
        %v1237 = vadd.s32 %v1206, 112
        %v1238 = vadd.s32 %v1206, 120
        %vm1239 = vcmp.lt.s32.totalorder %v1206, 0
        %v1240 = vsub.s32 0, %v1206
        %v1241 = vsel %vm1239, %v1240, %v1206
        %v1242 = vshrl.u32 %v1241, 5
        %v1243 = vand.u32 %v1241, 31
        %v1244 = vsub.s32 0, %v1243
        %v1245 = vsel %vm1239, %v1244, %v1243
        %vm1246 = vcmp.lt.s32.totalorder %v1224, 0
        %v1247 = vsub.s32 0, %v1224
        %v1248 = vsel %vm1246, %v1247, %v1224
        %v1249 = vshrl.u32 %v1248, 5
        %v1250 = vand.u32 %v1248, 31
        %v1251 = vsub.s32 0, %v1250
        %v1252 = vsel %vm1246, %v1251, %v1250
        %vm1253 = vcmp.lt.s32.totalorder %v1225, 0
        %v1254 = vsub.s32 0, %v1225
        %v1255 = vsel %vm1253, %v1254, %v1225
        %v1256 = vshrl.u32 %v1255, 5
        %v1257 = vand.u32 %v1255, 31
        %v1258 = vsub.s32 0, %v1257
        %v1259 = vsel %vm1253, %v1258, %v1257
        %vm1260 = vcmp.lt.s32.totalorder %v1226, 0
        %v1261 = vsub.s32 0, %v1226
        %v1262 = vsel %vm1260, %v1261, %v1226
        %v1263 = vshrl.u32 %v1262, 5
        %v1264 = vand.u32 %v1262, 31
        %v1265 = vsub.s32 0, %v1264
        %v1266 = vsel %vm1260, %v1265, %v1264
        %vm1267 = vcmp.lt.s32.totalorder %v1227, 0
        %v1268 = vsub.s32 0, %v1227
        %v1269 = vsel %vm1267, %v1268, %v1227
        %v1270 = vshrl.u32 %v1269, 5
        %v1271 = vand.u32 %v1269, 31
        %v1272 = vsub.s32 0, %v1271
        %v1273 = vsel %vm1267, %v1272, %v1271
        %vm1274 = vcmp.lt.s32.totalorder %v1228, 0
        %v1275 = vsub.s32 0, %v1228
        %v1276 = vsel %vm1274, %v1275, %v1228
        %v1277 = vshrl.u32 %v1276, 5
        %v1278 = vand.u32 %v1276, 31
        %v1279 = vsub.s32 0, %v1278
        %v1280 = vsel %vm1274, %v1279, %v1278
        %vm1281 = vcmp.lt.s32.totalorder %v1229, 0
        %v1282 = vsub.s32 0, %v1229
        %v1283 = vsel %vm1281, %v1282, %v1229
        %v1284 = vshrl.u32 %v1283, 5
        %v1285 = vand.u32 %v1283, 31
        %v1286 = vsub.s32 0, %v1285
        %v1287 = vsel %vm1281, %v1286, %v1285
        %vm1288 = vcmp.lt.s32.totalorder %v1230, 0
        %v1289 = vsub.s32 0, %v1230
        %v1290 = vsel %vm1288, %v1289, %v1230
        %v1291 = vshrl.u32 %v1290, 5
        %v1292 = vand.u32 %v1290, 31
        %v1293 = vsub.s32 0, %v1292
        %v1294 = vsel %vm1288, %v1293, %v1292
        %vm1295 = vcmp.lt.s32.totalorder %v1231, 0
        %v1296 = vsub.s32 0, %v1231
        %v1297 = vsel %vm1295, %v1296, %v1231
        %v1298 = vshrl.u32 %v1297, 5
        %v1299 = vand.u32 %v1297, 31
        %v1300 = vsub.s32 0, %v1299
        %v1301 = vsel %vm1295, %v1300, %v1299
        %vm1302 = vcmp.lt.s32.totalorder %v1232, 0
        %v1303 = vsub.s32 0, %v1232
        %v1304 = vsel %vm1302, %v1303, %v1232
        %v1305 = vshrl.u32 %v1304, 5
        %v1306 = vand.u32 %v1304, 31
        %v1307 = vsub.s32 0, %v1306
        %v1308 = vsel %vm1302, %v1307, %v1306
        %vm1309 = vcmp.lt.s32.totalorder %v1233, 0
        %v1310 = vsub.s32 0, %v1233
        %v1311 = vsel %vm1309, %v1310, %v1233
        %v1312 = vshrl.u32 %v1311, 5
        %v1313 = vand.u32 %v1311, 31
        %v1314 = vsub.s32 0, %v1313
        %v1315 = vsel %vm1309, %v1314, %v1313
        %vm1316 = vcmp.lt.s32.totalorder %v1234, 0
        %v1317 = vsub.s32 0, %v1234
        %v1318 = vsel %vm1316, %v1317, %v1234
        %v1319 = vshrl.u32 %v1318, 5
        %v1320 = vand.u32 %v1318, 31
        %v1321 = vsub.s32 0, %v1320
        %v1322 = vsel %vm1316, %v1321, %v1320
        %vm1323 = vcmp.lt.s32.totalorder %v1235, 0
        %v1324 = vsub.s32 0, %v1235
        %v1325 = vsel %vm1323, %v1324, %v1235
        %v1326 = vshrl.u32 %v1325, 5
        %v1327 = vand.u32 %v1325, 31
        %v1328 = vsub.s32 0, %v1327
        %v1329 = vsel %vm1323, %v1328, %v1327
        %vm1330 = vcmp.lt.s32.totalorder %v1236, 0
        %v1331 = vsub.s32 0, %v1236
        %v1332 = vsel %vm1330, %v1331, %v1236
        %v1333 = vshrl.u32 %v1332, 5
        %v1334 = vand.u32 %v1332, 31
        %v1335 = vsub.s32 0, %v1334
        %v1336 = vsel %vm1330, %v1335, %v1334
        %vm1337 = vcmp.lt.s32.totalorder %v1237, 0
        %v1338 = vsub.s32 0, %v1237
        %v1339 = vsel %vm1337, %v1338, %v1237
        %v1340 = vshrl.u32 %v1339, 5
        %v1341 = vand.u32 %v1339, 31
        %v1342 = vsub.s32 0, %v1341
        %v1343 = vsel %vm1337, %v1342, %v1341
        %vm1344 = vcmp.lt.s32.totalorder %v1238, 0
        %v1345 = vsub.s32 0, %v1238
        %v1346 = vsel %vm1344, %v1345, %v1238
        %v1347 = vshrl.u32 %v1346, 5
        %v1348 = vand.u32 %v1346, 31
        %v1349 = vsub.s32 0, %v1348
        %v1350 = vsel %vm1344, %v1349, %v1348
        %vm1351 = vcmp.ne.s32.totalorder %v1245, 0
        %vm1352 = vcmp.ne.s32.totalorder %v1252, 0
        %vm1353 = vcmp.ne.s32.totalorder %v1259, 0
        %vm1354 = vcmp.ne.s32.totalorder %v1266, 0
        %vm1355 = vcmp.ne.s32.totalorder %v1273, 0
        %vm1356 = vcmp.ne.s32.totalorder %v1280, 0
        %vm1357 = vcmp.ne.s32.totalorder %v1287, 0
        %vm1358 = vcmp.ne.s32.totalorder %v1294, 0
        %vm1359 = vcmp.ne.s32.totalorder %v1301, 0
        %vm1360 = vcmp.ne.s32.totalorder %v1308, 0
        %vm1361 = vcmp.ne.s32.totalorder %v1315, 0
        %vm1362 = vcmp.ne.s32.totalorder %v1322, 0
        %vm1363 = vcmp.ne.s32.totalorder %v1329, 0
        %vm1364 = vcmp.ne.s32.totalorder %v1336, 0
        %vm1365 = vcmp.ne.s32.totalorder %v1343, 0
        %vm1366 = vcmp.ne.s32.totalorder %v1350, 0
        %vm1367 = vcmp.lt.s32.totalorder %v1245, 0
        %vm1368 = vcmp.lt.s32.totalorder %v1252, 0
        %vm1369 = vcmp.lt.s32.totalorder %v1259, 0
        %vm1370 = vcmp.lt.s32.totalorder %v1266, 0
        %vm1371 = vcmp.lt.s32.totalorder %v1273, 0
        %vm1372 = vcmp.lt.s32.totalorder %v1280, 0
        %vm1373 = vcmp.lt.s32.totalorder %v1287, 0
        %vm1374 = vcmp.lt.s32.totalorder %v1294, 0
        %vm1375 = vcmp.lt.s32.totalorder %v1301, 0
        %vm1376 = vcmp.lt.s32.totalorder %v1308, 0
        %vm1377 = vcmp.lt.s32.totalorder %v1315, 0
        %vm1378 = vcmp.lt.s32.totalorder %v1322, 0
        %vm1379 = vcmp.lt.s32.totalorder %v1329, 0
        %vm1380 = vcmp.lt.s32.totalorder %v1336, 0
        %vm1381 = vcmp.lt.s32.totalorder %v1343, 0
        %vm1382 = vcmp.lt.s32.totalorder %v1350, 0
        %vm1383 = vmand %vm1367, %vm1351
        %vm1384 = vmand %vm1368, %vm1352
        %vm1385 = vmand %vm1369, %vm1353
        %vm1386 = vmand %vm1370, %vm1354
        %vm1387 = vmand %vm1371, %vm1355
        %vm1388 = vmand %vm1372, %vm1356
        %vm1389 = vmand %vm1373, %vm1357
        %vm1390 = vmand %vm1374, %vm1358
        %vm1391 = vmand %vm1375, %vm1359
        %vm1392 = vmand %vm1376, %vm1360
        %vm1393 = vmand %vm1377, %vm1361
        %vm1394 = vmand %vm1378, %vm1362
        %vm1395 = vmand %vm1379, %vm1363
        %vm1396 = vmand %vm1380, %vm1364
        %vm1397 = vmand %vm1381, %vm1365
        %vm1398 = vmand %vm1382, %vm1366
        %v1399 = vadd.s32 %v1245, 32
        %v1400 = vadd.s32 %v1252, 32
        %v1401 = vadd.s32 %v1259, 32
        %v1402 = vadd.s32 %v1266, 32
        %v1403 = vadd.s32 %v1273, 32
        %v1404 = vadd.s32 %v1280, 32
        %v1405 = vadd.s32 %v1287, 32
        %v1406 = vadd.s32 %v1294, 32
        %v1407 = vadd.s32 %v1301, 32
        %v1408 = vadd.s32 %v1308, 32
        %v1409 = vadd.s32 %v1315, 32
        %v1410 = vadd.s32 %v1322, 32
        %v1411 = vadd.s32 %v1329, 32
        %v1412 = vadd.s32 %v1336, 32
        %v1413 = vadd.s32 %v1343, 32
        %v1414 = vadd.s32 %v1350, 32
        %v1415 = vsel %vm1383, %v1399, %v1245
        %v1416 = vsel %vm1384, %v1400, %v1252
        %v1417 = vsel %vm1385, %v1401, %v1259
        %v1418 = vsel %vm1386, %v1402, %v1266
        %v1419 = vsel %vm1387, %v1403, %v1273
        %v1420 = vsel %vm1388, %v1404, %v1280
        %v1421 = vsel %vm1389, %v1405, %v1287
        %v1422 = vsel %vm1390, %v1406, %v1294
        %v1423 = vsel %vm1391, %v1407, %v1301
        %v1424 = vsel %vm1392, %v1408, %v1308
        %v1425 = vsel %vm1393, %v1409, %v1315
        %v1426 = vsel %vm1394, %v1410, %v1322
        %v1427 = vsel %vm1395, %v1411, %v1329
        %v1428 = vsel %vm1396, %v1412, %v1336
        %v1429 = vsel %vm1397, %v1413, %v1343
        %v1430 = vsel %vm1398, %v1414, %v1350
        %vm1431 = vcmp.eq.s32.totalorder %v1415, 0
        %vm1432 = vcmp.eq.s32.totalorder %v1416, 0
        %vm1433 = vcmp.eq.s32.totalorder %v1417, 0
        %vm1434 = vcmp.eq.s32.totalorder %v1418, 0
        %vm1435 = vcmp.eq.s32.totalorder %v1419, 0
        %vm1436 = vcmp.eq.s32.totalorder %v1420, 0
        %vm1437 = vcmp.eq.s32.totalorder %v1421, 0
        %vm1438 = vcmp.eq.s32.totalorder %v1422, 0
        %vm1439 = vcmp.eq.s32.totalorder %v1423, 0
        %vm1440 = vcmp.eq.s32.totalorder %v1424, 0
        %vm1441 = vcmp.eq.s32.totalorder %v1425, 0
        %vm1442 = vcmp.eq.s32.totalorder %v1426, 0
        %vm1443 = vcmp.eq.s32.totalorder %v1427, 0
        %vm1444 = vcmp.eq.s32.totalorder %v1428, 0
        %vm1445 = vcmp.eq.s32.totalorder %v1429, 0
        %vm1446 = vcmp.eq.s32.totalorder %v1430, 0
        %v1447 = vsel %vm1431, 0.0, %v1223
        %v1448 = vsel %vm1432, 0.0, %v1222
        %v1449 = vsel %vm1433, 0.0, %v1221
        %v1450 = vsel %vm1434, 0.0, %v1220
        %v1451 = vsel %vm1435, 0.0, %v1219
        %v1452 = vsel %vm1436, 0.0, %v1218
        %v1453 = vsel %vm1437, 0.0, %v1217
        %v1454 = vsel %vm1438, 0.0, %v1216
        %v1455 = vsel %vm1439, 0.0, %v1215
        %v1456 = vsel %vm1440, 0.0, %v1214
        %v1457 = vsel %vm1441, 0.0, %v1213
        %v1458 = vsel %vm1442, 0.0, %v1212
        %v1459 = vsel %vm1443, 0.0, %v1211
        %v1460 = vsel %vm1444, 0.0, %v1210
        %v1461 = vsel %vm1445, 0.0, %v1209
        %v1462 = vsel %vm1446, 0.0, %v1208
        %v1463 = vadd.f32 %v1447, %v997
        %v1464 = vadd.f32 %v1448, %v1000
        %v1465 = vadd.f32 %v1449, %v1005
        %v1466 = vadd.f32 %v1450, %v1008
        %v1467 = vadd.f32 %v1451, %v1013
        %v1468 = vadd.f32 %v1452, %v1016
        %v1469 = vadd.f32 %v1453, %v1021
        %v1470 = vadd.f32 %v1454, %v1024
        %v1471 = vadd.f32 %v1455, %v1029
        %v1472 = vadd.f32 %v1456, %v1032
        %v1473 = vadd.f32 %v1457, %v1037
        %v1474 = vadd.f32 %v1458, %v1040
        %v1475 = vadd.f32 %v1459, %v1045
        %v1476 = vadd.f32 %v1460, %v1048
        %v1477 = vadd.f32 %v1461, %v1053
        %v1478 = vadd.f32 %v1462, %v1056
        %v1479 = vrot.slane %v1127, 1
        %v1480 = vrot.slane %v1130, 1
        %v1481 = vrot.slane %v1135, 1
        %v1482 = vrot.slane %v1138, 1
        %v1483 = vrot.slane %v1143, 1
        %v1484 = vrot.slane %v1146, 1
        %v1485 = vrot.slane %v1151, 1
        %v1486 = vrot.slane %v1154, 1
        %v1487 = vrot.slane %v1159, 1
        %v1488 = vrot.slane %v1162, 1
        %v1489 = vrot.slane %v1167, 1
        %v1490 = vrot.slane %v1170, 1
        %v1491 = vrot.slane %v1175, 1
        %v1492 = vrot.slane %v1178, 1
        %v1493 = vrot.slane %v1183, 1
        %v1494 = vrot.slane %v1186, 1
        %vm1495 = vcmp.lt.s32.totalorder %v1206, 7
        %v1496 = vsel %vm1495, %v1493, %v1494
        %v1497 = vsel %vm1495, %v1492, %v1493
        %v1498 = vsel %vm1495, %v1491, %v1492
        %v1499 = vsel %vm1495, %v1490, %v1491
        %v1500 = vsel %vm1495, %v1489, %v1490
        %v1501 = vsel %vm1495, %v1488, %v1489
        %v1502 = vsel %vm1495, %v1487, %v1488
        %v1503 = vsel %vm1495, %v1486, %v1487
        %v1504 = vsel %vm1495, %v1485, %v1486
        %v1505 = vsel %vm1495, %v1484, %v1485
        %v1506 = vsel %vm1495, %v1483, %v1484
        %v1507 = vsel %vm1495, %v1482, %v1483
        %v1508 = vsel %vm1495, %v1481, %v1482
        %v1509 = vsel %vm1495, %v1480, %v1481
        %v1510 = vsel %vm1495, %v1479, %v1480
        %v1511 = vsel %vm1495, %v1494, %v1479
        %vm1512 = vcmp.eq.s32.totalorder %v1415, 31
        %vm1513 = vcmp.eq.s32.totalorder %v1416, 31
        %vm1514 = vcmp.eq.s32.totalorder %v1417, 31
        %vm1515 = vcmp.eq.s32.totalorder %v1418, 31
        %vm1516 = vcmp.eq.s32.totalorder %v1419, 31
        %vm1517 = vcmp.eq.s32.totalorder %v1420, 31
        %vm1518 = vcmp.eq.s32.totalorder %v1421, 31
        %vm1519 = vcmp.eq.s32.totalorder %v1422, 31
        %vm1520 = vcmp.eq.s32.totalorder %v1423, 31
        %vm1521 = vcmp.eq.s32.totalorder %v1424, 31
        %vm1522 = vcmp.eq.s32.totalorder %v1425, 31
        %vm1523 = vcmp.eq.s32.totalorder %v1426, 31
        %vm1524 = vcmp.eq.s32.totalorder %v1427, 31
        %vm1525 = vcmp.eq.s32.totalorder %v1428, 31
        %vm1526 = vcmp.eq.s32.totalorder %v1429, 31
        %vm1527 = vcmp.eq.s32.totalorder %v1430, 31
        %v1528 = vsel %vm1512, 0.0, %v1510
        %v1529 = vsel %vm1513, 0.0, %v1509
        %v1530 = vsel %vm1514, 0.0, %v1508
        %v1531 = vsel %vm1515, 0.0, %v1507
        %v1532 = vsel %vm1516, 0.0, %v1506
        %v1533 = vsel %vm1517, 0.0, %v1505
        %v1534 = vsel %vm1518, 0.0, %v1504
        %v1535 = vsel %vm1519, 0.0, %v1503
        %v1536 = vsel %vm1520, 0.0, %v1502
        %v1537 = vsel %vm1521, 0.0, %v1501
        %v1538 = vsel %vm1522, 0.0, %v1500
        %v1539 = vsel %vm1523, 0.0, %v1499
        %v1540 = vsel %vm1524, 0.0, %v1498
        %v1541 = vsel %vm1525, 0.0, %v1497
        %v1542 = vsel %vm1526, 0.0, %v1496
        %v1543 = vsel %vm1527, 0.0, %v1511
        %v1544 = vadd.f32 %v1463, %v1528
        %v1545 = vadd.f32 %v1464, %v1529
        %v1546 = vadd.f32 %v1465, %v1530
        %v1547 = vadd.f32 %v1466, %v1531
        %v1548 = vadd.f32 %v1467, %v1532
        %v1549 = vadd.f32 %v1468, %v1533
        %v1550 = vadd.f32 %v1469, %v1534
        %v1551 = vadd.f32 %v1470, %v1535
        %v1552 = vadd.f32 %v1471, %v1536
        %v1553 = vadd.f32 %v1472, %v1537
        %v1554 = vadd.f32 %v1473, %v1538
        %v1555 = vadd.f32 %v1474, %v1539
        %v1556 = vadd.f32 %v1475, %v1540
        %v1557 = vadd.f32 %v1476, %v1541
        %v1558 = vadd.f32 %v1477, %v1542
        %v1559 = vadd.f32 %v1478, %v1543
        %v1560 = vld [vmem:[%s4] sm:$0x1]
        %v1562 = vlaneseq
        %v1563 = vshrl.u32 %v1562, 7
        %v1564 = vsub.s32 0, %v1563
        %v1565 = vrot.slane %v1560, %v1564
        %v1567 = vadd.f32 %v1544, %v1565
        %v1568 = vadd.f32 %v1545, %v1565
        %v1569 = vadd.f32 %v1546, %v1565
        %v1570 = vadd.f32 %v1547, %v1565
        %v1571 = vadd.f32 %v1548, %v1565
        %v1572 = vadd.f32 %v1549, %v1565
        %v1573 = vadd.f32 %v1550, %v1565
        %v1574 = vadd.f32 %v1551, %v1565
        %v1575 = vadd.f32 %v1552, %v1565
        %v1576 = vadd.f32 %v1553, %v1565
        %v1577 = vadd.f32 %v1554, %v1565
        %v1578 = vadd.f32 %v1555, %v1565
        %v1579 = vadd.f32 %v1556, %v1565
        %v1580 = vadd.f32 %v1557, %v1565
        %v1581 = vadd.f32 %v1558, %v1565
        %v1582 = vadd.f32 %v1559, %v1565
        %v1599 = vcombine.high %v1567, %v1567
        %v1601 = vunpack.c.l.s4 1983009808
        %v1602 = vunpack.c.0.s8 %v1601
        %v1603 = vlaneseq
        %v1604 = vshrl.u32 %v1603, 7
        %v1605 = vsub.s32 %v1602, %v1604
        %v1606 = vrot.slane %v1567, %v1605
        %v1608 = vunpack.c.l.s4 1983009808
        %v1609 = vunpack.c.0.s8 %v1608
        %v1610 = vlaneseq
        %v1611 = vshrl.u32 %v1610, 7
        %v1612 = vsub.s32 %v1609, %v1611
        %v1613 = vrot.slane %v1599, %v1612
        %v1614 = vcombine.high %v1606, %v1606
        %v1615 = vcombine.high %v1613, %v1613
        %v1616 = vcombine.high %v1568, %v1568
        %v1618 = vunpack.c.l.s4 1983009808
        %v1619 = vunpack.c.0.s8 %v1618
        %v1620 = vlaneseq
        %v1621 = vshrl.u32 %v1620, 7
        %v1622 = vsub.s32 %v1619, %v1621
        %v1623 = vrot.slane %v1568, %v1622
        %v1625 = vunpack.c.l.s4 1983009808
        %v1626 = vunpack.c.0.s8 %v1625
        %v1627 = vlaneseq
        %v1628 = vshrl.u32 %v1627, 7
        %v1629 = vsub.s32 %v1626, %v1628
        %v1630 = vrot.slane %v1616, %v1629
        %v1631 = vcombine.high %v1623, %v1623
        %v1632 = vcombine.high %v1630, %v1630
        %v1633 = vcombine.high %v1569, %v1569
        %v1635 = vunpack.c.l.s4 1983009808
        %v1636 = vunpack.c.0.s8 %v1635
        %v1637 = vlaneseq
        %v1638 = vshrl.u32 %v1637, 7
        %v1639 = vsub.s32 %v1636, %v1638
        %v1640 = vrot.slane %v1569, %v1639
        %v1642 = vunpack.c.l.s4 1983009808
        %v1643 = vunpack.c.0.s8 %v1642
        %v1644 = vlaneseq
        %v1645 = vshrl.u32 %v1644, 7
        %v1646 = vsub.s32 %v1643, %v1645
        %v1647 = vrot.slane %v1633, %v1646
        %v1648 = vcombine.high %v1640, %v1640
        %v1649 = vcombine.high %v1647, %v1647
        %v1650 = vcombine.high %v1570, %v1570
        %v1652 = vunpack.c.l.s4 1983009808
        %v1653 = vunpack.c.0.s8 %v1652
        %v1654 = vlaneseq
        %v1655 = vshrl.u32 %v1654, 7
        %v1656 = vsub.s32 %v1653, %v1655
        %v1657 = vrot.slane %v1570, %v1656
        %v1659 = vunpack.c.l.s4 1983009808
        %v1660 = vunpack.c.0.s8 %v1659
        %v1661 = vlaneseq
        %v1662 = vshrl.u32 %v1661, 7
        %v1663 = vsub.s32 %v1660, %v1662
        %v1664 = vrot.slane %v1650, %v1663
        %v1665 = vcombine.high %v1657, %v1657
        %v1666 = vcombine.high %v1664, %v1664
        %v1667 = vcombine.high %v1571, %v1571
        %v1669 = vunpack.c.l.s4 1983009808
        %v1670 = vunpack.c.0.s8 %v1669
        %v1671 = vlaneseq
        %v1672 = vshrl.u32 %v1671, 7
        %v1673 = vsub.s32 %v1670, %v1672
        %v1674 = vrot.slane %v1571, %v1673
        %v1676 = vunpack.c.l.s4 1983009808
        %v1677 = vunpack.c.0.s8 %v1676
        %v1678 = vlaneseq
        %v1679 = vshrl.u32 %v1678, 7
        %v1680 = vsub.s32 %v1677, %v1679
        %v1681 = vrot.slane %v1667, %v1680
        %v1682 = vcombine.high %v1674, %v1674
        %v1683 = vcombine.high %v1681, %v1681
        %v1684 = vcombine.high %v1572, %v1572
        %v1686 = vunpack.c.l.s4 1983009808
        %v1687 = vunpack.c.0.s8 %v1686
        %v1688 = vlaneseq
        %v1689 = vshrl.u32 %v1688, 7
        %v1690 = vsub.s32 %v1687, %v1689
        %v1691 = vrot.slane %v1572, %v1690
        %v1693 = vunpack.c.l.s4 1983009808
        %v1694 = vunpack.c.0.s8 %v1693
        %v1695 = vlaneseq
        %v1696 = vshrl.u32 %v1695, 7
        %v1697 = vsub.s32 %v1694, %v1696
        %v1698 = vrot.slane %v1684, %v1697
        %v1699 = vcombine.high %v1691, %v1691
        %v1700 = vcombine.high %v1698, %v1698
        %v1701 = vcombine.high %v1573, %v1573
        %v1703 = vunpack.c.l.s4 1983009808
        %v1704 = vunpack.c.0.s8 %v1703
        %v1705 = vlaneseq
        %v1706 = vshrl.u32 %v1705, 7
        %v1707 = vsub.s32 %v1704, %v1706
        %v1708 = vrot.slane %v1573, %v1707
        %v1710 = vunpack.c.l.s4 1983009808
        %v1711 = vunpack.c.0.s8 %v1710
        %v1712 = vlaneseq
        %v1713 = vshrl.u32 %v1712, 7
        %v1714 = vsub.s32 %v1711, %v1713
        %v1715 = vrot.slane %v1701, %v1714
        %v1716 = vcombine.high %v1708, %v1708
        %v1717 = vcombine.high %v1715, %v1715
        %v1718 = vcombine.high %v1574, %v1574
        %v1720 = vunpack.c.l.s4 1983009808
        %v1721 = vunpack.c.0.s8 %v1720
        %v1722 = vlaneseq
        %v1723 = vshrl.u32 %v1722, 7
        %v1724 = vsub.s32 %v1721, %v1723
        %v1725 = vrot.slane %v1574, %v1724
        %v1727 = vunpack.c.l.s4 1983009808
        %v1728 = vunpack.c.0.s8 %v1727
        %v1729 = vlaneseq
        %v1730 = vshrl.u32 %v1729, 7
        %v1731 = vsub.s32 %v1728, %v1730
        %v1732 = vrot.slane %v1718, %v1731
        %v1733 = vcombine.high %v1725, %v1725
        %v1734 = vcombine.high %v1732, %v1732
        %v1735 = vcombine.high %v1575, %v1575
        %v1737 = vunpack.c.l.s4 1983009808
        %v1738 = vunpack.c.0.s8 %v1737
        %v1739 = vlaneseq
        %v1740 = vshrl.u32 %v1739, 7
        %v1741 = vsub.s32 %v1738, %v1740
        %v1742 = vrot.slane %v1575, %v1741
        %v1744 = vunpack.c.l.s4 1983009808
        %v1745 = vunpack.c.0.s8 %v1744
        %v1746 = vlaneseq
        %v1747 = vshrl.u32 %v1746, 7
        %v1748 = vsub.s32 %v1745, %v1747
        %v1749 = vrot.slane %v1735, %v1748
        %v1750 = vcombine.high %v1742, %v1742
        %v1751 = vcombine.high %v1749, %v1749
        %v1752 = vcombine.high %v1576, %v1576
        %v1754 = vunpack.c.l.s4 1983009808
        %v1755 = vunpack.c.0.s8 %v1754
        %v1756 = vlaneseq
        %v1757 = vshrl.u32 %v1756, 7
        %v1758 = vsub.s32 %v1755, %v1757
        %v1759 = vrot.slane %v1576, %v1758
        %v1761 = vunpack.c.l.s4 1983009808
        %v1762 = vunpack.c.0.s8 %v1761
        %v1763 = vlaneseq
        %v1764 = vshrl.u32 %v1763, 7
        %v1765 = vsub.s32 %v1762, %v1764
        %v1766 = vrot.slane %v1752, %v1765
        %v1767 = vcombine.high %v1759, %v1759
        %v1768 = vcombine.high %v1766, %v1766
        %v1769 = vcombine.high %v1577, %v1577
        %v1771 = vunpack.c.l.s4 1983009808
        %v1772 = vunpack.c.0.s8 %v1771
        %v1773 = vlaneseq
        %v1774 = vshrl.u32 %v1773, 7
        %v1775 = vsub.s32 %v1772, %v1774
        %v1776 = vrot.slane %v1577, %v1775
        %v1778 = vunpack.c.l.s4 1983009808
        %v1779 = vunpack.c.0.s8 %v1778
        %v1780 = vlaneseq
        %v1781 = vshrl.u32 %v1780, 7
        %v1782 = vsub.s32 %v1779, %v1781
        %v1783 = vrot.slane %v1769, %v1782
        %v1784 = vcombine.high %v1776, %v1776
        %v1785 = vcombine.high %v1783, %v1783
        %v1786 = vcombine.high %v1578, %v1578
        %v1788 = vunpack.c.l.s4 1983009808
        %v1789 = vunpack.c.0.s8 %v1788
        %v1790 = vlaneseq
        %v1791 = vshrl.u32 %v1790, 7
        %v1792 = vsub.s32 %v1789, %v1791
        %v1793 = vrot.slane %v1578, %v1792
        %v1795 = vunpack.c.l.s4 1983009808
        %v1796 = vunpack.c.0.s8 %v1795
        %v1797 = vlaneseq
        %v1798 = vshrl.u32 %v1797, 7
        %v1799 = vsub.s32 %v1796, %v1798
        %v1800 = vrot.slane %v1786, %v1799
        %v1801 = vcombine.high %v1793, %v1793
        %v1802 = vcombine.high %v1800, %v1800
        %v1803 = vcombine.high %v1579, %v1579
        %v1805 = vunpack.c.l.s4 1983009808
        %v1806 = vunpack.c.0.s8 %v1805
        %v1807 = vlaneseq
        %v1808 = vshrl.u32 %v1807, 7
        %v1809 = vsub.s32 %v1806, %v1808
        %v1810 = vrot.slane %v1579, %v1809
        %v1812 = vunpack.c.l.s4 1983009808
        %v1813 = vunpack.c.0.s8 %v1812
        %v1814 = vlaneseq
        %v1815 = vshrl.u32 %v1814, 7
        %v1816 = vsub.s32 %v1813, %v1815
        %v1817 = vrot.slane %v1803, %v1816
        %v1818 = vcombine.high %v1810, %v1810
        %v1819 = vcombine.high %v1817, %v1817
        %v1820 = vcombine.high %v1580, %v1580
        %v1822 = vunpack.c.l.s4 1983009808
        %v1823 = vunpack.c.0.s8 %v1822
        %v1824 = vlaneseq
        %v1825 = vshrl.u32 %v1824, 7
        %v1826 = vsub.s32 %v1823, %v1825
        %v1827 = vrot.slane %v1580, %v1826
        %v1829 = vunpack.c.l.s4 1983009808
        %v1830 = vunpack.c.0.s8 %v1829
        %v1831 = vlaneseq
        %v1832 = vshrl.u32 %v1831, 7
        %v1833 = vsub.s32 %v1830, %v1832
        %v1834 = vrot.slane %v1820, %v1833
        %v1835 = vcombine.high %v1827, %v1827
        %v1836 = vcombine.high %v1834, %v1834
        %v1837 = vcombine.high %v1581, %v1581
        %v1839 = vunpack.c.l.s4 1983009808
        %v1840 = vunpack.c.0.s8 %v1839
        %v1841 = vlaneseq
        %v1842 = vshrl.u32 %v1841, 7
        %v1843 = vsub.s32 %v1840, %v1842
        %v1844 = vrot.slane %v1581, %v1843
        %v1846 = vunpack.c.l.s4 1983009808
        %v1847 = vunpack.c.0.s8 %v1846
        %v1848 = vlaneseq
        %v1849 = vshrl.u32 %v1848, 7
        %v1850 = vsub.s32 %v1847, %v1849
        %v1851 = vrot.slane %v1837, %v1850
        %v1852 = vcombine.high %v1844, %v1844
        %v1853 = vcombine.high %v1851, %v1851
        %v1854 = vcombine.high %v1582, %v1582
        %v1856 = vunpack.c.l.s4 1983009808
        %v1857 = vunpack.c.0.s8 %v1856
        %v1858 = vlaneseq
        %v1859 = vshrl.u32 %v1858, 7
        %v1860 = vsub.s32 %v1857, %v1859
        %v1861 = vrot.slane %v1582, %v1860
        %v1863 = vunpack.c.l.s4 1983009808
        %v1864 = vunpack.c.0.s8 %v1863
        %v1865 = vlaneseq
        %v1866 = vshrl.u32 %v1865, 7
        %v1867 = vsub.s32 %v1864, %v1866
        %v1868 = vrot.slane %v1854, %v1867
        %v1869 = vcombine.high %v1861, %v1861
        %v1870 = vcombine.high %v1868, %v1868
        %vm1935 = vcmask 1041408
        %v1936 = vsel %vm1935, %v1606, -inf
        %v1937 = vrot.slane %v1936, 4
        %v1938 = vmax.f32 %v1936, %v1937
        %v1939 = vrot.slane %v1938, 2
        %v1940 = vmax.f32 %v1938, %v1939
        %v1941 = vrot.slane %v1940, 1
        %v1942 = vmax.f32 %v1940, %v1941
        %v1943 = vsel %vm1935, %v1614, -inf
        %v1944 = vrot.slane %v1943, 4
        %v1945 = vmax.f32 %v1943, %v1944
        %v1946 = vrot.slane %v1945, 2
        %v1947 = vmax.f32 %v1945, %v1946
        %v1948 = vrot.slane %v1947, 1
        %v1949 = vmax.f32 %v1947, %v1948
        %v1950 = vsel %vm1935, %v1613, -inf
        %v1951 = vrot.slane %v1950, 4
        %v1952 = vmax.f32 %v1950, %v1951
        %v1953 = vrot.slane %v1952, 2
        %v1954 = vmax.f32 %v1952, %v1953
        %v1955 = vrot.slane %v1954, 1
        %v1956 = vmax.f32 %v1954, %v1955
        %v1957 = vsel %vm1935, %v1615, -inf
        %v1958 = vrot.slane %v1957, 4
        %v1959 = vmax.f32 %v1957, %v1958
        %v1960 = vrot.slane %v1959, 2
        %v1961 = vmax.f32 %v1959, %v1960
        %v1962 = vrot.slane %v1961, 1
        %v1963 = vmax.f32 %v1961, %v1962
        %v1964 = vsel %vm1935, %v1623, -inf
        %v1965 = vrot.slane %v1964, 4
        %v1966 = vmax.f32 %v1964, %v1965
        %v1967 = vrot.slane %v1966, 2
        %v1968 = vmax.f32 %v1966, %v1967
        %v1969 = vrot.slane %v1968, 1
        %v1970 = vmax.f32 %v1968, %v1969
        %v1971 = vsel %vm1935, %v1631, -inf
        %v1972 = vrot.slane %v1971, 4
        %v1973 = vmax.f32 %v1971, %v1972
        %v1974 = vrot.slane %v1973, 2
        %v1975 = vmax.f32 %v1973, %v1974
        %v1976 = vrot.slane %v1975, 1
        %v1977 = vmax.f32 %v1975, %v1976
        %v1978 = vsel %vm1935, %v1630, -inf
        %v1979 = vrot.slane %v1978, 4
        %v1980 = vmax.f32 %v1978, %v1979
        %v1981 = vrot.slane %v1980, 2
        %v1982 = vmax.f32 %v1980, %v1981
        %v1983 = vrot.slane %v1982, 1
        %v1984 = vmax.f32 %v1982, %v1983
        %v1985 = vsel %vm1935, %v1632, -inf
        %v1986 = vrot.slane %v1985, 4
        %v1987 = vmax.f32 %v1985, %v1986
        %v1988 = vrot.slane %v1987, 2
        %v1989 = vmax.f32 %v1987, %v1988
        %v1990 = vrot.slane %v1989, 1
        %v1991 = vmax.f32 %v1989, %v1990
        %v1992 = vsel %vm1935, %v1640, -inf
        %v1993 = vrot.slane %v1992, 4
        %v1994 = vmax.f32 %v1992, %v1993
        %v1995 = vrot.slane %v1994, 2
        %v1996 = vmax.f32 %v1994, %v1995
        %v1997 = vrot.slane %v1996, 1
        %v1998 = vmax.f32 %v1996, %v1997
        %v1999 = vsel %vm1935, %v1648, -inf
        %v2000 = vrot.slane %v1999, 4
        %v2001 = vmax.f32 %v1999, %v2000
        %v2002 = vrot.slane %v2001, 2
        %v2003 = vmax.f32 %v2001, %v2002
        %v2004 = vrot.slane %v2003, 1
        %v2005 = vmax.f32 %v2003, %v2004
        %v2006 = vsel %vm1935, %v1647, -inf
        %v2007 = vrot.slane %v2006, 4
        %v2008 = vmax.f32 %v2006, %v2007
        %v2009 = vrot.slane %v2008, 2
        %v2010 = vmax.f32 %v2008, %v2009
        %v2011 = vrot.slane %v2010, 1
        %v2012 = vmax.f32 %v2010, %v2011
        %v2013 = vsel %vm1935, %v1649, -inf
        %v2014 = vrot.slane %v2013, 4
        %v2015 = vmax.f32 %v2013, %v2014
        %v2016 = vrot.slane %v2015, 2
        %v2017 = vmax.f32 %v2015, %v2016
        %v2018 = vrot.slane %v2017, 1
        %v2019 = vmax.f32 %v2017, %v2018
        %v2020 = vsel %vm1935, %v1657, -inf
        %v2021 = vrot.slane %v2020, 4
        %v2022 = vmax.f32 %v2020, %v2021
        %v2023 = vrot.slane %v2022, 2
        %v2024 = vmax.f32 %v2022, %v2023
        %v2025 = vrot.slane %v2024, 1
        %v2026 = vmax.f32 %v2024, %v2025
        %v2027 = vsel %vm1935, %v1665, -inf
        %v2028 = vrot.slane %v2027, 4
        %v2029 = vmax.f32 %v2027, %v2028
        %v2030 = vrot.slane %v2029, 2
        %v2031 = vmax.f32 %v2029, %v2030
        %v2032 = vrot.slane %v2031, 1
        %v2033 = vmax.f32 %v2031, %v2032
        %v2034 = vsel %vm1935, %v1664, -inf
        %v2035 = vrot.slane %v2034, 4
        %v2036 = vmax.f32 %v2034, %v2035
        %v2037 = vrot.slane %v2036, 2
        %v2038 = vmax.f32 %v2036, %v2037
        %v2039 = vrot.slane %v2038, 1
        %v2040 = vmax.f32 %v2038, %v2039
        %v2041 = vsel %vm1935, %v1666, -inf
        %v2042 = vrot.slane %v2041, 4
        %v2043 = vmax.f32 %v2041, %v2042
        %v2044 = vrot.slane %v2043, 2
        %v2045 = vmax.f32 %v2043, %v2044
        %v2046 = vrot.slane %v2045, 1
        %v2047 = vmax.f32 %v2045, %v2046
        %v2048 = vsel %vm1935, %v1674, -inf
        %v2049 = vrot.slane %v2048, 4
        %v2050 = vmax.f32 %v2048, %v2049
        %v2051 = vrot.slane %v2050, 2
        %v2052 = vmax.f32 %v2050, %v2051
        %v2053 = vrot.slane %v2052, 1
        %v2054 = vmax.f32 %v2052, %v2053
        %v2055 = vsel %vm1935, %v1682, -inf
        %v2056 = vrot.slane %v2055, 4
        %v2057 = vmax.f32 %v2055, %v2056
        %v2058 = vrot.slane %v2057, 2
        %v2059 = vmax.f32 %v2057, %v2058
        %v2060 = vrot.slane %v2059, 1
        %v2061 = vmax.f32 %v2059, %v2060
        %v2062 = vsel %vm1935, %v1681, -inf
        %v2063 = vrot.slane %v2062, 4
        %v2064 = vmax.f32 %v2062, %v2063
        %v2065 = vrot.slane %v2064, 2
        %v2066 = vmax.f32 %v2064, %v2065
        %v2067 = vrot.slane %v2066, 1
        %v2068 = vmax.f32 %v2066, %v2067
        %v2069 = vsel %vm1935, %v1683, -inf
        %v2070 = vrot.slane %v2069, 4
        %v2071 = vmax.f32 %v2069, %v2070
        %v2072 = vrot.slane %v2071, 2
        %v2073 = vmax.f32 %v2071, %v2072
        %v2074 = vrot.slane %v2073, 1
        %v2075 = vmax.f32 %v2073, %v2074
        %v2076 = vsel %vm1935, %v1691, -inf
        %v2077 = vrot.slane %v2076, 4
        %v2078 = vmax.f32 %v2076, %v2077
        %v2079 = vrot.slane %v2078, 2
        %v2080 = vmax.f32 %v2078, %v2079
        %v2081 = vrot.slane %v2080, 1
        %v2082 = vmax.f32 %v2080, %v2081
        %v2083 = vsel %vm1935, %v1699, -inf
        %v2084 = vrot.slane %v2083, 4
        %v2085 = vmax.f32 %v2083, %v2084
        %v2086 = vrot.slane %v2085, 2
        %v2087 = vmax.f32 %v2085, %v2086
        %v2088 = vrot.slane %v2087, 1
        %v2089 = vmax.f32 %v2087, %v2088
        %v2090 = vsel %vm1935, %v1698, -inf
        %v2091 = vrot.slane %v2090, 4
        %v2092 = vmax.f32 %v2090, %v2091
        %v2093 = vrot.slane %v2092, 2
        %v2094 = vmax.f32 %v2092, %v2093
        %v2095 = vrot.slane %v2094, 1
        %v2096 = vmax.f32 %v2094, %v2095
        %v2097 = vsel %vm1935, %v1700, -inf
        %v2098 = vrot.slane %v2097, 4
        %v2099 = vmax.f32 %v2097, %v2098
        %v2100 = vrot.slane %v2099, 2
        %v2101 = vmax.f32 %v2099, %v2100
        %v2102 = vrot.slane %v2101, 1
        %v2103 = vmax.f32 %v2101, %v2102
        %v2104 = vsel %vm1935, %v1708, -inf
        %v2105 = vrot.slane %v2104, 4
        %v2106 = vmax.f32 %v2104, %v2105
        %v2107 = vrot.slane %v2106, 2
        %v2108 = vmax.f32 %v2106, %v2107
        %v2109 = vrot.slane %v2108, 1
        %v2110 = vmax.f32 %v2108, %v2109
        %v2111 = vsel %vm1935, %v1716, -inf
        %v2112 = vrot.slane %v2111, 4
        %v2113 = vmax.f32 %v2111, %v2112
        %v2114 = vrot.slane %v2113, 2
        %v2115 = vmax.f32 %v2113, %v2114
        %v2116 = vrot.slane %v2115, 1
        %v2117 = vmax.f32 %v2115, %v2116
        %v2118 = vsel %vm1935, %v1715, -inf
        %v2119 = vrot.slane %v2118, 4
        %v2120 = vmax.f32 %v2118, %v2119
        %v2121 = vrot.slane %v2120, 2
        %v2122 = vmax.f32 %v2120, %v2121
        %v2123 = vrot.slane %v2122, 1
        %v2124 = vmax.f32 %v2122, %v2123
        %v2125 = vsel %vm1935, %v1717, -inf
        %v2126 = vrot.slane %v2125, 4
        %v2127 = vmax.f32 %v2125, %v2126
        %v2128 = vrot.slane %v2127, 2
        %v2129 = vmax.f32 %v2127, %v2128
        %v2130 = vrot.slane %v2129, 1
        %v2131 = vmax.f32 %v2129, %v2130
        %v2132 = vsel %vm1935, %v1725, -inf
        %v2133 = vrot.slane %v2132, 4
        %v2134 = vmax.f32 %v2132, %v2133
        %v2135 = vrot.slane %v2134, 2
        %v2136 = vmax.f32 %v2134, %v2135
        %v2137 = vrot.slane %v2136, 1
        %v2138 = vmax.f32 %v2136, %v2137
        %v2139 = vsel %vm1935, %v1733, -inf
        %v2140 = vrot.slane %v2139, 4
        %v2141 = vmax.f32 %v2139, %v2140
        %v2142 = vrot.slane %v2141, 2
        %v2143 = vmax.f32 %v2141, %v2142
        %v2144 = vrot.slane %v2143, 1
        %v2145 = vmax.f32 %v2143, %v2144
        %v2146 = vsel %vm1935, %v1732, -inf
        %v2147 = vrot.slane %v2146, 4
        %v2148 = vmax.f32 %v2146, %v2147
        %v2149 = vrot.slane %v2148, 2
        %v2150 = vmax.f32 %v2148, %v2149
        %v2151 = vrot.slane %v2150, 1
        %v2152 = vmax.f32 %v2150, %v2151
        %v2153 = vsel %vm1935, %v1734, -inf
        %v2154 = vrot.slane %v2153, 4
        %v2155 = vmax.f32 %v2153, %v2154
        %v2156 = vrot.slane %v2155, 2
        %v2157 = vmax.f32 %v2155, %v2156
        %v2158 = vrot.slane %v2157, 1
        %v2159 = vmax.f32 %v2157, %v2158
        %v2160 = vsel %vm1935, %v1742, -inf
        %v2161 = vrot.slane %v2160, 4
        %v2162 = vmax.f32 %v2160, %v2161
        %v2163 = vrot.slane %v2162, 2
        %v2164 = vmax.f32 %v2162, %v2163
        %v2165 = vrot.slane %v2164, 1
        %v2166 = vmax.f32 %v2164, %v2165
        %v2167 = vsel %vm1935, %v1750, -inf
        %v2168 = vrot.slane %v2167, 4
        %v2169 = vmax.f32 %v2167, %v2168
        %v2170 = vrot.slane %v2169, 2
        %v2171 = vmax.f32 %v2169, %v2170
        %v2172 = vrot.slane %v2171, 1
        %v2173 = vmax.f32 %v2171, %v2172
        %v2174 = vsel %vm1935, %v1749, -inf
        %v2175 = vrot.slane %v2174, 4
        %v2176 = vmax.f32 %v2174, %v2175
        %v2177 = vrot.slane %v2176, 2
        %v2178 = vmax.f32 %v2176, %v2177
        %v2179 = vrot.slane %v2178, 1
        %v2180 = vmax.f32 %v2178, %v2179
        %v2181 = vsel %vm1935, %v1751, -inf
        %v2182 = vrot.slane %v2181, 4
        %v2183 = vmax.f32 %v2181, %v2182
        %v2184 = vrot.slane %v2183, 2
        %v2185 = vmax.f32 %v2183, %v2184
        %v2186 = vrot.slane %v2185, 1
        %v2187 = vmax.f32 %v2185, %v2186
        %v2188 = vsel %vm1935, %v1759, -inf
        %v2189 = vrot.slane %v2188, 4
        %v2190 = vmax.f32 %v2188, %v2189
        %v2191 = vrot.slane %v2190, 2
        %v2192 = vmax.f32 %v2190, %v2191
        %v2193 = vrot.slane %v2192, 1
        %v2194 = vmax.f32 %v2192, %v2193
        %v2195 = vsel %vm1935, %v1767, -inf
        %v2196 = vrot.slane %v2195, 4
        %v2197 = vmax.f32 %v2195, %v2196
        %v2198 = vrot.slane %v2197, 2
        %v2199 = vmax.f32 %v2197, %v2198
        %v2200 = vrot.slane %v2199, 1
        %v2201 = vmax.f32 %v2199, %v2200
        %v2202 = vsel %vm1935, %v1766, -inf
        %v2203 = vrot.slane %v2202, 4
        %v2204 = vmax.f32 %v2202, %v2203
        %v2205 = vrot.slane %v2204, 2
        %v2206 = vmax.f32 %v2204, %v2205
        %v2207 = vrot.slane %v2206, 1
        %v2208 = vmax.f32 %v2206, %v2207
        %v2209 = vsel %vm1935, %v1768, -inf
        %v2210 = vrot.slane %v2209, 4
        %v2211 = vmax.f32 %v2209, %v2210
        %v2212 = vrot.slane %v2211, 2
        %v2213 = vmax.f32 %v2211, %v2212
        %v2214 = vrot.slane %v2213, 1
        %v2215 = vmax.f32 %v2213, %v2214
        %v2216 = vsel %vm1935, %v1776, -inf
        %v2217 = vrot.slane %v2216, 4
        %v2218 = vmax.f32 %v2216, %v2217
        %v2219 = vrot.slane %v2218, 2
        %v2220 = vmax.f32 %v2218, %v2219
        %v2221 = vrot.slane %v2220, 1
        %v2222 = vmax.f32 %v2220, %v2221
        %v2223 = vsel %vm1935, %v1784, -inf
        %v2224 = vrot.slane %v2223, 4
        %v2225 = vmax.f32 %v2223, %v2224
        %v2226 = vrot.slane %v2225, 2
        %v2227 = vmax.f32 %v2225, %v2226
        %v2228 = vrot.slane %v2227, 1
        %v2229 = vmax.f32 %v2227, %v2228
        %v2230 = vsel %vm1935, %v1783, -inf
        %v2231 = vrot.slane %v2230, 4
        %v2232 = vmax.f32 %v2230, %v2231
        %v2233 = vrot.slane %v2232, 2
        %v2234 = vmax.f32 %v2232, %v2233
        %v2235 = vrot.slane %v2234, 1
        %v2236 = vmax.f32 %v2234, %v2235
        %v2237 = vsel %vm1935, %v1785, -inf
        %v2238 = vrot.slane %v2237, 4
        %v2239 = vmax.f32 %v2237, %v2238
        %v2240 = vrot.slane %v2239, 2
        %v2241 = vmax.f32 %v2239, %v2240
        %v2242 = vrot.slane %v2241, 1
        %v2243 = vmax.f32 %v2241, %v2242
        %v2244 = vsel %vm1935, %v1793, -inf
        %v2245 = vrot.slane %v2244, 4
        %v2246 = vmax.f32 %v2244, %v2245
        %v2247 = vrot.slane %v2246, 2
        %v2248 = vmax.f32 %v2246, %v2247
        %v2249 = vrot.slane %v2248, 1
        %v2250 = vmax.f32 %v2248, %v2249
        %v2251 = vsel %vm1935, %v1801, -inf
        %v2252 = vrot.slane %v2251, 4
        %v2253 = vmax.f32 %v2251, %v2252
        %v2254 = vrot.slane %v2253, 2
        %v2255 = vmax.f32 %v2253, %v2254
        %v2256 = vrot.slane %v2255, 1
        %v2257 = vmax.f32 %v2255, %v2256
        %v2258 = vsel %vm1935, %v1800, -inf
        %v2259 = vrot.slane %v2258, 4
        %v2260 = vmax.f32 %v2258, %v2259
        %v2261 = vrot.slane %v2260, 2
        %v2262 = vmax.f32 %v2260, %v2261
        %v2263 = vrot.slane %v2262, 1
        %v2264 = vmax.f32 %v2262, %v2263
        %v2265 = vsel %vm1935, %v1802, -inf
        %v2266 = vrot.slane %v2265, 4
        %v2267 = vmax.f32 %v2265, %v2266
        %v2268 = vrot.slane %v2267, 2
        %v2269 = vmax.f32 %v2267, %v2268
        %v2270 = vrot.slane %v2269, 1
        %v2271 = vmax.f32 %v2269, %v2270
        %v2272 = vsel %vm1935, %v1810, -inf
        %v2273 = vrot.slane %v2272, 4
        %v2274 = vmax.f32 %v2272, %v2273
        %v2275 = vrot.slane %v2274, 2
        %v2276 = vmax.f32 %v2274, %v2275
        %v2277 = vrot.slane %v2276, 1
        %v2278 = vmax.f32 %v2276, %v2277
        %v2279 = vsel %vm1935, %v1818, -inf
        %v2280 = vrot.slane %v2279, 4
        %v2281 = vmax.f32 %v2279, %v2280
        %v2282 = vrot.slane %v2281, 2
        %v2283 = vmax.f32 %v2281, %v2282
        %v2284 = vrot.slane %v2283, 1
        %v2285 = vmax.f32 %v2283, %v2284
        %v2286 = vsel %vm1935, %v1817, -inf
        %v2287 = vrot.slane %v2286, 4
        %v2288 = vmax.f32 %v2286, %v2287
        %v2289 = vrot.slane %v2288, 2
        %v2290 = vmax.f32 %v2288, %v2289
        %v2291 = vrot.slane %v2290, 1
        %v2292 = vmax.f32 %v2290, %v2291
        %v2293 = vsel %vm1935, %v1819, -inf
        %v2294 = vrot.slane %v2293, 4
        %v2295 = vmax.f32 %v2293, %v2294
        %v2296 = vrot.slane %v2295, 2
        %v2297 = vmax.f32 %v2295, %v2296
        %v2298 = vrot.slane %v2297, 1
        %v2299 = vmax.f32 %v2297, %v2298
        %v2300 = vsel %vm1935, %v1827, -inf
        %v2301 = vrot.slane %v2300, 4
        %v2302 = vmax.f32 %v2300, %v2301
        %v2303 = vrot.slane %v2302, 2
        %v2304 = vmax.f32 %v2302, %v2303
        %v2305 = vrot.slane %v2304, 1
        %v2306 = vmax.f32 %v2304, %v2305
        %v2307 = vsel %vm1935, %v1835, -inf
        %v2308 = vrot.slane %v2307, 4
        %v2309 = vmax.f32 %v2307, %v2308
        %v2310 = vrot.slane %v2309, 2
        %v2311 = vmax.f32 %v2309, %v2310
        %v2312 = vrot.slane %v2311, 1
        %v2313 = vmax.f32 %v2311, %v2312
        %v2314 = vsel %vm1935, %v1834, -inf
        %v2315 = vrot.slane %v2314, 4
        %v2316 = vmax.f32 %v2314, %v2315
        %v2317 = vrot.slane %v2316, 2
        %v2318 = vmax.f32 %v2316, %v2317
        %v2319 = vrot.slane %v2318, 1
        %v2320 = vmax.f32 %v2318, %v2319
        %v2321 = vsel %vm1935, %v1836, -inf
        %v2322 = vrot.slane %v2321, 4
        %v2323 = vmax.f32 %v2321, %v2322
        %v2324 = vrot.slane %v2323, 2
        %v2325 = vmax.f32 %v2323, %v2324
        %v2326 = vrot.slane %v2325, 1
        %v2327 = vmax.f32 %v2325, %v2326
        %v2328 = vsel %vm1935, %v1844, -inf
        %v2329 = vrot.slane %v2328, 4
        %v2330 = vmax.f32 %v2328, %v2329
        %v2331 = vrot.slane %v2330, 2
        %v2332 = vmax.f32 %v2330, %v2331
        %v2333 = vrot.slane %v2332, 1
        %v2334 = vmax.f32 %v2332, %v2333
        %v2335 = vsel %vm1935, %v1852, -inf
        %v2336 = vrot.slane %v2335, 4
        %v2337 = vmax.f32 %v2335, %v2336
        %v2338 = vrot.slane %v2337, 2
        %v2339 = vmax.f32 %v2337, %v2338
        %v2340 = vrot.slane %v2339, 1
        %v2341 = vmax.f32 %v2339, %v2340
        %v2342 = vsel %vm1935, %v1851, -inf
        %v2343 = vrot.slane %v2342, 4
        %v2344 = vmax.f32 %v2342, %v2343
        %v2345 = vrot.slane %v2344, 2
        %v2346 = vmax.f32 %v2344, %v2345
        %v2347 = vrot.slane %v2346, 1
        %v2348 = vmax.f32 %v2346, %v2347
        %v2349 = vsel %vm1935, %v1853, -inf
        %v2350 = vrot.slane %v2349, 4
        %v2351 = vmax.f32 %v2349, %v2350
        %v2352 = vrot.slane %v2351, 2
        %v2353 = vmax.f32 %v2351, %v2352
        %v2354 = vrot.slane %v2353, 1
        %v2355 = vmax.f32 %v2353, %v2354
        %v2356 = vsel %vm1935, %v1861, -inf
        %v2357 = vrot.slane %v2356, 4
        %v2358 = vmax.f32 %v2356, %v2357
        %v2359 = vrot.slane %v2358, 2
        %v2360 = vmax.f32 %v2358, %v2359
        %v2361 = vrot.slane %v2360, 1
        %v2362 = vmax.f32 %v2360, %v2361
        %v2363 = vsel %vm1935, %v1869, -inf
        %v2364 = vrot.slane %v2363, 4
        %v2365 = vmax.f32 %v2363, %v2364
        %v2366 = vrot.slane %v2365, 2
        %v2367 = vmax.f32 %v2365, %v2366
        %v2368 = vrot.slane %v2367, 1
        %v2369 = vmax.f32 %v2367, %v2368
        %v2370 = vsel %vm1935, %v1868, -inf
        %v2371 = vrot.slane %v2370, 4
        %v2372 = vmax.f32 %v2370, %v2371
        %v2373 = vrot.slane %v2372, 2
        %v2374 = vmax.f32 %v2372, %v2373
        %v2375 = vrot.slane %v2374, 1
        %v2376 = vmax.f32 %v2374, %v2375
        %v2377 = vsel %vm1935, %v1870, -inf
        %v2378 = vrot.slane %v2377, 4
        %v2379 = vmax.f32 %v2377, %v2378
        %v2380 = vrot.slane %v2379, 2
        %v2381 = vmax.f32 %v2379, %v2380
        %v2382 = vrot.slane %v2381, 1
        %v2383 = vmax.f32 %v2381, %v2382
        %v2384 = vtanh.pop %v1942
        %v2385 = vtanh.pop %v1949
        %v2386 = vtanh.pop %v1956
        %v2387 = vtanh.pop %v1963
        %v2388 = vtanh.pop %v1970
        %v2389 = vtanh.pop %v1977
        %v2390 = vtanh.pop %v1984
        %v2391 = vtanh.pop %v1991
        %v2392 = vtanh.pop %v1998
        %v2393 = vtanh.pop %v2005
        %v2394 = vtanh.pop %v2012
        %v2395 = vtanh.pop %v2019
        %v2396 = vtanh.pop %v2026
        %v2397 = vtanh.pop %v2033
        %v2398 = vtanh.pop %v2040
        %v2399 = vtanh.pop %v2047
        %v2400 = vtanh.pop %v2054
        %v2401 = vtanh.pop %v2061
        %v2402 = vtanh.pop %v2068
        %v2403 = vtanh.pop %v2075
        %v2404 = vtanh.pop %v2082
        %v2405 = vtanh.pop %v2089
        %v2406 = vtanh.pop %v2096
        %v2407 = vtanh.pop %v2103
        %v2408 = vtanh.pop %v2110
        %v2409 = vtanh.pop %v2117
        %v2410 = vtanh.pop %v2124
        %v2411 = vtanh.pop %v2131
        %v2412 = vtanh.pop %v2138
        %v2413 = vtanh.pop %v2145
        %v2414 = vtanh.pop %v2152
        %v2415 = vtanh.pop %v2159
        %v2416 = vtanh.pop %v2166
        %v2417 = vtanh.pop %v2173
        %v2418 = vtanh.pop %v2180
        %v2419 = vtanh.pop %v2187
        %v2420 = vtanh.pop %v2194
        %v2421 = vtanh.pop %v2201
        %v2422 = vtanh.pop %v2208
        %v2423 = vtanh.pop %v2215
        %v2424 = vtanh.pop %v2222
        %v2425 = vtanh.pop %v2229
        %v2426 = vtanh.pop %v2236
        %v2427 = vtanh.pop %v2243
        %v2428 = vtanh.pop %v2250
        %v2429 = vtanh.pop %v2257
        %v2430 = vtanh.pop %v2264
        %v2431 = vtanh.pop %v2271
        %v2432 = vtanh.pop %v2278
        %v2433 = vtanh.pop %v2285
        %v2434 = vtanh.pop %v2292
        %v2435 = vtanh.pop %v2299
        %v2436 = vtanh.pop %v2306
        %v2437 = vtanh.pop %v2313
        %v2438 = vtanh.pop %v2320
        %v2439 = vtanh.pop %v2327
        %v2440 = vtanh.pop %v2334
        %v2441 = vtanh.pop %v2341
        %v2442 = vtanh.pop %v2348
        %v2443 = vtanh.pop %v2355
        %v2444 = vtanh.pop %v2362
        %v2445 = vtanh.pop %v2369
        %v2446 = vtanh.pop %v2376
        %v2447 = vtanh.pop %v2383
        %v2448 = vpack.c.bf16 %v2384, %v2384
        %v2449 = vpack.c.bf16 %v2385, %v2385
        %v2450 = vpack.c.bf16 %v2386, %v2386
        %v2451 = vpack.c.bf16 %v2387, %v2387
        %v2452 = vpack.c.bf16 %v2388, %v2388
        %v2453 = vpack.c.bf16 %v2389, %v2389
        %v2454 = vpack.c.bf16 %v2390, %v2390
        %v2455 = vpack.c.bf16 %v2391, %v2391
        %v2456 = vpack.c.bf16 %v2392, %v2392
        %v2457 = vpack.c.bf16 %v2393, %v2393
        %v2458 = vpack.c.bf16 %v2394, %v2394
        %v2459 = vpack.c.bf16 %v2395, %v2395
        %v2460 = vpack.c.bf16 %v2396, %v2396
        %v2461 = vpack.c.bf16 %v2397, %v2397
        %v2462 = vpack.c.bf16 %v2398, %v2398
        %v2463 = vpack.c.bf16 %v2399, %v2399
        %v2464 = vpack.c.bf16 %v2400, %v2400
        %v2465 = vpack.c.bf16 %v2401, %v2401
        %v2466 = vpack.c.bf16 %v2402, %v2402
        %v2467 = vpack.c.bf16 %v2403, %v2403
        %v2468 = vpack.c.bf16 %v2404, %v2404
        %v2469 = vpack.c.bf16 %v2405, %v2405
        %v2470 = vpack.c.bf16 %v2406, %v2406
        %v2471 = vpack.c.bf16 %v2407, %v2407
        %v2472 = vpack.c.bf16 %v2408, %v2408
        %v2473 = vpack.c.bf16 %v2409, %v2409
        %v2474 = vpack.c.bf16 %v2410, %v2410
        %v2475 = vpack.c.bf16 %v2411, %v2411
        %v2476 = vpack.c.bf16 %v2412, %v2412
        %v2477 = vpack.c.bf16 %v2413, %v2413
        %v2478 = vpack.c.bf16 %v2414, %v2414
        %v2479 = vpack.c.bf16 %v2415, %v2415
        %v2480 = vpack.c.bf16 %v2416, %v2416
        %v2481 = vpack.c.bf16 %v2417, %v2417
        %v2482 = vpack.c.bf16 %v2418, %v2418
        %v2483 = vpack.c.bf16 %v2419, %v2419
        %v2484 = vpack.c.bf16 %v2420, %v2420
        %v2485 = vpack.c.bf16 %v2421, %v2421
        %v2486 = vpack.c.bf16 %v2422, %v2422
        %v2487 = vpack.c.bf16 %v2423, %v2423
        %v2488 = vpack.c.bf16 %v2424, %v2424
        %v2489 = vpack.c.bf16 %v2425, %v2425
        %v2490 = vpack.c.bf16 %v2426, %v2426
        %v2491 = vpack.c.bf16 %v2427, %v2427
        %v2492 = vpack.c.bf16 %v2428, %v2428
        %v2493 = vpack.c.bf16 %v2429, %v2429
        %v2494 = vpack.c.bf16 %v2430, %v2430
        %v2495 = vpack.c.bf16 %v2431, %v2431
        %v2496 = vpack.c.bf16 %v2432, %v2432
        %v2497 = vpack.c.bf16 %v2433, %v2433
        %v2498 = vpack.c.bf16 %v2434, %v2434
        %v2499 = vpack.c.bf16 %v2435, %v2435
        %v2500 = vpack.c.bf16 %v2436, %v2436
        %v2501 = vpack.c.bf16 %v2437, %v2437
        %v2502 = vpack.c.bf16 %v2438, %v2438
        %v2503 = vpack.c.bf16 %v2439, %v2439
        %v2504 = vpack.c.bf16 %v2440, %v2440
        %v2505 = vpack.c.bf16 %v2441, %v2441
        %v2506 = vpack.c.bf16 %v2442, %v2442
        %v2507 = vpack.c.bf16 %v2443, %v2443
        %v2508 = vpack.c.bf16 %v2444, %v2444
        %v2509 = vpack.c.bf16 %v2445, %v2445
        %v2510 = vpack.c.bf16 %v2446, %v2446
        %v2511 = vpack.c.bf16 %v2447, %v2447
        %v2512 = vld [vmem:[#allocation3] sm:$0xf]
        %v2513 = vld [vmem:[#allocation3 + $0x4] sm:$0xf]
        %v2514 = vld [vmem:[#allocation3 + $0x8] sm:$0xf]
        %v2515 = vld [vmem:[#allocation3 + $0xc] sm:$0xf]
        %v2516 = vld [vmem:[#allocation3 + $0x10] sm:$0xf]
        %v2517 = vld [vmem:[#allocation3 + $0x14] sm:$0xf]
        %v2518 = vld [vmem:[#allocation3 + $0x18] sm:$0xf]
        %v2519 = vld [vmem:[#allocation3 + $0x1c] sm:$0xf]
        %v2520 = vld [vmem:[#allocation3 + $0x20] sm:$0xf]
        %v2521 = vld [vmem:[#allocation3 + $0x24] sm:$0xf]
        %v2522 = vld [vmem:[#allocation3 + $0x28] sm:$0xf]
        %v2523 = vld [vmem:[#allocation3 + $0x2c] sm:$0xf]
        %v2524 = vld [vmem:[#allocation3 + $0x30] sm:$0xf]
        %v2525 = vld [vmem:[#allocation3 + $0x34] sm:$0xf]
        %v2526 = vld [vmem:[#allocation3 + $0x38] sm:$0xf]
        %v2527 = vld [vmem:[#allocation3 + $0x3c] sm:$0xf]
        %v2592 = vunpack.c.l.b16 %v2448
        %v2593 = vunpack.c.l.b16 %v2449
        %v2594 = vunpack.c.l.b16 %v2450
        %v2595 = vunpack.c.l.b16 %v2451
        %v2596 = vunpack.c.l.b16 %v2452
        %v2597 = vunpack.c.l.b16 %v2453
        %v2598 = vunpack.c.l.b16 %v2454
        %v2599 = vunpack.c.l.b16 %v2455
        %v2600 = vunpack.c.l.b16 %v2456
        %v2601 = vunpack.c.l.b16 %v2457
        %v2602 = vunpack.c.l.b16 %v2458
        %v2603 = vunpack.c.l.b16 %v2459
        %v2604 = vunpack.c.l.b16 %v2460
        %v2605 = vunpack.c.l.b16 %v2461
        %v2606 = vunpack.c.l.b16 %v2462
        %v2607 = vunpack.c.l.b16 %v2463
        %v2608 = vunpack.c.l.b16 %v2464
        %v2609 = vunpack.c.l.b16 %v2465
        %v2610 = vunpack.c.l.b16 %v2466
        %v2611 = vunpack.c.l.b16 %v2467
        %v2612 = vunpack.c.l.b16 %v2468
        %v2613 = vunpack.c.l.b16 %v2469
        %v2614 = vunpack.c.l.b16 %v2470
        %v2615 = vunpack.c.l.b16 %v2471
        %v2616 = vunpack.c.l.b16 %v2472
        %v2617 = vunpack.c.l.b16 %v2473
        %v2618 = vunpack.c.l.b16 %v2474
        %v2619 = vunpack.c.l.b16 %v2475
        %v2620 = vunpack.c.l.b16 %v2476
        %v2621 = vunpack.c.l.b16 %v2477
        %v2622 = vunpack.c.l.b16 %v2478
        %v2623 = vunpack.c.l.b16 %v2479
        %v2624 = vunpack.c.l.b16 %v2480
        %v2625 = vunpack.c.l.b16 %v2481
        %v2626 = vunpack.c.l.b16 %v2482
        %v2627 = vunpack.c.l.b16 %v2483
        %v2628 = vunpack.c.l.b16 %v2484
        %v2629 = vunpack.c.l.b16 %v2485
        %v2630 = vunpack.c.l.b16 %v2486
        %v2631 = vunpack.c.l.b16 %v2487
        %v2632 = vunpack.c.l.b16 %v2488
        %v2633 = vunpack.c.l.b16 %v2489
        %v2634 = vunpack.c.l.b16 %v2490
        %v2635 = vunpack.c.l.b16 %v2491
        %v2636 = vunpack.c.l.b16 %v2492
        %v2637 = vunpack.c.l.b16 %v2493
        %v2638 = vunpack.c.l.b16 %v2494
        %v2639 = vunpack.c.l.b16 %v2495
        %v2640 = vunpack.c.l.b16 %v2496
        %v2641 = vunpack.c.l.b16 %v2497
        %v2642 = vunpack.c.l.b16 %v2498
        %v2643 = vunpack.c.l.b16 %v2499
        %v2644 = vunpack.c.l.b16 %v2500
        %v2645 = vunpack.c.l.b16 %v2501
        %v2646 = vunpack.c.l.b16 %v2502
        %v2647 = vunpack.c.l.b16 %v2503
        %v2648 = vunpack.c.l.b16 %v2504
        %v2649 = vunpack.c.l.b16 %v2505
        %v2650 = vunpack.c.l.b16 %v2506
        %v2651 = vunpack.c.l.b16 %v2507
        %v2652 = vunpack.c.l.b16 %v2508
        %v2653 = vunpack.c.l.b16 %v2509
        %v2654 = vunpack.c.l.b16 %v2510
        %v2655 = vunpack.c.l.b16 %v2511
        %vm2656 = vcmask 1041409
        %v2657 = vsel %vm2656, %v2593, %v2592
        %vm2658 = vcmask 1042434
        %v2659 = vsel %vm2658, %v2594, %v2657
        %vm2660 = vcmask 1043459
        %v2661 = vsel %vm2660, %v2595, %v2659
        %vm2662 = vcmask 1044484
        %v2663 = vsel %vm2662, %v2596, %v2661
        %vm2664 = vcmask 1045509
        %v2665 = vsel %vm2664, %v2597, %v2663
        %vm2666 = vcmask 1046534
        %v2667 = vsel %vm2666, %v2598, %v2665
        %vm2668 = vcmask 1047559
        %v2669 = vsel %vm2668, %v2599, %v2667
        %v2670 = vsel %vm2656, %v2601, %v2600
        %v2671 = vsel %vm2658, %v2602, %v2670
        %v2672 = vsel %vm2660, %v2603, %v2671
        %v2673 = vsel %vm2662, %v2604, %v2672
        %v2674 = vsel %vm2664, %v2605, %v2673
        %v2675 = vsel %vm2666, %v2606, %v2674
        %v2676 = vsel %vm2668, %v2607, %v2675
        %v2677 = vsel %vm2656, %v2609, %v2608
        %v2678 = vsel %vm2658, %v2610, %v2677
        %v2679 = vsel %vm2660, %v2611, %v2678
        %v2680 = vsel %vm2662, %v2612, %v2679
        %v2681 = vsel %vm2664, %v2613, %v2680
        %v2682 = vsel %vm2666, %v2614, %v2681
        %v2683 = vsel %vm2668, %v2615, %v2682
        %v2684 = vsel %vm2656, %v2617, %v2616
        %v2685 = vsel %vm2658, %v2618, %v2684
        %v2686 = vsel %vm2660, %v2619, %v2685
        %v2687 = vsel %vm2662, %v2620, %v2686
        %v2688 = vsel %vm2664, %v2621, %v2687
        %v2689 = vsel %vm2666, %v2622, %v2688
        %v2690 = vsel %vm2668, %v2623, %v2689
        %v2691 = vsel %vm2656, %v2625, %v2624
        %v2692 = vsel %vm2658, %v2626, %v2691
        %v2693 = vsel %vm2660, %v2627, %v2692
        %v2694 = vsel %vm2662, %v2628, %v2693
        %v2695 = vsel %vm2664, %v2629, %v2694
        %v2696 = vsel %vm2666, %v2630, %v2695
        %v2697 = vsel %vm2668, %v2631, %v2696
        %v2698 = vsel %vm2656, %v2633, %v2632
        %v2699 = vsel %vm2658, %v2634, %v2698
        %v2700 = vsel %vm2660, %v2635, %v2699
        %v2701 = vsel %vm2662, %v2636, %v2700
        %v2702 = vsel %vm2664, %v2637, %v2701
        %v2703 = vsel %vm2666, %v2638, %v2702
        %v2704 = vsel %vm2668, %v2639, %v2703
        %v2705 = vsel %vm2656, %v2641, %v2640
        %v2706 = vsel %vm2658, %v2642, %v2705
        %v2707 = vsel %vm2660, %v2643, %v2706
        %v2708 = vsel %vm2662, %v2644, %v2707
        %v2709 = vsel %vm2664, %v2645, %v2708
        %v2710 = vsel %vm2666, %v2646, %v2709
        %v2711 = vsel %vm2668, %v2647, %v2710
        %v2712 = vsel %vm2656, %v2649, %v2648
        %v2713 = vsel %vm2658, %v2650, %v2712
        %v2714 = vsel %vm2660, %v2651, %v2713
        %v2715 = vsel %vm2662, %v2652, %v2714
        %v2716 = vsel %vm2664, %v2653, %v2715
        %v2717 = vsel %vm2666, %v2654, %v2716
        %v2718 = vsel %vm2668, %v2655, %v2717
        %v2719 = vpack.c.b16 %v2676, %v2669
        %v2720 = vpack.c.b16 %v2690, %v2683
        %v2721 = vpack.c.b16 %v2704, %v2697
        %v2722 = vpack.c.b16 %v2718, %v2711
        %v2743 = vunpack.c.l.b16 %v2512
        %v2744 = vunpack.c.l.b16 %v2513
        %v2745 = vunpack.c.l.b16 %v2514
        %v2746 = vunpack.c.l.b16 %v2515
        %v2747 = vunpack.c.l.b16 %v2516
        %v2748 = vunpack.c.l.b16 %v2517
        %v2749 = vunpack.c.l.b16 %v2518
        %v2750 = vunpack.c.l.b16 %v2519
        %v2751 = vunpack.c.l.b16 %v2520
        %v2752 = vunpack.c.l.b16 %v2521
        %v2753 = vunpack.c.l.b16 %v2522
        %v2754 = vunpack.c.l.b16 %v2523
        %v2755 = vunpack.c.l.b16 %v2524
        %v2756 = vunpack.c.l.b16 %v2525
        %v2757 = vunpack.c.l.b16 %v2526
        %v2758 = vunpack.c.l.b16 %v2527
        %v2759 = vpack.c.b16 %v2744, %v2743
        %v2760 = vpack.c.b16 %v2746, %v2745
        %v2761 = vpack.c.b16 %v2748, %v2747
        %v2762 = vpack.c.b16 %v2750, %v2749
        %v2763 = vpack.c.b16 %v2752, %v2751
        %v2764 = vpack.c.b16 %v2754, %v2753
        %v2765 = vpack.c.b16 %v2756, %v2755
        %v2766 = vpack.c.b16 %v2758, %v2757
        %2775 = vmatprep.subr.bf16.mxu0 0
        %2776 = vmatpush1.bf16.msra.mxu0 %v2766
        %2777 = vmatprep.subr.bf16.mxu0 0
        %2778 = vmatpush1.bf16.msra.mxu0 %v2765
        %2779 = vmatprep.subr.bf16.mxu0 0
        %2780 = vmatpush1.bf16.msra.mxu0 %v2764
        %2781 = vmatprep.subr.bf16.mxu0 0
        %2782 = vmatpush1.bf16.msra.mxu0 %v2763
        %2783 = vmatprep.subr.bf16.mxu0 0
        %2784 = vmatpush1.bf16.msra.mxu0 %v2762
        %2785 = vmatprep.subr.bf16.mxu0 0
        %2786 = vmatpush1.bf16.msra.mxu0 %v2761
        %2787 = vmatprep.subr.bf16.mxu0 0
        %2788 = vmatpush1.bf16.msra.mxu0 %v2760
        %2789 = vmatprep.subr.bf16.mxu0 0
        %2790 = vmatpush1.bf16.msra.mxu0 %v2759
        %2791 = vmatprep.subr.bf16.mxu0 0
        %2792 = vmatpush2.bf16.msra.mxu0 0
        %2793 = vmatprep.subr.bf16.mxu0 0
        %2794 = vmatpush2.bf16.msra.mxu0 0
        %2795 = vmatprep.subr.bf16.mxu0 0
        %2796 = vmatpush2.bf16.msra.mxu0 0
        %2797 = vmatprep.subr.bf16.mxu0 0
        %2798 = vmatpush2.bf16.msra.mxu0 0
        %2799 = vmatprep.subr.bf16.mxu0 0
        %2800 = vmatpush2.bf16.msra.mxu0 0
        %2801 = vmatprep.subr.bf16.mxu0 0
        %2802 = vmatpush2.bf16.msra.mxu0 0
        %2803 = vmatprep.subr.bf16.mxu0 0
        %2804 = vmatpush2.bf16.msra.mxu0 0
        %2805 = vmatprep.subr.bf16.mxu0 0
        %2806 = vmatpush2.bf16.msra.mxu0 0
        %2807 = vmatprep.mubr.bf16.mxu0 0
        %2808 = vmatmul.mubr.bf16.gmra.mxu0 %v2719
        %v2809 = vpop.f32.mrf.mxu0
        %v2810 = vadd.f32 0.0, %v2809
        %v2811 = vpop.f32.mrf.mxu0
        %v2812 = vpop.f32.mrf.mxu0
        %v2813 = vadd.f32 0.0, %v2812
        %v2814 = vpop.f32.mrf.mxu0
        %2815 = vmatprep.mubr.bf16.mxu0 0
        %2816 = vmatmul.mubr.bf16.gmra.mxu0 %v2720
        %v2817 = vpop.f32.mrf.mxu0
        %v2818 = vadd.f32 0.0, %v2817
        %v2819 = vpop.f32.mrf.mxu0
        %v2820 = vpop.f32.mrf.mxu0
        %v2821 = vadd.f32 0.0, %v2820
        %v2822 = vpop.f32.mrf.mxu0
        %2823 = vmatprep.mubr.bf16.mxu0 0
        %2824 = vmatmul.mubr.bf16.gmra.mxu0 %v2721
        %v2825 = vpop.f32.mrf.mxu0
        %v2826 = vadd.f32 0.0, %v2825
        %v2827 = vpop.f32.mrf.mxu0
        %v2828 = vpop.f32.mrf.mxu0
        %v2829 = vadd.f32 0.0, %v2828
        %v2830 = vpop.f32.mrf.mxu0
        %2831 = vmatprep.mubr.bf16.mxu0 0
        %2832 = vmatmul.mubr.bf16.gmra.mxu0 %v2722
        %v2833 = vpop.f32.mrf.mxu0
        %v2834 = vadd.f32 0.0, %v2833
        %v2835 = vpop.f32.mrf.mxu0
        %v2836 = vpop.f32.mrf.mxu0
        %v2837 = vadd.f32 0.0, %v2836
        %v2838 = vpop.f32.mrf.mxu0
        %2839 = vdwg.mxu0
        %s2840 = scalar_lea.vmem [#allocation3], 64
        %v2841 = vld [vmem:[%s2840] sm:$0xf]
        %v2842 = vld [vmem:[%s2840 + $0x4] sm:$0xf]
        %v2843 = vld [vmem:[%s2840 + $0x8] sm:$0xf]
        %v2844 = vld [vmem:[%s2840 + $0xc] sm:$0xf]
        %v2845 = vld [vmem:[%s2840 + $0x10] sm:$0xf]
        %v2846 = vld [vmem:[%s2840 + $0x14] sm:$0xf]
        %v2847 = vld [vmem:[%s2840 + $0x18] sm:$0xf]
        %v2848 = vld [vmem:[%s2840 + $0x1c] sm:$0xf]
        %v2849 = vld [vmem:[%s2840 + $0x20] sm:$0xf]
        %v2850 = vld [vmem:[%s2840 + $0x24] sm:$0xf]
        %v2851 = vld [vmem:[%s2840 + $0x28] sm:$0xf]
        %v2852 = vld [vmem:[%s2840 + $0x2c] sm:$0xf]
        %v2853 = vld [vmem:[%s2840 + $0x30] sm:$0xf]
        %v2854 = vld [vmem:[%s2840 + $0x34] sm:$0xf]
        %v2855 = vld [vmem:[%s2840 + $0x38] sm:$0xf]
        %v2856 = vld [vmem:[%s2840 + $0x3c] sm:$0xf]
        %v2873 = vunpack.c.l.b16 %v2841
        %v2874 = vunpack.c.l.b16 %v2842
        %v2875 = vunpack.c.l.b16 %v2843
        %v2876 = vunpack.c.l.b16 %v2844
        %v2877 = vunpack.c.l.b16 %v2845
        %v2878 = vunpack.c.l.b16 %v2846
        %v2879 = vunpack.c.l.b16 %v2847
        %v2880 = vunpack.c.l.b16 %v2848
        %v2881 = vunpack.c.l.b16 %v2849
        %v2882 = vunpack.c.l.b16 %v2850
        %v2883 = vunpack.c.l.b16 %v2851
        %v2884 = vunpack.c.l.b16 %v2852
        %v2885 = vunpack.c.l.b16 %v2853
        %v2886 = vunpack.c.l.b16 %v2854
        %v2887 = vunpack.c.l.b16 %v2855
        %v2888 = vunpack.c.l.b16 %v2856
        %v2889 = vpack.c.b16 %v2874, %v2873
        %v2890 = vpack.c.b16 %v2876, %v2875
        %v2891 = vpack.c.b16 %v2878, %v2877
        %v2892 = vpack.c.b16 %v2880, %v2879
        %v2893 = vpack.c.b16 %v2882, %v2881
        %v2894 = vpack.c.b16 %v2884, %v2883
        %v2895 = vpack.c.b16 %v2886, %v2885
        %v2896 = vpack.c.b16 %v2888, %v2887
        %2905 = vmatprep.subr.bf16.mxu0 0
        %2906 = vmatpush1.bf16.msra.mxu0 %v2896
        %2907 = vmatprep.subr.bf16.mxu0 0
        %2908 = vmatpush1.bf16.msra.mxu0 %v2895
        %2909 = vmatprep.subr.bf16.mxu0 0
        %2910 = vmatpush1.bf16.msra.mxu0 %v2894
        %2911 = vmatprep.subr.bf16.mxu0 0
        %2912 = vmatpush1.bf16.msra.mxu0 %v2893
        %2913 = vmatprep.subr.bf16.mxu0 0
        %2914 = vmatpush1.bf16.msra.mxu0 %v2892
        %2915 = vmatprep.subr.bf16.mxu0 0
        %2916 = vmatpush1.bf16.msra.mxu0 %v2891
        %2917 = vmatprep.subr.bf16.mxu0 0
        %2918 = vmatpush1.bf16.msra.mxu0 %v2890
        %2919 = vmatprep.subr.bf16.mxu0 0
        %2920 = vmatpush1.bf16.msra.mxu0 %v2889
        %2921 = vmatprep.subr.bf16.mxu0 0
        %2922 = vmatpush2.bf16.msra.mxu0 0
        %2923 = vmatprep.subr.bf16.mxu0 0
        %2924 = vmatpush2.bf16.msra.mxu0 0
        %2925 = vmatprep.subr.bf16.mxu0 0
        %2926 = vmatpush2.bf16.msra.mxu0 0
        %2927 = vmatprep.subr.bf16.mxu0 0
        %2928 = vmatpush2.bf16.msra.mxu0 0
        %2929 = vmatprep.subr.bf16.mxu0 0
        %2930 = vmatpush2.bf16.msra.mxu0 0
        %2931 = vmatprep.subr.bf16.mxu0 0
        %2932 = vmatpush2.bf16.msra.mxu0 0
        %2933 = vmatprep.subr.bf16.mxu0 0
        %2934 = vmatpush2.bf16.msra.mxu0 0
        %2935 = vmatprep.subr.bf16.mxu0 0
        %2936 = vmatpush2.bf16.msra.mxu0 0
        %2937 = vmatprep.mubr.bf16.mxu0 0
        %2938 = vmatmul.mubr.bf16.gmra.mxu0 %v2719
        %v2939 = vpop.f32.mrf.mxu0
        %v2940 = vadd.f32 0.0, %v2939
        %v2941 = vpop.f32.mrf.mxu0
        %v2942 = vpop.f32.mrf.mxu0
        %v2943 = vadd.f32 0.0, %v2942
        %v2944 = vpop.f32.mrf.mxu0
        %2945 = vmatprep.mubr.bf16.mxu0 0
        %2946 = vmatmul.mubr.bf16.gmra.mxu0 %v2720
        %v2947 = vpop.f32.mrf.mxu0
        %v2948 = vadd.f32 0.0, %v2947
        %v2949 = vpop.f32.mrf.mxu0
        %v2950 = vpop.f32.mrf.mxu0
        %v2951 = vadd.f32 0.0, %v2950
        %v2952 = vpop.f32.mrf.mxu0
        %2953 = vmatprep.mubr.bf16.mxu0 0
        %2954 = vmatmul.mubr.bf16.gmra.mxu0 %v2721
        %v2955 = vpop.f32.mrf.mxu0
        %v2956 = vadd.f32 0.0, %v2955
        %v2957 = vpop.f32.mrf.mxu0
        %v2958 = vpop.f32.mrf.mxu0
        %v2959 = vadd.f32 0.0, %v2958
        %v2960 = vpop.f32.mrf.mxu0
        %2961 = vmatprep.mubr.bf16.mxu0 0
        %2962 = vmatmul.mubr.bf16.gmra.mxu0 %v2722
        %v2963 = vpop.f32.mrf.mxu0
        %v2964 = vadd.f32 0.0, %v2963
        %v2965 = vpop.f32.mrf.mxu0
        %v2966 = vpop.f32.mrf.mxu0
        %v2967 = vadd.f32 0.0, %v2966
        %v2968 = vpop.f32.mrf.mxu0
        %2969 = vdwg.mxu0
        %s2970 = scalar_lea.vmem [#allocation3], 128
        %v2971 = vld [vmem:[%s2970] sm:$0xf]
        %v2972 = vld [vmem:[%s2970 + $0x4] sm:$0xf]
        %v2973 = vld [vmem:[%s2970 + $0x8] sm:$0xf]
        %v2974 = vld [vmem:[%s2970 + $0xc] sm:$0xf]
        %v2975 = vld [vmem:[%s2970 + $0x10] sm:$0xf]
        %v2976 = vld [vmem:[%s2970 + $0x14] sm:$0xf]
        %v2977 = vld [vmem:[%s2970 + $0x18] sm:$0xf]
        %v2978 = vld [vmem:[%s2970 + $0x1c] sm:$0xf]
        %v2979 = vld [vmem:[%s2970 + $0x20] sm:$0xf]
        %v2980 = vld [vmem:[%s2970 + $0x24] sm:$0xf]
        %v2981 = vld [vmem:[%s2970 + $0x28] sm:$0xf]
        %v2982 = vld [vmem:[%s2970 + $0x2c] sm:$0xf]
        %v2983 = vld [vmem:[%s2970 + $0x30] sm:$0xf]
        %v2984 = vld [vmem:[%s2970 + $0x34] sm:$0xf]
        %v2985 = vld [vmem:[%s2970 + $0x38] sm:$0xf]
        %v2986 = vld [vmem:[%s2970 + $0x3c] sm:$0xf]
        %v3003 = vunpack.c.l.b16 %v2971
        %v3004 = vunpack.c.l.b16 %v2972
        %v3005 = vunpack.c.l.b16 %v2973
        %v3006 = vunpack.c.l.b16 %v2974
        %v3007 = vunpack.c.l.b16 %v2975
        %v3008 = vunpack.c.l.b16 %v2976
        %v3009 = vunpack.c.l.b16 %v2977
        %v3010 = vunpack.c.l.b16 %v2978
        %v3011 = vunpack.c.l.b16 %v2979
        %v3012 = vunpack.c.l.b16 %v2980
        %v3013 = vunpack.c.l.b16 %v2981
        %v3014 = vunpack.c.l.b16 %v2982
        %v3015 = vunpack.c.l.b16 %v2983
        %v3016 = vunpack.c.l.b16 %v2984
        %v3017 = vunpack.c.l.b16 %v2985
        %v3018 = vunpack.c.l.b16 %v2986
        %v3019 = vpack.c.b16 %v3004, %v3003
        %v3020 = vpack.c.b16 %v3006, %v3005
        %v3021 = vpack.c.b16 %v3008, %v3007
        %v3022 = vpack.c.b16 %v3010, %v3009
        %v3023 = vpack.c.b16 %v3012, %v3011
        %v3024 = vpack.c.b16 %v3014, %v3013
        %v3025 = vpack.c.b16 %v3016, %v3015
        %v3026 = vpack.c.b16 %v3018, %v3017
        %3035 = vmatprep.subr.bf16.mxu0 0
        %3036 = vmatpush1.bf16.msra.mxu0 %v3026
        %3037 = vmatprep.subr.bf16.mxu0 0
        %3038 = vmatpush1.bf16.msra.mxu0 %v3025
        %3039 = vmatprep.subr.bf16.mxu0 0
        %3040 = vmatpush1.bf16.msra.mxu0 %v3024
        %3041 = vmatprep.subr.bf16.mxu0 0
        %3042 = vmatpush1.bf16.msra.mxu0 %v3023
        %3043 = vmatprep.subr.bf16.mxu0 0
        %3044 = vmatpush1.bf16.msra.mxu0 %v3022
        %3045 = vmatprep.subr.bf16.mxu0 0
        %3046 = vmatpush1.bf16.msra.mxu0 %v3021
        %3047 = vmatprep.subr.bf16.mxu0 0
        %3048 = vmatpush1.bf16.msra.mxu0 %v3020
        %3049 = vmatprep.subr.bf16.mxu0 0
        %3050 = vmatpush1.bf16.msra.mxu0 %v3019
        %3051 = vmatprep.subr.bf16.mxu0 0
        %3052 = vmatpush2.bf16.msra.mxu0 0
        %3053 = vmatprep.subr.bf16.mxu0 0
        %3054 = vmatpush2.bf16.msra.mxu0 0
        %3055 = vmatprep.subr.bf16.mxu0 0
        %3056 = vmatpush2.bf16.msra.mxu0 0
        %3057 = vmatprep.subr.bf16.mxu0 0
        %3058 = vmatpush2.bf16.msra.mxu0 0
        %3059 = vmatprep.subr.bf16.mxu0 0
        %3060 = vmatpush2.bf16.msra.mxu0 0
        %3061 = vmatprep.subr.bf16.mxu0 0
        %3062 = vmatpush2.bf16.msra.mxu0 0
        %3063 = vmatprep.subr.bf16.mxu0 0
        %3064 = vmatpush2.bf16.msra.mxu0 0
        %3065 = vmatprep.subr.bf16.mxu0 0
        %3066 = vmatpush2.bf16.msra.mxu0 0
        %3067 = vmatprep.mubr.bf16.mxu0 0
        %3068 = vmatmul.mubr.bf16.gmra.mxu0 %v2719
        %v3069 = vpop.f32.mrf.mxu0
        %v3070 = vadd.f32 0.0, %v3069
        %v3071 = vpop.f32.mrf.mxu0
        %v3072 = vpop.f32.mrf.mxu0
        %v3073 = vadd.f32 0.0, %v3072
        %v3074 = vpop.f32.mrf.mxu0
        %3075 = vmatprep.mubr.bf16.mxu0 0
        %3076 = vmatmul.mubr.bf16.gmra.mxu0 %v2720
        %v3077 = vpop.f32.mrf.mxu0
        %v3078 = vadd.f32 0.0, %v3077
        %v3079 = vpop.f32.mrf.mxu0
        %v3080 = vpop.f32.mrf.mxu0
        %v3081 = vadd.f32 0.0, %v3080
        %v3082 = vpop.f32.mrf.mxu0
        %3083 = vmatprep.mubr.bf16.mxu0 0
        %3084 = vmatmul.mubr.bf16.gmra.mxu0 %v2721
        %v3085 = vpop.f32.mrf.mxu0
        %v3086 = vadd.f32 0.0, %v3085
        %v3087 = vpop.f32.mrf.mxu0
        %v3088 = vpop.f32.mrf.mxu0
        %v3089 = vadd.f32 0.0, %v3088
        %v3090 = vpop.f32.mrf.mxu0
        %3091 = vmatprep.mubr.bf16.mxu0 0
        %3092 = vmatmul.mubr.bf16.gmra.mxu0 %v2722
        %v3093 = vpop.f32.mrf.mxu0
        %v3094 = vadd.f32 0.0, %v3093
        %v3095 = vpop.f32.mrf.mxu0
        %v3096 = vpop.f32.mrf.mxu0
        %v3097 = vadd.f32 0.0, %v3096
        %v3098 = vpop.f32.mrf.mxu0
        %3099 = vdwg.mxu0
        %v3100 = vrot.slane %v2810, 7
        %v3101 = vrot.slane %v2813, 7
        %v3102 = vrot.slane %v2818, 7
        %v3103 = vrot.slane %v2821, 7
        %v3104 = vrot.slane %v2826, 7
        %v3105 = vrot.slane %v2829, 7
        %v3106 = vrot.slane %v2834, 7
        %v3107 = vrot.slane %v2837, 7
        %v3108 = vsel %vm1207, %v3106, %v3107
        %v3109 = vsel %vm1207, %v3105, %v3106
        %v3110 = vsel %vm1207, %v3104, %v3105
        %v3111 = vsel %vm1207, %v3103, %v3104
        %v3112 = vsel %vm1207, %v3102, %v3103
        %v3113 = vsel %vm1207, %v3101, %v3102
        %v3114 = vsel %vm1207, %v3100, %v3101
        %v3115 = vsel %vm1207, %v3107, %v3100
        %vm3116 = vcmp.lt.s32.totalorder %v1206, 0
        %v3117 = vsub.s32 0, %v1206
        %v3118 = vsel %vm3116, %v3117, %v1206
        %v3119 = vshrl.u32 %v3118, 4
        %v3120 = vand.u32 %v3118, 15
        %v3121 = vsub.s32 0, %v3120
        %v3122 = vsel %vm3116, %v3121, %v3120
        %vm3123 = vcmp.lt.s32.totalorder %v1224, 0
        %v3124 = vsub.s32 0, %v1224
        %v3125 = vsel %vm3123, %v3124, %v1224
        %v3126 = vshrl.u32 %v3125, 4
        %v3127 = vand.u32 %v3125, 15
        %v3128 = vsub.s32 0, %v3127
        %v3129 = vsel %vm3123, %v3128, %v3127
        %vm3130 = vcmp.lt.s32.totalorder %v1225, 0
        %v3131 = vsub.s32 0, %v1225
        %v3132 = vsel %vm3130, %v3131, %v1225
        %v3133 = vshrl.u32 %v3132, 4
        %v3134 = vand.u32 %v3132, 15
        %v3135 = vsub.s32 0, %v3134
        %v3136 = vsel %vm3130, %v3135, %v3134
        %vm3137 = vcmp.lt.s32.totalorder %v1226, 0
        %v3138 = vsub.s32 0, %v1226
        %v3139 = vsel %vm3137, %v3138, %v1226
        %v3140 = vshrl.u32 %v3139, 4
        %v3141 = vand.u32 %v3139, 15
        %v3142 = vsub.s32 0, %v3141
        %v3143 = vsel %vm3137, %v3142, %v3141
        %vm3144 = vcmp.lt.s32.totalorder %v1227, 0
        %v3145 = vsub.s32 0, %v1227
        %v3146 = vsel %vm3144, %v3145, %v1227
        %v3147 = vshrl.u32 %v3146, 4
        %v3148 = vand.u32 %v3146, 15
        %v3149 = vsub.s32 0, %v3148
        %v3150 = vsel %vm3144, %v3149, %v3148
        %vm3151 = vcmp.lt.s32.totalorder %v1228, 0
        %v3152 = vsub.s32 0, %v1228
        %v3153 = vsel %vm3151, %v3152, %v1228
        %v3154 = vshrl.u32 %v3153, 4
        %v3155 = vand.u32 %v3153, 15
        %v3156 = vsub.s32 0, %v3155
        %v3157 = vsel %vm3151, %v3156, %v3155
        %vm3158 = vcmp.lt.s32.totalorder %v1229, 0
        %v3159 = vsub.s32 0, %v1229
        %v3160 = vsel %vm3158, %v3159, %v1229
        %v3161 = vshrl.u32 %v3160, 4
        %v3162 = vand.u32 %v3160, 15
        %v3163 = vsub.s32 0, %v3162
        %v3164 = vsel %vm3158, %v3163, %v3162
        %vm3165 = vcmp.lt.s32.totalorder %v1230, 0
        %v3166 = vsub.s32 0, %v1230
        %v3167 = vsel %vm3165, %v3166, %v1230
        %v3168 = vshrl.u32 %v3167, 4
        %v3169 = vand.u32 %v3167, 15
        %v3170 = vsub.s32 0, %v3169
        %v3171 = vsel %vm3165, %v3170, %v3169
        %vm3172 = vcmp.ne.s32.totalorder %v3122, 0
        %vm3173 = vcmp.ne.s32.totalorder %v3129, 0
        %vm3174 = vcmp.ne.s32.totalorder %v3136, 0
        %vm3175 = vcmp.ne.s32.totalorder %v3143, 0
        %vm3176 = vcmp.ne.s32.totalorder %v3150, 0
        %vm3177 = vcmp.ne.s32.totalorder %v3157, 0
        %vm3178 = vcmp.ne.s32.totalorder %v3164, 0
        %vm3179 = vcmp.ne.s32.totalorder %v3171, 0
        %vm3180 = vcmp.lt.s32.totalorder %v3122, 0
        %vm3181 = vcmp.lt.s32.totalorder %v3129, 0
        %vm3182 = vcmp.lt.s32.totalorder %v3136, 0
        %vm3183 = vcmp.lt.s32.totalorder %v3143, 0
        %vm3184 = vcmp.lt.s32.totalorder %v3150, 0
        %vm3185 = vcmp.lt.s32.totalorder %v3157, 0
        %vm3186 = vcmp.lt.s32.totalorder %v3164, 0
        %vm3187 = vcmp.lt.s32.totalorder %v3171, 0
        %vm3188 = vmand %vm3180, %vm3172
        %vm3189 = vmand %vm3181, %vm3173
        %vm3190 = vmand %vm3182, %vm3174
        %vm3191 = vmand %vm3183, %vm3175
        %vm3192 = vmand %vm3184, %vm3176
        %vm3193 = vmand %vm3185, %vm3177
        %vm3194 = vmand %vm3186, %vm3178
        %vm3195 = vmand %vm3187, %vm3179
        %v3196 = vadd.s32 %v3122, 16
        %v3197 = vadd.s32 %v3129, 16
        %v3198 = vadd.s32 %v3136, 16
        %v3199 = vadd.s32 %v3143, 16
        %v3200 = vadd.s32 %v3150, 16
        %v3201 = vadd.s32 %v3157, 16
        %v3202 = vadd.s32 %v3164, 16
        %v3203 = vadd.s32 %v3171, 16
        %v3204 = vsel %vm3188, %v3196, %v3122
        %v3205 = vsel %vm3189, %v3197, %v3129
        %v3206 = vsel %vm3190, %v3198, %v3136
        %v3207 = vsel %vm3191, %v3199, %v3143
        %v3208 = vsel %vm3192, %v3200, %v3150
        %v3209 = vsel %vm3193, %v3201, %v3157
        %v3210 = vsel %vm3194, %v3202, %v3164
        %v3211 = vsel %vm3195, %v3203, %v3171
        %vm3212 = vcmp.eq.s32.totalorder %v3204, 0
        %vm3213 = vcmp.eq.s32.totalorder %v3205, 0
        %vm3214 = vcmp.eq.s32.totalorder %v3206, 0
        %vm3215 = vcmp.eq.s32.totalorder %v3207, 0
        %vm3216 = vcmp.eq.s32.totalorder %v3208, 0
        %vm3217 = vcmp.eq.s32.totalorder %v3209, 0
        %vm3218 = vcmp.eq.s32.totalorder %v3210, 0
        %vm3219 = vcmp.eq.s32.totalorder %v3211, 0
        %v3220 = vsel %vm3212, 0.0, %v3115
        %v3221 = vsel %vm3213, 0.0, %v3114
        %v3222 = vsel %vm3214, 0.0, %v3113
        %v3223 = vsel %vm3215, 0.0, %v3112
        %v3224 = vsel %vm3216, 0.0, %v3111
        %v3225 = vsel %vm3217, 0.0, %v3110
        %v3226 = vsel %vm3218, 0.0, %v3109
        %v3227 = vsel %vm3219, 0.0, %v3108
        %v3228 = vadd.f32 %v3220, %v2940
        %v3229 = vadd.f32 %v3221, %v2943
        %v3230 = vadd.f32 %v3222, %v2948
        %v3231 = vadd.f32 %v3223, %v2951
        %v3232 = vadd.f32 %v3224, %v2956
        %v3233 = vadd.f32 %v3225, %v2959
        %v3234 = vadd.f32 %v3226, %v2964
        %v3235 = vadd.f32 %v3227, %v2967
        %v3236 = vrot.slane %v3070, 1
        %v3237 = vrot.slane %v3073, 1
        %v3238 = vrot.slane %v3078, 1
        %v3239 = vrot.slane %v3081, 1
        %v3240 = vrot.slane %v3086, 1
        %v3241 = vrot.slane %v3089, 1
        %v3242 = vrot.slane %v3094, 1
        %v3243 = vrot.slane %v3097, 1
        %v3244 = vsel %vm1495, %v3242, %v3243
        %v3245 = vsel %vm1495, %v3241, %v3242
        %v3246 = vsel %vm1495, %v3240, %v3241
        %v3247 = vsel %vm1495, %v3239, %v3240
        %v3248 = vsel %vm1495, %v3238, %v3239
        %v3249 = vsel %vm1495, %v3237, %v3238
        %v3250 = vsel %vm1495, %v3236, %v3237
        %v3251 = vsel %vm1495, %v3243, %v3236
        %vm3252 = vcmp.eq.s32.totalorder %v3204, 15
        %vm3253 = vcmp.eq.s32.totalorder %v3205, 15
        %vm3254 = vcmp.eq.s32.totalorder %v3206, 15
        %vm3255 = vcmp.eq.s32.totalorder %v3207, 15
        %vm3256 = vcmp.eq.s32.totalorder %v3208, 15
        %vm3257 = vcmp.eq.s32.totalorder %v3209, 15
        %vm3258 = vcmp.eq.s32.totalorder %v3210, 15
        %vm3259 = vcmp.eq.s32.totalorder %v3211, 15
        %v3260 = vsel %vm3252, 0.0, %v3250
        %v3261 = vsel %vm3253, 0.0, %v3249
        %v3262 = vsel %vm3254, 0.0, %v3248
        %v3263 = vsel %vm3255, 0.0, %v3247
        %v3264 = vsel %vm3256, 0.0, %v3246
        %v3265 = vsel %vm3257, 0.0, %v3245
        %v3266 = vsel %vm3258, 0.0, %v3244
        %v3267 = vsel %vm3259, 0.0, %v3251
        %v3268 = vadd.f32 %v3228, %v3260
        %v3269 = vadd.f32 %v3229, %v3261
        %v3270 = vadd.f32 %v3230, %v3262
        %v3271 = vadd.f32 %v3231, %v3263
        %v3272 = vadd.f32 %v3232, %v3264
        %v3273 = vadd.f32 %v3233, %v3265
        %v3274 = vadd.f32 %v3234, %v3266
        %v3275 = vadd.f32 %v3235, %v3267
        %v3276 = vld [vmem:[%s6] sm:$0x1]
        %v3278 = vlaneseq
        %v3279 = vshrl.u32 %v3278, 7
        %v3280 = vsub.s32 0, %v3279
        %v3281 = vrot.slane %v3276, %v3280
        %v3283 = vadd.f32 %v3268, %v3281
        %v3284 = vadd.f32 %v3269, %v3281
        %v3285 = vadd.f32 %v3270, %v3281
        %v3286 = vadd.f32 %v3271, %v3281
        %v3287 = vadd.f32 %v3272, %v3281
        %v3288 = vadd.f32 %v3273, %v3281
        %v3289 = vadd.f32 %v3274, %v3281
        %v3290 = vadd.f32 %v3275, %v3281
        %v3299 = vcombine.high %v3283, %v3283
        %v3301 = vunpack.c.l.s4 1983009808
        %v3302 = vunpack.c.0.s8 %v3301
        %v3303 = vlaneseq
        %v3304 = vshrl.u32 %v3303, 7
        %v3305 = vsub.s32 %v3302, %v3304
        %v3306 = vrot.slane %v3283, %v3305
        %v3308 = vunpack.c.l.s4 1983009808
        %v3309 = vunpack.c.0.s8 %v3308
        %v3310 = vlaneseq
        %v3311 = vshrl.u32 %v3310, 7
        %v3312 = vsub.s32 %v3309, %v3311
        %v3313 = vrot.slane %v3299, %v3312
        %v3314 = vcombine.high %v3306, %v3306
        %v3315 = vcombine.high %v3313, %v3313
        %v3316 = vcombine.high %v3284, %v3284
        %v3318 = vunpack.c.l.s4 1983009808
        %v3319 = vunpack.c.0.s8 %v3318
        %v3320 = vlaneseq
        %v3321 = vshrl.u32 %v3320, 7
        %v3322 = vsub.s32 %v3319, %v3321
        %v3323 = vrot.slane %v3284, %v3322
        %v3325 = vunpack.c.l.s4 1983009808
        %v3326 = vunpack.c.0.s8 %v3325
        %v3327 = vlaneseq
        %v3328 = vshrl.u32 %v3327, 7
        %v3329 = vsub.s32 %v3326, %v3328
        %v3330 = vrot.slane %v3316, %v3329
        %v3331 = vcombine.high %v3323, %v3323
        %v3332 = vcombine.high %v3330, %v3330
        %v3333 = vcombine.high %v3285, %v3285
        %v3335 = vunpack.c.l.s4 1983009808
        %v3336 = vunpack.c.0.s8 %v3335
        %v3337 = vlaneseq
        %v3338 = vshrl.u32 %v3337, 7
        %v3339 = vsub.s32 %v3336, %v3338
        %v3340 = vrot.slane %v3285, %v3339
        %v3342 = vunpack.c.l.s4 1983009808
        %v3343 = vunpack.c.0.s8 %v3342
        %v3344 = vlaneseq
        %v3345 = vshrl.u32 %v3344, 7
        %v3346 = vsub.s32 %v3343, %v3345
        %v3347 = vrot.slane %v3333, %v3346
        %v3348 = vcombine.high %v3340, %v3340
        %v3349 = vcombine.high %v3347, %v3347
        %v3350 = vcombine.high %v3286, %v3286
        %v3352 = vunpack.c.l.s4 1983009808
        %v3353 = vunpack.c.0.s8 %v3352
        %v3354 = vlaneseq
        %v3355 = vshrl.u32 %v3354, 7
        %v3356 = vsub.s32 %v3353, %v3355
        %v3357 = vrot.slane %v3286, %v3356
        %v3359 = vunpack.c.l.s4 1983009808
        %v3360 = vunpack.c.0.s8 %v3359
        %v3361 = vlaneseq
        %v3362 = vshrl.u32 %v3361, 7
        %v3363 = vsub.s32 %v3360, %v3362
        %v3364 = vrot.slane %v3350, %v3363
        %v3365 = vcombine.high %v3357, %v3357
        %v3366 = vcombine.high %v3364, %v3364
        %v3367 = vcombine.high %v3287, %v3287
        %v3369 = vunpack.c.l.s4 1983009808
        %v3370 = vunpack.c.0.s8 %v3369
        %v3371 = vlaneseq
        %v3372 = vshrl.u32 %v3371, 7
        %v3373 = vsub.s32 %v3370, %v3372
        %v3374 = vrot.slane %v3287, %v3373
        %v3376 = vunpack.c.l.s4 1983009808
        %v3377 = vunpack.c.0.s8 %v3376
        %v3378 = vlaneseq
        %v3379 = vshrl.u32 %v3378, 7
        %v3380 = vsub.s32 %v3377, %v3379
        %v3381 = vrot.slane %v3367, %v3380
        %v3382 = vcombine.high %v3374, %v3374
        %v3383 = vcombine.high %v3381, %v3381
        %v3384 = vcombine.high %v3288, %v3288
        %v3386 = vunpack.c.l.s4 1983009808
        %v3387 = vunpack.c.0.s8 %v3386
        %v3388 = vlaneseq
        %v3389 = vshrl.u32 %v3388, 7
        %v3390 = vsub.s32 %v3387, %v3389
        %v3391 = vrot.slane %v3288, %v3390
        %v3393 = vunpack.c.l.s4 1983009808
        %v3394 = vunpack.c.0.s8 %v3393
        %v3395 = vlaneseq
        %v3396 = vshrl.u32 %v3395, 7
        %v3397 = vsub.s32 %v3394, %v3396
        %v3398 = vrot.slane %v3384, %v3397
        %v3399 = vcombine.high %v3391, %v3391
        %v3400 = vcombine.high %v3398, %v3398
        %v3401 = vcombine.high %v3289, %v3289
        %v3403 = vunpack.c.l.s4 1983009808
        %v3404 = vunpack.c.0.s8 %v3403
        %v3405 = vlaneseq
        %v3406 = vshrl.u32 %v3405, 7
        %v3407 = vsub.s32 %v3404, %v3406
        %v3408 = vrot.slane %v3289, %v3407
        %v3410 = vunpack.c.l.s4 1983009808
        %v3411 = vunpack.c.0.s8 %v3410
        %v3412 = vlaneseq
        %v3413 = vshrl.u32 %v3412, 7
        %v3414 = vsub.s32 %v3411, %v3413
        %v3415 = vrot.slane %v3401, %v3414
        %v3416 = vcombine.high %v3408, %v3408
        %v3417 = vcombine.high %v3415, %v3415
        %v3418 = vcombine.high %v3290, %v3290
        %v3420 = vunpack.c.l.s4 1983009808
        %v3421 = vunpack.c.0.s8 %v3420
        %v3422 = vlaneseq
        %v3423 = vshrl.u32 %v3422, 7
        %v3424 = vsub.s32 %v3421, %v3423
        %v3425 = vrot.slane %v3290, %v3424
        %v3427 = vunpack.c.l.s4 1983009808
        %v3428 = vunpack.c.0.s8 %v3427
        %v3429 = vlaneseq
        %v3430 = vshrl.u32 %v3429, 7
        %v3431 = vsub.s32 %v3428, %v3430
        %v3432 = vrot.slane %v3418, %v3431
        %v3433 = vcombine.high %v3425, %v3425
        %v3434 = vcombine.high %v3432, %v3432
        %v3467 = vsel %vm1935, %v3306, -inf
        %v3468 = vrot.slane %v3467, 4
        %v3469 = vmax.f32 %v3467, %v3468
        %v3470 = vrot.slane %v3469, 2
        %v3471 = vmax.f32 %v3469, %v3470
        %v3472 = vrot.slane %v3471, 1
        %v3473 = vmax.f32 %v3471, %v3472
        %v3474 = vsel %vm1935, %v3314, -inf
        %v3475 = vrot.slane %v3474, 4
        %v3476 = vmax.f32 %v3474, %v3475
        %v3477 = vrot.slane %v3476, 2
        %v3478 = vmax.f32 %v3476, %v3477
        %v3479 = vrot.slane %v3478, 1
        %v3480 = vmax.f32 %v3478, %v3479
        %v3481 = vsel %vm1935, %v3313, -inf
        %v3482 = vrot.slane %v3481, 4
        %v3483 = vmax.f32 %v3481, %v3482
        %v3484 = vrot.slane %v3483, 2
        %v3485 = vmax.f32 %v3483, %v3484
        %v3486 = vrot.slane %v3485, 1
        %v3487 = vmax.f32 %v3485, %v3486
        %v3488 = vsel %vm1935, %v3315, -inf
        %v3489 = vrot.slane %v3488, 4
        %v3490 = vmax.f32 %v3488, %v3489
        %v3491 = vrot.slane %v3490, 2
        %v3492 = vmax.f32 %v3490, %v3491
        %v3493 = vrot.slane %v3492, 1
        %v3494 = vmax.f32 %v3492, %v3493
        %v3495 = vsel %vm1935, %v3323, -inf
        %v3496 = vrot.slane %v3495, 4
        %v3497 = vmax.f32 %v3495, %v3496
        %v3498 = vrot.slane %v3497, 2
        %v3499 = vmax.f32 %v3497, %v3498
        %v3500 = vrot.slane %v3499, 1
        %v3501 = vmax.f32 %v3499, %v3500
        %v3502 = vsel %vm1935, %v3331, -inf
        %v3503 = vrot.slane %v3502, 4
        %v3504 = vmax.f32 %v3502, %v3503
        %v3505 = vrot.slane %v3504, 2
        %v3506 = vmax.f32 %v3504, %v3505
        %v3507 = vrot.slane %v3506, 1
        %v3508 = vmax.f32 %v3506, %v3507
        %v3509 = vsel %vm1935, %v3330, -inf
        %v3510 = vrot.slane %v3509, 4
        %v3511 = vmax.f32 %v3509, %v3510
        %v3512 = vrot.slane %v3511, 2
        %v3513 = vmax.f32 %v3511, %v3512
        %v3514 = vrot.slane %v3513, 1
        %v3515 = vmax.f32 %v3513, %v3514
        %v3516 = vsel %vm1935, %v3332, -inf
        %v3517 = vrot.slane %v3516, 4
        %v3518 = vmax.f32 %v3516, %v3517
        %v3519 = vrot.slane %v3518, 2
        %v3520 = vmax.f32 %v3518, %v3519
        %v3521 = vrot.slane %v3520, 1
        %v3522 = vmax.f32 %v3520, %v3521
        %v3523 = vsel %vm1935, %v3340, -inf
        %v3524 = vrot.slane %v3523, 4
        %v3525 = vmax.f32 %v3523, %v3524
        %v3526 = vrot.slane %v3525, 2
        %v3527 = vmax.f32 %v3525, %v3526
        %v3528 = vrot.slane %v3527, 1
        %v3529 = vmax.f32 %v3527, %v3528
        %v3530 = vsel %vm1935, %v3348, -inf
        %v3531 = vrot.slane %v3530, 4
        %v3532 = vmax.f32 %v3530, %v3531
        %v3533 = vrot.slane %v3532, 2
        %v3534 = vmax.f32 %v3532, %v3533
        %v3535 = vrot.slane %v3534, 1
        %v3536 = vmax.f32 %v3534, %v3535
        %v3537 = vsel %vm1935, %v3347, -inf
        %v3538 = vrot.slane %v3537, 4
        %v3539 = vmax.f32 %v3537, %v3538
        %v3540 = vrot.slane %v3539, 2
        %v3541 = vmax.f32 %v3539, %v3540
        %v3542 = vrot.slane %v3541, 1
        %v3543 = vmax.f32 %v3541, %v3542
        %v3544 = vsel %vm1935, %v3349, -inf
        %v3545 = vrot.slane %v3544, 4
        %v3546 = vmax.f32 %v3544, %v3545
        %v3547 = vrot.slane %v3546, 2
        %v3548 = vmax.f32 %v3546, %v3547
        %v3549 = vrot.slane %v3548, 1
        %v3550 = vmax.f32 %v3548, %v3549
        %v3551 = vsel %vm1935, %v3357, -inf
        %v3552 = vrot.slane %v3551, 4
        %v3553 = vmax.f32 %v3551, %v3552
        %v3554 = vrot.slane %v3553, 2
        %v3555 = vmax.f32 %v3553, %v3554
        %v3556 = vrot.slane %v3555, 1
        %v3557 = vmax.f32 %v3555, %v3556
        %v3558 = vsel %vm1935, %v3365, -inf
        %v3559 = vrot.slane %v3558, 4
        %v3560 = vmax.f32 %v3558, %v3559
        %v3561 = vrot.slane %v3560, 2
        %v3562 = vmax.f32 %v3560, %v3561
        %v3563 = vrot.slane %v3562, 1
        %v3564 = vmax.f32 %v3562, %v3563
        %v3565 = vsel %vm1935, %v3364, -inf
        %v3566 = vrot.slane %v3565, 4
        %v3567 = vmax.f32 %v3565, %v3566
        %v3568 = vrot.slane %v3567, 2
        %v3569 = vmax.f32 %v3567, %v3568
        %v3570 = vrot.slane %v3569, 1
        %v3571 = vmax.f32 %v3569, %v3570
        %v3572 = vsel %vm1935, %v3366, -inf
        %v3573 = vrot.slane %v3572, 4
        %v3574 = vmax.f32 %v3572, %v3573
        %v3575 = vrot.slane %v3574, 2
        %v3576 = vmax.f32 %v3574, %v3575
        %v3577 = vrot.slane %v3576, 1
        %v3578 = vmax.f32 %v3576, %v3577
        %v3579 = vsel %vm1935, %v3374, -inf
        %v3580 = vrot.slane %v3579, 4
        %v3581 = vmax.f32 %v3579, %v3580
        %v3582 = vrot.slane %v3581, 2
        %v3583 = vmax.f32 %v3581, %v3582
        %v3584 = vrot.slane %v3583, 1
        %v3585 = vmax.f32 %v3583, %v3584
        %v3586 = vsel %vm1935, %v3382, -inf
        %v3587 = vrot.slane %v3586, 4
        %v3588 = vmax.f32 %v3586, %v3587
        %v3589 = vrot.slane %v3588, 2
        %v3590 = vmax.f32 %v3588, %v3589
        %v3591 = vrot.slane %v3590, 1
        %v3592 = vmax.f32 %v3590, %v3591
        %v3593 = vsel %vm1935, %v3381, -inf
        %v3594 = vrot.slane %v3593, 4
        %v3595 = vmax.f32 %v3593, %v3594
        %v3596 = vrot.slane %v3595, 2
        %v3597 = vmax.f32 %v3595, %v3596
        %v3598 = vrot.slane %v3597, 1
        %v3599 = vmax.f32 %v3597, %v3598
        %v3600 = vsel %vm1935, %v3383, -inf
        %v3601 = vrot.slane %v3600, 4
        %v3602 = vmax.f32 %v3600, %v3601
        %v3603 = vrot.slane %v3602, 2
        %v3604 = vmax.f32 %v3602, %v3603
        %v3605 = vrot.slane %v3604, 1
        %v3606 = vmax.f32 %v3604, %v3605
        %v3607 = vsel %vm1935, %v3391, -inf
        %v3608 = vrot.slane %v3607, 4
        %v3609 = vmax.f32 %v3607, %v3608
        %v3610 = vrot.slane %v3609, 2
        %v3611 = vmax.f32 %v3609, %v3610
        %v3612 = vrot.slane %v3611, 1
        %v3613 = vmax.f32 %v3611, %v3612
        %v3614 = vsel %vm1935, %v3399, -inf
        %v3615 = vrot.slane %v3614, 4
        %v3616 = vmax.f32 %v3614, %v3615
        %v3617 = vrot.slane %v3616, 2
        %v3618 = vmax.f32 %v3616, %v3617
        %v3619 = vrot.slane %v3618, 1
        %v3620 = vmax.f32 %v3618, %v3619
        %v3621 = vsel %vm1935, %v3398, -inf
        %v3622 = vrot.slane %v3621, 4
        %v3623 = vmax.f32 %v3621, %v3622
        %v3624 = vrot.slane %v3623, 2
        %v3625 = vmax.f32 %v3623, %v3624
        %v3626 = vrot.slane %v3625, 1
        %v3627 = vmax.f32 %v3625, %v3626
        %v3628 = vsel %vm1935, %v3400, -inf
        %v3629 = vrot.slane %v3628, 4
        %v3630 = vmax.f32 %v3628, %v3629
        %v3631 = vrot.slane %v3630, 2
        %v3632 = vmax.f32 %v3630, %v3631
        %v3633 = vrot.slane %v3632, 1
        %v3634 = vmax.f32 %v3632, %v3633
        %v3635 = vsel %vm1935, %v3408, -inf
        %v3636 = vrot.slane %v3635, 4
        %v3637 = vmax.f32 %v3635, %v3636
        %v3638 = vrot.slane %v3637, 2
        %v3639 = vmax.f32 %v3637, %v3638
        %v3640 = vrot.slane %v3639, 1
        %v3641 = vmax.f32 %v3639, %v3640
        %v3642 = vsel %vm1935, %v3416, -inf
        %v3643 = vrot.slane %v3642, 4
        %v3644 = vmax.f32 %v3642, %v3643
        %v3645 = vrot.slane %v3644, 2
        %v3646 = vmax.f32 %v3644, %v3645
        %v3647 = vrot.slane %v3646, 1
        %v3648 = vmax.f32 %v3646, %v3647
        %v3649 = vsel %vm1935, %v3415, -inf
        %v3650 = vrot.slane %v3649, 4
        %v3651 = vmax.f32 %v3649, %v3650
        %v3652 = vrot.slane %v3651, 2
        %v3653 = vmax.f32 %v3651, %v3652
        %v3654 = vrot.slane %v3653, 1
        %v3655 = vmax.f32 %v3653, %v3654
        %v3656 = vsel %vm1935, %v3417, -inf
        %v3657 = vrot.slane %v3656, 4
        %v3658 = vmax.f32 %v3656, %v3657
        %v3659 = vrot.slane %v3658, 2
        %v3660 = vmax.f32 %v3658, %v3659
        %v3661 = vrot.slane %v3660, 1
        %v3662 = vmax.f32 %v3660, %v3661
        %v3663 = vsel %vm1935, %v3425, -inf
        %v3664 = vrot.slane %v3663, 4
        %v3665 = vmax.f32 %v3663, %v3664
        %v3666 = vrot.slane %v3665, 2
        %v3667 = vmax.f32 %v3665, %v3666
        %v3668 = vrot.slane %v3667, 1
        %v3669 = vmax.f32 %v3667, %v3668
        %v3670 = vsel %vm1935, %v3433, -inf
        %v3671 = vrot.slane %v3670, 4
        %v3672 = vmax.f32 %v3670, %v3671
        %v3673 = vrot.slane %v3672, 2
        %v3674 = vmax.f32 %v3672, %v3673
        %v3675 = vrot.slane %v3674, 1
        %v3676 = vmax.f32 %v3674, %v3675
        %v3677 = vsel %vm1935, %v3432, -inf
        %v3678 = vrot.slane %v3677, 4
        %v3679 = vmax.f32 %v3677, %v3678
        %v3680 = vrot.slane %v3679, 2
        %v3681 = vmax.f32 %v3679, %v3680
        %v3682 = vrot.slane %v3681, 1
        %v3683 = vmax.f32 %v3681, %v3682
        %v3684 = vsel %vm1935, %v3434, -inf
        %v3685 = vrot.slane %v3684, 4
        %v3686 = vmax.f32 %v3684, %v3685
        %v3687 = vrot.slane %v3686, 2
        %v3688 = vmax.f32 %v3686, %v3687
        %v3689 = vrot.slane %v3688, 1
        %v3690 = vmax.f32 %v3688, %v3689
        %v3691 = vtanh.pop %v3473
        %v3692 = vtanh.pop %v3480
        %v3693 = vtanh.pop %v3487
        %v3694 = vtanh.pop %v3494
        %v3695 = vtanh.pop %v3501
        %v3696 = vtanh.pop %v3508
        %v3697 = vtanh.pop %v3515
        %v3698 = vtanh.pop %v3522
        %v3699 = vtanh.pop %v3529
        %v3700 = vtanh.pop %v3536
        %v3701 = vtanh.pop %v3543
        %v3702 = vtanh.pop %v3550
        %v3703 = vtanh.pop %v3557
        %v3704 = vtanh.pop %v3564
        %v3705 = vtanh.pop %v3571
        %v3706 = vtanh.pop %v3578
        %v3707 = vtanh.pop %v3585
        %v3708 = vtanh.pop %v3592
        %v3709 = vtanh.pop %v3599
        %v3710 = vtanh.pop %v3606
        %v3711 = vtanh.pop %v3613
        %v3712 = vtanh.pop %v3620
        %v3713 = vtanh.pop %v3627
        %v3714 = vtanh.pop %v3634
        %v3715 = vtanh.pop %v3641
        %v3716 = vtanh.pop %v3648
        %v3717 = vtanh.pop %v3655
        %v3718 = vtanh.pop %v3662
        %v3719 = vtanh.pop %v3669
        %v3720 = vtanh.pop %v3676
        %v3721 = vtanh.pop %v3683
        %v3722 = vtanh.pop %v3690
        %v3723 = vpack.c.bf16 %v3691, %v3691
        %v3724 = vpack.c.bf16 %v3692, %v3692
        %v3725 = vpack.c.bf16 %v3693, %v3693
        %v3726 = vpack.c.bf16 %v3694, %v3694
        %v3727 = vpack.c.bf16 %v3695, %v3695
        %v3728 = vpack.c.bf16 %v3696, %v3696
        %v3729 = vpack.c.bf16 %v3697, %v3697
        %v3730 = vpack.c.bf16 %v3698, %v3698
        %v3731 = vpack.c.bf16 %v3699, %v3699
        %v3732 = vpack.c.bf16 %v3700, %v3700
        %v3733 = vpack.c.bf16 %v3701, %v3701
        %v3734 = vpack.c.bf16 %v3702, %v3702
        %v3735 = vpack.c.bf16 %v3703, %v3703
        %v3736 = vpack.c.bf16 %v3704, %v3704
        %v3737 = vpack.c.bf16 %v3705, %v3705
        %v3738 = vpack.c.bf16 %v3706, %v3706
        %v3739 = vpack.c.bf16 %v3707, %v3707
        %v3740 = vpack.c.bf16 %v3708, %v3708
        %v3741 = vpack.c.bf16 %v3709, %v3709
        %v3742 = vpack.c.bf16 %v3710, %v3710
        %v3743 = vpack.c.bf16 %v3711, %v3711
        %v3744 = vpack.c.bf16 %v3712, %v3712
        %v3745 = vpack.c.bf16 %v3713, %v3713
        %v3746 = vpack.c.bf16 %v3714, %v3714
        %v3747 = vpack.c.bf16 %v3715, %v3715
        %v3748 = vpack.c.bf16 %v3716, %v3716
        %v3749 = vpack.c.bf16 %v3717, %v3717
        %v3750 = vpack.c.bf16 %v3718, %v3718
        %v3751 = vpack.c.bf16 %v3719, %v3719
        %v3752 = vpack.c.bf16 %v3720, %v3720
        %v3753 = vpack.c.bf16 %v3721, %v3721
        %v3754 = vpack.c.bf16 %v3722, %v3722
        %v3755 = vld [vmem:[%s7] sm:$0xff]
        %v3756 = vld [vmem:[%s7 + $0x8] sm:$0xff]
        %v3757 = vld [vmem:[%s7 + $0x10] sm:$0xff]
        %v3758 = vld [vmem:[%s7 + $0x18] sm:$0xff]
        %v3759 = vld [vmem:[%s7 + $0x20] sm:$0xff]
        %v3760 = vld [vmem:[%s7 + $0x28] sm:$0xff]
        %v3761 = vld [vmem:[%s7 + $0x30] sm:$0xff]
        %v3762 = vld [vmem:[%s7 + $0x38] sm:$0xff]
        %v3763 = vld [vmem:[%s7 + $0x40] sm:$0xff]
        %v3764 = vld [vmem:[%s7 + $0x48] sm:$0xff]
        %v3765 = vld [vmem:[%s7 + $0x50] sm:$0xff]
        %v3766 = vld [vmem:[%s7 + $0x58] sm:$0xff]
        %v3767 = vld [vmem:[%s7 + $0x60] sm:$0xff]
        %v3768 = vld [vmem:[%s7 + $0x68] sm:$0xff]
        %v3769 = vld [vmem:[%s7 + $0x70] sm:$0xff]
        %v3770 = vld [vmem:[%s7 + $0x78] sm:$0xff]
        %v3803 = vunpack.c.l.b16 %v3723
        %v3804 = vunpack.c.l.b16 %v3724
        %v3805 = vunpack.c.l.b16 %v3725
        %v3806 = vunpack.c.l.b16 %v3726
        %v3807 = vunpack.c.l.b16 %v3727
        %v3808 = vunpack.c.l.b16 %v3728
        %v3809 = vunpack.c.l.b16 %v3729
        %v3810 = vunpack.c.l.b16 %v3730
        %v3811 = vunpack.c.l.b16 %v3731
        %v3812 = vunpack.c.l.b16 %v3732
        %v3813 = vunpack.c.l.b16 %v3733
        %v3814 = vunpack.c.l.b16 %v3734
        %v3815 = vunpack.c.l.b16 %v3735
        %v3816 = vunpack.c.l.b16 %v3736
        %v3817 = vunpack.c.l.b16 %v3737
        %v3818 = vunpack.c.l.b16 %v3738
        %v3819 = vunpack.c.l.b16 %v3739
        %v3820 = vunpack.c.l.b16 %v3740
        %v3821 = vunpack.c.l.b16 %v3741
        %v3822 = vunpack.c.l.b16 %v3742
        %v3823 = vunpack.c.l.b16 %v3743
        %v3824 = vunpack.c.l.b16 %v3744
        %v3825 = vunpack.c.l.b16 %v3745
        %v3826 = vunpack.c.l.b16 %v3746
        %v3827 = vunpack.c.l.b16 %v3747
        %v3828 = vunpack.c.l.b16 %v3748
        %v3829 = vunpack.c.l.b16 %v3749
        %v3830 = vunpack.c.l.b16 %v3750
        %v3831 = vunpack.c.l.b16 %v3751
        %v3832 = vunpack.c.l.b16 %v3752
        %v3833 = vunpack.c.l.b16 %v3753
        %v3834 = vunpack.c.l.b16 %v3754
        %v3835 = vsel %vm2656, %v3804, %v3803
        %v3836 = vsel %vm2658, %v3805, %v3835
        %v3837 = vsel %vm2660, %v3806, %v3836
        %v3838 = vsel %vm2662, %v3807, %v3837
        %v3839 = vsel %vm2664, %v3808, %v3838
        %v3840 = vsel %vm2666, %v3809, %v3839
        %v3841 = vsel %vm2668, %v3810, %v3840
        %v3842 = vsel %vm2656, %v3812, %v3811
        %v3843 = vsel %vm2658, %v3813, %v3842
        %v3844 = vsel %vm2660, %v3814, %v3843
        %v3845 = vsel %vm2662, %v3815, %v3844
        %v3846 = vsel %vm2664, %v3816, %v3845
        %v3847 = vsel %vm2666, %v3817, %v3846
        %v3848 = vsel %vm2668, %v3818, %v3847
        %v3849 = vsel %vm2656, %v3820, %v3819
        %v3850 = vsel %vm2658, %v3821, %v3849
        %v3851 = vsel %vm2660, %v3822, %v3850
        %v3852 = vsel %vm2662, %v3823, %v3851
        %v3853 = vsel %vm2664, %v3824, %v3852
        %v3854 = vsel %vm2666, %v3825, %v3853
        %v3855 = vsel %vm2668, %v3826, %v3854
        %v3856 = vsel %vm2656, %v3828, %v3827
        %v3857 = vsel %vm2658, %v3829, %v3856
        %v3858 = vsel %vm2660, %v3830, %v3857
        %v3859 = vsel %vm2662, %v3831, %v3858
        %v3860 = vsel %vm2664, %v3832, %v3859
        %v3861 = vsel %vm2666, %v3833, %v3860
        %v3862 = vsel %vm2668, %v3834, %v3861
        %v3863 = vpack.c.b16 %v3848, %v3841
        %v3864 = vpack.c.b16 %v3862, %v3855
        %v3883 = vunpack.c.l.b16 %v3755
        %v3884 = vunpack.c.h.b16 %v3755
        %v3885 = vunpack.c.l.b16 %v3756
        %v3886 = vunpack.c.h.b16 %v3756
        %v3887 = vunpack.c.l.b16 %v3757
        %v3888 = vunpack.c.h.b16 %v3757
        %v3889 = vunpack.c.l.b16 %v3758
        %v3890 = vunpack.c.h.b16 %v3758
        %v3891 = vunpack.c.l.b16 %v3759
        %v3892 = vunpack.c.h.b16 %v3759
        %v3893 = vunpack.c.l.b16 %v3760
        %v3894 = vunpack.c.h.b16 %v3760
        %v3895 = vunpack.c.l.b16 %v3761
        %v3896 = vunpack.c.h.b16 %v3761
        %v3897 = vunpack.c.l.b16 %v3762
        %v3898 = vunpack.c.h.b16 %v3762
        %v3899 = vunpack.c.l.b16 %v3763
        %v3900 = vunpack.c.h.b16 %v3763
        %v3901 = vunpack.c.l.b16 %v3764
        %v3902 = vunpack.c.h.b16 %v3764
        %v3903 = vunpack.c.l.b16 %v3765
        %v3904 = vunpack.c.h.b16 %v3765
        %v3905 = vunpack.c.l.b16 %v3766
        %v3906 = vunpack.c.h.b16 %v3766
        %v3907 = vunpack.c.l.b16 %v3767
        %v3908 = vunpack.c.h.b16 %v3767
        %v3909 = vunpack.c.l.b16 %v3768
        %v3910 = vunpack.c.h.b16 %v3768
        %v3911 = vunpack.c.l.b16 %v3769
        %v3912 = vunpack.c.h.b16 %v3769
        %v3913 = vunpack.c.l.b16 %v3770
        %v3914 = vunpack.c.h.b16 %v3770
        %v3915 = vpack.c.b16 %v3885, %v3883
        %v3916 = vpack.c.b16 %v3886, %v3884
        %v3917 = vpack.c.b16 %v3889, %v3887
        %v3918 = vpack.c.b16 %v3890, %v3888
        %v3919 = vpack.c.b16 %v3893, %v3891
        %v3920 = vpack.c.b16 %v3894, %v3892
        %v3921 = vpack.c.b16 %v3897, %v3895
        %v3922 = vpack.c.b16 %v3898, %v3896
        %v3923 = vpack.c.b16 %v3901, %v3899
        %v3924 = vpack.c.b16 %v3902, %v3900
        %v3925 = vpack.c.b16 %v3905, %v3903
        %v3926 = vpack.c.b16 %v3906, %v3904
        %v3927 = vpack.c.b16 %v3909, %v3907
        %v3928 = vpack.c.b16 %v3910, %v3908
        %v3929 = vpack.c.b16 %v3913, %v3911
        %v3930 = vpack.c.b16 %v3914, %v3912
        %3947 = vmatprep.subr.bf16.mxu0 %v3930
        %3948 = vmatpush1.bf16.msra.mxu0 %v3929
        %3949 = vmatprep.subr.bf16.mxu0 %v3928
        %3950 = vmatpush1.bf16.msra.mxu0 %v3927
        %3951 = vmatprep.subr.bf16.mxu0 %v3926
        %3952 = vmatpush1.bf16.msra.mxu0 %v3925
        %3953 = vmatprep.subr.bf16.mxu0 %v3924
        %3954 = vmatpush1.bf16.msra.mxu0 %v3923
        %3955 = vmatprep.subr.bf16.mxu0 %v3922
        %3956 = vmatpush1.bf16.msra.mxu0 %v3921
        %3957 = vmatprep.subr.bf16.mxu0 %v3920
        %3958 = vmatpush1.bf16.msra.mxu0 %v3919
        %3959 = vmatprep.subr.bf16.mxu0 %v3918
        %3960 = vmatpush1.bf16.msra.mxu0 %v3917
        %3961 = vmatprep.subr.bf16.mxu0 %v3916
        %3962 = vmatpush1.bf16.msra.mxu0 %v3915
        %3963 = vmatprep.subr.bf16.mxu0 0
        %3964 = vmatpush2.bf16.msra.mxu0 0
        %3965 = vmatprep.subr.bf16.mxu0 0
        %3966 = vmatpush2.bf16.msra.mxu0 0
        %3967 = vmatprep.subr.bf16.mxu0 0
        %3968 = vmatpush2.bf16.msra.mxu0 0
        %3969 = vmatprep.subr.bf16.mxu0 0
        %3970 = vmatpush2.bf16.msra.mxu0 0
        %3971 = vmatprep.subr.bf16.mxu0 0
        %3972 = vmatpush2.bf16.msra.mxu0 0
        %3973 = vmatprep.subr.bf16.mxu0 0
        %3974 = vmatpush2.bf16.msra.mxu0 0
        %3975 = vmatprep.subr.bf16.mxu0 0
        %3976 = vmatpush2.bf16.msra.mxu0 0
        %3977 = vmatprep.subr.bf16.mxu0 0
        %3978 = vmatpush2.bf16.msra.mxu0 0
        %3979 = vmatprep.mubr.bf16.mxu0 0
        %3980 = vmatmul.mubr.bf16.gmra.mxu0 %v3863
        %v3981 = vpop.f32.mrf.mxu0
        %v3982 = vadd.f32 0.0, %v3981
        %v3983 = vpop.f32.mrf.mxu0
        %v3984 = vadd.f32 0.0, %v3983
        %v3985 = vpop.f32.mrf.mxu0
        %v3986 = vadd.f32 0.0, %v3985
        %v3987 = vpop.f32.mrf.mxu0
        %v3988 = vadd.f32 0.0, %v3987
        %3989 = vmatprep.mubr.bf16.mxu0 0
        %3990 = vmatmul.mubr.bf16.gmra.mxu0 %v3864
        %v3991 = vpop.f32.mrf.mxu0
        %v3992 = vadd.f32 0.0, %v3991
        %v3993 = vpop.f32.mrf.mxu0
        %v3994 = vadd.f32 0.0, %v3993
        %v3995 = vpop.f32.mrf.mxu0
        %v3996 = vadd.f32 0.0, %v3995
        %v3997 = vpop.f32.mrf.mxu0
        %v3998 = vadd.f32 0.0, %v3997
        %3999 = vdwg.mxu0
        %s4000 = scalar_lea.vmem %s7, 128
        %v4001 = vld [vmem:[%s4000] sm:$0xff]
        %v4002 = vld [vmem:[%s4000 + $0x8] sm:$0xff]
        %v4003 = vld [vmem:[%s4000 + $0x10] sm:$0xff]
        %v4004 = vld [vmem:[%s4000 + $0x18] sm:$0xff]
        %v4005 = vld [vmem:[%s4000 + $0x20] sm:$0xff]
        %v4006 = vld [vmem:[%s4000 + $0x28] sm:$0xff]
        %v4007 = vld [vmem:[%s4000 + $0x30] sm:$0xff]
        %v4008 = vld [vmem:[%s4000 + $0x38] sm:$0xff]
        %v4009 = vld [vmem:[%s4000 + $0x40] sm:$0xff]
        %v4010 = vld [vmem:[%s4000 + $0x48] sm:$0xff]
        %v4011 = vld [vmem:[%s4000 + $0x50] sm:$0xff]
        %v4012 = vld [vmem:[%s4000 + $0x58] sm:$0xff]
        %v4013 = vld [vmem:[%s4000 + $0x60] sm:$0xff]
        %v4014 = vld [vmem:[%s4000 + $0x68] sm:$0xff]
        %v4015 = vld [vmem:[%s4000 + $0x70] sm:$0xff]
        %v4016 = vld [vmem:[%s4000 + $0x78] sm:$0xff]
        %v4033 = vunpack.c.l.b16 %v4001
        %v4034 = vunpack.c.h.b16 %v4001
        %v4035 = vunpack.c.l.b16 %v4002
        %v4036 = vunpack.c.h.b16 %v4002
        %v4037 = vunpack.c.l.b16 %v4003
        %v4038 = vunpack.c.h.b16 %v4003
        %v4039 = vunpack.c.l.b16 %v4004
        %v4040 = vunpack.c.h.b16 %v4004
        %v4041 = vunpack.c.l.b16 %v4005
        %v4042 = vunpack.c.h.b16 %v4005
        %v4043 = vunpack.c.l.b16 %v4006
        %v4044 = vunpack.c.h.b16 %v4006
        %v4045 = vunpack.c.l.b16 %v4007
        %v4046 = vunpack.c.h.b16 %v4007
        %v4047 = vunpack.c.l.b16 %v4008
        %v4048 = vunpack.c.h.b16 %v4008
        %v4049 = vunpack.c.l.b16 %v4009
        %v4050 = vunpack.c.h.b16 %v4009
        %v4051 = vunpack.c.l.b16 %v4010
        %v4052 = vunpack.c.h.b16 %v4010
        %v4053 = vunpack.c.l.b16 %v4011
        %v4054 = vunpack.c.h.b16 %v4011
        %v4055 = vunpack.c.l.b16 %v4012
        %v4056 = vunpack.c.h.b16 %v4012
        %v4057 = vunpack.c.l.b16 %v4013
        %v4058 = vunpack.c.h.b16 %v4013
        %v4059 = vunpack.c.l.b16 %v4014
        %v4060 = vunpack.c.h.b16 %v4014
        %v4061 = vunpack.c.l.b16 %v4015
        %v4062 = vunpack.c.h.b16 %v4015
        %v4063 = vunpack.c.l.b16 %v4016
        %v4064 = vunpack.c.h.b16 %v4016
        %v4065 = vpack.c.b16 %v4035, %v4033
        %v4066 = vpack.c.b16 %v4036, %v4034
        %v4067 = vpack.c.b16 %v4039, %v4037
        %v4068 = vpack.c.b16 %v4040, %v4038
        %v4069 = vpack.c.b16 %v4043, %v4041
        %v4070 = vpack.c.b16 %v4044, %v4042
        %v4071 = vpack.c.b16 %v4047, %v4045
        %v4072 = vpack.c.b16 %v4048, %v4046
        %v4073 = vpack.c.b16 %v4051, %v4049
        %v4074 = vpack.c.b16 %v4052, %v4050
        %v4075 = vpack.c.b16 %v4055, %v4053
        %v4076 = vpack.c.b16 %v4056, %v4054
        %v4077 = vpack.c.b16 %v4059, %v4057
        %v4078 = vpack.c.b16 %v4060, %v4058
        %v4079 = vpack.c.b16 %v4063, %v4061
        %v4080 = vpack.c.b16 %v4064, %v4062
        %4097 = vmatprep.subr.bf16.mxu0 %v4080
        %4098 = vmatpush1.bf16.msra.mxu0 %v4079
        %4099 = vmatprep.subr.bf16.mxu0 %v4078
        %4100 = vmatpush1.bf16.msra.mxu0 %v4077
        %4101 = vmatprep.subr.bf16.mxu0 %v4076
        %4102 = vmatpush1.bf16.msra.mxu0 %v4075
        %4103 = vmatprep.subr.bf16.mxu0 %v4074
        %4104 = vmatpush1.bf16.msra.mxu0 %v4073
        %4105 = vmatprep.subr.bf16.mxu0 %v4072
        %4106 = vmatpush1.bf16.msra.mxu0 %v4071
        %4107 = vmatprep.subr.bf16.mxu0 %v4070
        %4108 = vmatpush1.bf16.msra.mxu0 %v4069
        %4109 = vmatprep.subr.bf16.mxu0 %v4068
        %4110 = vmatpush1.bf16.msra.mxu0 %v4067
        %4111 = vmatprep.subr.bf16.mxu0 %v4066
        %4112 = vmatpush1.bf16.msra.mxu0 %v4065
        %4113 = vmatprep.subr.bf16.mxu0 0
        %4114 = vmatpush2.bf16.msra.mxu0 0
        %4115 = vmatprep.subr.bf16.mxu0 0
        %4116 = vmatpush2.bf16.msra.mxu0 0
        %4117 = vmatprep.subr.bf16.mxu0 0
        %4118 = vmatpush2.bf16.msra.mxu0 0
        %4119 = vmatprep.subr.bf16.mxu0 0
        %4120 = vmatpush2.bf16.msra.mxu0 0
        %4121 = vmatprep.subr.bf16.mxu0 0
        %4122 = vmatpush2.bf16.msra.mxu0 0
        %4123 = vmatprep.subr.bf16.mxu0 0
        %4124 = vmatpush2.bf16.msra.mxu0 0
        %4125 = vmatprep.subr.bf16.mxu0 0
        %4126 = vmatpush2.bf16.msra.mxu0 0
        %4127 = vmatprep.subr.bf16.mxu0 0
        %4128 = vmatpush2.bf16.msra.mxu0 0
        %4129 = vmatprep.mubr.bf16.mxu0 0
        %4130 = vmatmul.mubr.bf16.gmra.mxu0 %v3863
        %v4131 = vpop.f32.mrf.mxu0
        %v4132 = vadd.f32 0.0, %v4131
        %v4133 = vpop.f32.mrf.mxu0
        %v4134 = vadd.f32 0.0, %v4133
        %v4135 = vpop.f32.mrf.mxu0
        %v4136 = vadd.f32 0.0, %v4135
        %v4137 = vpop.f32.mrf.mxu0
        %v4138 = vadd.f32 0.0, %v4137
        %4139 = vmatprep.mubr.bf16.mxu0 0
        %4140 = vmatmul.mubr.bf16.gmra.mxu0 %v3864
        %v4141 = vpop.f32.mrf.mxu0
        %v4142 = vadd.f32 0.0, %v4141
        %v4143 = vpop.f32.mrf.mxu0
        %v4144 = vadd.f32 0.0, %v4143
        %v4145 = vpop.f32.mrf.mxu0
        %v4146 = vadd.f32 0.0, %v4145
        %v4147 = vpop.f32.mrf.mxu0
        %v4148 = vadd.f32 0.0, %v4147
        %4149 = vdwg.mxu0
        %s4150 = scalar_lea.vmem %s7, 256
        %v4151 = vld [vmem:[%s4150] sm:$0xff]
        %v4152 = vld [vmem:[%s4150 + $0x8] sm:$0xff]
        %v4153 = vld [vmem:[%s4150 + $0x10] sm:$0xff]
        %v4154 = vld [vmem:[%s4150 + $0x18] sm:$0xff]
        %v4155 = vld [vmem:[%s4150 + $0x20] sm:$0xff]
        %v4156 = vld [vmem:[%s4150 + $0x28] sm:$0xff]
        %v4157 = vld [vmem:[%s4150 + $0x30] sm:$0xff]
        %v4158 = vld [vmem:[%s4150 + $0x38] sm:$0xff]
        %v4159 = vld [vmem:[%s4150 + $0x40] sm:$0xff]
        %v4160 = vld [vmem:[%s4150 + $0x48] sm:$0xff]
        %v4161 = vld [vmem:[%s4150 + $0x50] sm:$0xff]
        %v4162 = vld [vmem:[%s4150 + $0x58] sm:$0xff]
        %v4163 = vld [vmem:[%s4150 + $0x60] sm:$0xff]
        %v4164 = vld [vmem:[%s4150 + $0x68] sm:$0xff]
        %v4165 = vld [vmem:[%s4150 + $0x70] sm:$0xff]
        %v4166 = vld [vmem:[%s4150 + $0x78] sm:$0xff]
        %v4183 = vunpack.c.l.b16 %v4151
        %v4184 = vunpack.c.h.b16 %v4151
        %v4185 = vunpack.c.l.b16 %v4152
        %v4186 = vunpack.c.h.b16 %v4152
        %v4187 = vunpack.c.l.b16 %v4153
        %v4188 = vunpack.c.h.b16 %v4153
        %v4189 = vunpack.c.l.b16 %v4154
        %v4190 = vunpack.c.h.b16 %v4154
        %v4191 = vunpack.c.l.b16 %v4155
        %v4192 = vunpack.c.h.b16 %v4155
        %v4193 = vunpack.c.l.b16 %v4156
        %v4194 = vunpack.c.h.b16 %v4156
        %v4195 = vunpack.c.l.b16 %v4157
        %v4196 = vunpack.c.h.b16 %v4157
        %v4197 = vunpack.c.l.b16 %v4158
        %v4198 = vunpack.c.h.b16 %v4158
        %v4199 = vunpack.c.l.b16 %v4159
        %v4200 = vunpack.c.h.b16 %v4159
        %v4201 = vunpack.c.l.b16 %v4160
        %v4202 = vunpack.c.h.b16 %v4160
        %v4203 = vunpack.c.l.b16 %v4161
        %v4204 = vunpack.c.h.b16 %v4161
        %v4205 = vunpack.c.l.b16 %v4162
        %v4206 = vunpack.c.h.b16 %v4162
        %v4207 = vunpack.c.l.b16 %v4163
        %v4208 = vunpack.c.h.b16 %v4163
        %v4209 = vunpack.c.l.b16 %v4164
        %v4210 = vunpack.c.h.b16 %v4164
        %v4211 = vunpack.c.l.b16 %v4165
        %v4212 = vunpack.c.h.b16 %v4165
        %v4213 = vunpack.c.l.b16 %v4166
        %v4214 = vunpack.c.h.b16 %v4166
        %v4215 = vpack.c.b16 %v4185, %v4183
        %v4216 = vpack.c.b16 %v4186, %v4184
        %v4217 = vpack.c.b16 %v4189, %v4187
        %v4218 = vpack.c.b16 %v4190, %v4188
        %v4219 = vpack.c.b16 %v4193, %v4191
        %v4220 = vpack.c.b16 %v4194, %v4192
        %v4221 = vpack.c.b16 %v4197, %v4195
        %v4222 = vpack.c.b16 %v4198, %v4196
        %v4223 = vpack.c.b16 %v4201, %v4199
        %v4224 = vpack.c.b16 %v4202, %v4200
        %v4225 = vpack.c.b16 %v4205, %v4203
        %v4226 = vpack.c.b16 %v4206, %v4204
        %v4227 = vpack.c.b16 %v4209, %v4207
        %v4228 = vpack.c.b16 %v4210, %v4208
        %v4229 = vpack.c.b16 %v4213, %v4211
        %v4230 = vpack.c.b16 %v4214, %v4212
        %4247 = vmatprep.subr.bf16.mxu0 %v4230
        %4248 = vmatpush1.bf16.msra.mxu0 %v4229
        %4249 = vmatprep.subr.bf16.mxu0 %v4228
        %4250 = vmatpush1.bf16.msra.mxu0 %v4227
        %4251 = vmatprep.subr.bf16.mxu0 %v4226
        %4252 = vmatpush1.bf16.msra.mxu0 %v4225
        %4253 = vmatprep.subr.bf16.mxu0 %v4224
        %4254 = vmatpush1.bf16.msra.mxu0 %v4223
        %4255 = vmatprep.subr.bf16.mxu0 %v4222
        %4256 = vmatpush1.bf16.msra.mxu0 %v4221
        %4257 = vmatprep.subr.bf16.mxu0 %v4220
        %4258 = vmatpush1.bf16.msra.mxu0 %v4219
        %4259 = vmatprep.subr.bf16.mxu0 %v4218
        %4260 = vmatpush1.bf16.msra.mxu0 %v4217
        %4261 = vmatprep.subr.bf16.mxu0 %v4216
        %4262 = vmatpush1.bf16.msra.mxu0 %v4215
        %4263 = vmatprep.subr.bf16.mxu0 0
        %4264 = vmatpush2.bf16.msra.mxu0 0
        %4265 = vmatprep.subr.bf16.mxu0 0
        %4266 = vmatpush2.bf16.msra.mxu0 0
        %4267 = vmatprep.subr.bf16.mxu0 0
        %4268 = vmatpush2.bf16.msra.mxu0 0
        %4269 = vmatprep.subr.bf16.mxu0 0
        %4270 = vmatpush2.bf16.msra.mxu0 0
        %4271 = vmatprep.subr.bf16.mxu0 0
        %4272 = vmatpush2.bf16.msra.mxu0 0
        %4273 = vmatprep.subr.bf16.mxu0 0
        %4274 = vmatpush2.bf16.msra.mxu0 0
        %4275 = vmatprep.subr.bf16.mxu0 0
        %4276 = vmatpush2.bf16.msra.mxu0 0
        %4277 = vmatprep.subr.bf16.mxu0 0
        %4278 = vmatpush2.bf16.msra.mxu0 0
        %4279 = vmatprep.mubr.bf16.mxu0 0
        %4280 = vmatmul.mubr.bf16.gmra.mxu0 %v3863
        %v4281 = vpop.f32.mrf.mxu0
        %v4282 = vadd.f32 0.0, %v4281
        %v4283 = vpop.f32.mrf.mxu0
        %v4284 = vadd.f32 0.0, %v4283
        %v4285 = vpop.f32.mrf.mxu0
        %v4286 = vadd.f32 0.0, %v4285
        %v4287 = vpop.f32.mrf.mxu0
        %v4288 = vadd.f32 0.0, %v4287
        %4289 = vmatprep.mubr.bf16.mxu0 0
        %4290 = vmatmul.mubr.bf16.gmra.mxu0 %v3864
        %v4291 = vpop.f32.mrf.mxu0
        %v4292 = vadd.f32 0.0, %v4291
        %v4293 = vpop.f32.mrf.mxu0
        %v4294 = vadd.f32 0.0, %v4293
        %v4295 = vpop.f32.mrf.mxu0
        %v4296 = vadd.f32 0.0, %v4295
        %v4297 = vpop.f32.mrf.mxu0
        %v4298 = vadd.f32 0.0, %v4297
        %4299 = vdwg.mxu0
        %v4300 = vrot.slane %v3982, 7
        %v4301 = vrot.slane %v3984, 7
        %v4302 = vrot.slane %v3986, 7
        %v4303 = vrot.slane %v3988, 7
        %v4304 = vrot.slane %v3992, 7
        %v4305 = vrot.slane %v3994, 7
        %v4306 = vrot.slane %v3996, 7
        %v4307 = vrot.slane %v3998, 7
        %v4308 = vsel %vm1207, %v4304, %v4306
        %v4309 = vsel %vm1207, %v4305, %v4307
        %v4310 = vsel %vm1207, %v4302, %v4304
        %v4311 = vsel %vm1207, %v4303, %v4305
        %v4312 = vsel %vm1207, %v4300, %v4302
        %v4313 = vsel %vm1207, %v4301, %v4303
        %v4314 = vsel %vm1207, %v4306, %v4300
        %v4315 = vsel %vm1207, %v4307, %v4301
        %vm4316 = vcmp.lt.s32.totalorder %v1206, 0
        %v4317 = vsub.s32 0, %v1206
        %v4318 = vsel %vm4316, %v4317, %v1206
        %v4319 = vshrl.u32 %v4318, 3
        %v4320 = vand.u32 %v4318, 7
        %v4321 = vsub.s32 0, %v4320
        %v4322 = vsel %vm4316, %v4321, %v4320
        %vm4323 = vcmp.lt.s32.totalorder %v1224, 0
        %v4324 = vsub.s32 0, %v1224
        %v4325 = vsel %vm4323, %v4324, %v1224
        %v4326 = vshrl.u32 %v4325, 3
        %v4327 = vand.u32 %v4325, 7
        %v4328 = vsub.s32 0, %v4327
        %v4329 = vsel %vm4323, %v4328, %v4327
        %vm4330 = vcmp.lt.s32.totalorder %v1225, 0
        %v4331 = vsub.s32 0, %v1225
        %v4332 = vsel %vm4330, %v4331, %v1225
        %v4333 = vshrl.u32 %v4332, 3
        %v4334 = vand.u32 %v4332, 7
        %v4335 = vsub.s32 0, %v4334
        %v4336 = vsel %vm4330, %v4335, %v4334
        %vm4337 = vcmp.lt.s32.totalorder %v1226, 0
        %v4338 = vsub.s32 0, %v1226
        %v4339 = vsel %vm4337, %v4338, %v1226
        %v4340 = vshrl.u32 %v4339, 3
        %v4341 = vand.u32 %v4339, 7
        %v4342 = vsub.s32 0, %v4341
        %v4343 = vsel %vm4337, %v4342, %v4341
        %vm4344 = vcmp.ne.s32.totalorder %v4322, 0
        %vm4345 = vcmp.ne.s32.totalorder %v4329, 0
        %vm4346 = vcmp.ne.s32.totalorder %v4336, 0
        %vm4347 = vcmp.ne.s32.totalorder %v4343, 0
        %vm4348 = vcmp.lt.s32.totalorder %v4322, 0
        %vm4349 = vcmp.lt.s32.totalorder %v4329, 0
        %vm4350 = vcmp.lt.s32.totalorder %v4336, 0
        %vm4351 = vcmp.lt.s32.totalorder %v4343, 0
        %vm4352 = vmand %vm4348, %vm4344
        %vm4353 = vmand %vm4349, %vm4345
        %vm4354 = vmand %vm4350, %vm4346
        %vm4355 = vmand %vm4351, %vm4347
        %v4356 = vadd.s32 %v4322, 8
        %v4357 = vadd.s32 %v4329, 8
        %v4358 = vadd.s32 %v4336, 8
        %v4359 = vadd.s32 %v4343, 8
        %v4360 = vsel %vm4352, %v4356, %v4322
        %v4361 = vsel %vm4353, %v4357, %v4329
        %v4362 = vsel %vm4354, %v4358, %v4336
        %v4363 = vsel %vm4355, %v4359, %v4343
        %vm4364 = vcmp.eq.s32.totalorder %v4360, 0
        %vm4365 = vcmp.eq.s32.totalorder %v4361, 0
        %vm4366 = vcmp.eq.s32.totalorder %v4362, 0
        %vm4367 = vcmp.eq.s32.totalorder %v4363, 0
        %v4368 = vsel %vm4364, 0.0, %v4314
        %v4369 = vsel %vm4364, 0.0, %v4315
        %v4370 = vsel %vm4365, 0.0, %v4312
        %v4371 = vsel %vm4365, 0.0, %v4313
        %v4372 = vsel %vm4366, 0.0, %v4310
        %v4373 = vsel %vm4366, 0.0, %v4311
        %v4374 = vsel %vm4367, 0.0, %v4308
        %v4375 = vsel %vm4367, 0.0, %v4309
        %v4376 = vadd.f32 %v4368, %v4132
        %v4377 = vadd.f32 %v4369, %v4134
        %v4378 = vadd.f32 %v4370, %v4136
        %v4379 = vadd.f32 %v4371, %v4138
        %v4380 = vadd.f32 %v4372, %v4142
        %v4381 = vadd.f32 %v4373, %v4144
        %v4382 = vadd.f32 %v4374, %v4146
        %v4383 = vadd.f32 %v4375, %v4148
        %v4384 = vrot.slane %v4282, 1
        %v4385 = vrot.slane %v4284, 1
        %v4386 = vrot.slane %v4286, 1
        %v4387 = vrot.slane %v4288, 1
        %v4388 = vrot.slane %v4292, 1
        %v4389 = vrot.slane %v4294, 1
        %v4390 = vrot.slane %v4296, 1
        %v4391 = vrot.slane %v4298, 1
        %v4392 = vsel %vm1495, %v4388, %v4390
        %v4393 = vsel %vm1495, %v4389, %v4391
        %v4394 = vsel %vm1495, %v4386, %v4388
        %v4395 = vsel %vm1495, %v4387, %v4389
        %v4396 = vsel %vm1495, %v4384, %v4386
        %v4397 = vsel %vm1495, %v4385, %v4387
        %v4398 = vsel %vm1495, %v4390, %v4384
        %v4399 = vsel %vm1495, %v4391, %v4385
        %vm4400 = vcmp.eq.s32.totalorder %v4360, 7
        %vm4401 = vcmp.eq.s32.totalorder %v4361, 7
        %vm4402 = vcmp.eq.s32.totalorder %v4362, 7
        %vm4403 = vcmp.eq.s32.totalorder %v4363, 7
        %v4404 = vsel %vm4400, 0.0, %v4396
        %v4405 = vsel %vm4400, 0.0, %v4397
        %v4406 = vsel %vm4401, 0.0, %v4394
        %v4407 = vsel %vm4401, 0.0, %v4395
        %v4408 = vsel %vm4402, 0.0, %v4392
        %v4409 = vsel %vm4402, 0.0, %v4393
        %v4410 = vsel %vm4403, 0.0, %v4398
        %v4411 = vsel %vm4403, 0.0, %v4399
        %v4412 = vadd.f32 %v4376, %v4404
        %v4413 = vadd.f32 %v4377, %v4405
        %v4414 = vadd.f32 %v4378, %v4406
        %v4415 = vadd.f32 %v4379, %v4407
        %v4416 = vadd.f32 %v4380, %v4408
        %v4417 = vadd.f32 %v4381, %v4409
        %v4418 = vadd.f32 %v4382, %v4410
        %v4419 = vadd.f32 %v4383, %v4411
        %v4420 = vld [vmem:[%s8] sm:$0x3]
        %v4422 = vlaneseq
        %v4423 = vshrl.u32 %v4422, 7
        %v4424 = vsub.s32 0, %v4423
        %v4425 = vrot.slane %v4420, %v4424
        %v4426 = vlaneseq
        %v4427 = vshrl.u32 %v4426, 7
        %v4428 = vsub.s32 1, %v4427
        %v4429 = vrot.slane %v4420, %v4428
        %v4432 = vadd.f32 %v4412, %v4425
        %v4433 = vadd.f32 %v4413, %v4429
        %v4434 = vadd.f32 %v4414, %v4425
        %v4435 = vadd.f32 %v4415, %v4429
        %v4436 = vadd.f32 %v4416, %v4425
        %v4437 = vadd.f32 %v4417, %v4429
        %v4438 = vadd.f32 %v4418, %v4425
        %v4439 = vadd.f32 %v4419, %v4429
        %v4448 = vcombine.low %v4432, %v4433
        %v4449 = vcombine.high %v4432, %v4433
        %v4451 = vunpack.c.l.s4 1983009808
        %v4452 = vunpack.c.0.s8 %v4451
        %v4453 = vlaneseq
        %v4454 = vshrl.u32 %v4453, 7
        %v4455 = vsub.s32 %v4452, %v4454
        %v4456 = vrot.slane %v4448, %v4455
        %v4458 = vunpack.c.l.s4 1983009808
        %v4459 = vunpack.c.0.s8 %v4458
        %v4460 = vlaneseq
        %v4461 = vshrl.u32 %v4460, 7
        %v4462 = vsub.s32 %v4459, %v4461
        %v4463 = vrot.slane %v4449, %v4462
        %v4464 = vcombine.high %v4456, %v4456
        %v4465 = vcombine.high %v4463, %v4463
        %v4466 = vcombine.low %v4434, %v4435
        %v4467 = vcombine.high %v4434, %v4435
        %v4469 = vunpack.c.l.s4 1983009808
        %v4470 = vunpack.c.0.s8 %v4469
        %v4471 = vlaneseq
        %v4472 = vshrl.u32 %v4471, 7
        %v4473 = vsub.s32 %v4470, %v4472
        %v4474 = vrot.slane %v4466, %v4473
        %v4476 = vunpack.c.l.s4 1983009808
        %v4477 = vunpack.c.0.s8 %v4476
        %v4478 = vlaneseq
        %v4479 = vshrl.u32 %v4478, 7
        %v4480 = vsub.s32 %v4477, %v4479
        %v4481 = vrot.slane %v4467, %v4480
        %v4482 = vcombine.high %v4474, %v4474
        %v4483 = vcombine.high %v4481, %v4481
        %v4484 = vcombine.low %v4436, %v4437
        %v4485 = vcombine.high %v4436, %v4437
        %v4487 = vunpack.c.l.s4 1983009808
        %v4488 = vunpack.c.0.s8 %v4487
        %v4489 = vlaneseq
        %v4490 = vshrl.u32 %v4489, 7
        %v4491 = vsub.s32 %v4488, %v4490
        %v4492 = vrot.slane %v4484, %v4491
        %v4494 = vunpack.c.l.s4 1983009808
        %v4495 = vunpack.c.0.s8 %v4494
        %v4496 = vlaneseq
        %v4497 = vshrl.u32 %v4496, 7
        %v4498 = vsub.s32 %v4495, %v4497
        %v4499 = vrot.slane %v4485, %v4498
        %v4500 = vcombine.high %v4492, %v4492
        %v4501 = vcombine.high %v4499, %v4499
        %v4502 = vcombine.low %v4438, %v4439
        %v4503 = vcombine.high %v4438, %v4439
        %v4505 = vunpack.c.l.s4 1983009808
        %v4506 = vunpack.c.0.s8 %v4505
        %v4507 = vlaneseq
        %v4508 = vshrl.u32 %v4507, 7
        %v4509 = vsub.s32 %v4506, %v4508
        %v4510 = vrot.slane %v4502, %v4509
        %v4512 = vunpack.c.l.s4 1983009808
        %v4513 = vunpack.c.0.s8 %v4512
        %v4514 = vlaneseq
        %v4515 = vshrl.u32 %v4514, 7
        %v4516 = vsub.s32 %v4513, %v4515
        %v4517 = vrot.slane %v4503, %v4516
        %v4518 = vcombine.high %v4510, %v4510
        %v4519 = vcombine.high %v4517, %v4517
        %v4521 = vunpack.c.l.s4 1983009808
        %v4522 = vunpack.c.0.s8 %v4521
        %v4523 = vlaneseq
        %v4524 = vshrl.u32 %v4523, 7
        %v4525 = vsub.s32 %v4522, %v4524
        %v4526 = vrot.slane %v4456, %v4525
        %v4527 = vcombine.high %v4526, %v4526
        %v4529 = vunpack.c.l.s4 1983009808
        %v4530 = vunpack.c.0.s8 %v4529
        %v4531 = vlaneseq
        %v4532 = vshrl.u32 %v4531, 7
        %v4533 = vsub.s32 %v4530, %v4532
        %v4534 = vrot.slane %v4464, %v4533
        %v4535 = vcombine.high %v4534, %v4534
        %v4537 = vunpack.c.l.s4 1983009808
        %v4538 = vunpack.c.0.s8 %v4537
        %v4539 = vlaneseq
        %v4540 = vshrl.u32 %v4539, 7
        %v4541 = vsub.s32 %v4538, %v4540
        %v4542 = vrot.slane %v4463, %v4541
        %v4543 = vcombine.high %v4542, %v4542
        %v4545 = vunpack.c.l.s4 1983009808
        %v4546 = vunpack.c.0.s8 %v4545
        %v4547 = vlaneseq
        %v4548 = vshrl.u32 %v4547, 7
        %v4549 = vsub.s32 %v4546, %v4548
        %v4550 = vrot.slane %v4465, %v4549
        %v4551 = vcombine.high %v4550, %v4550
        %v4553 = vunpack.c.l.s4 1983009808
        %v4554 = vunpack.c.0.s8 %v4553
        %v4555 = vlaneseq
        %v4556 = vshrl.u32 %v4555, 7
        %v4557 = vsub.s32 %v4554, %v4556
        %v4558 = vrot.slane %v4474, %v4557
        %v4559 = vcombine.high %v4558, %v4558
        %v4561 = vunpack.c.l.s4 1983009808
        %v4562 = vunpack.c.0.s8 %v4561
        %v4563 = vlaneseq
        %v4564 = vshrl.u32 %v4563, 7
        %v4565 = vsub.s32 %v4562, %v4564
        %v4566 = vrot.slane %v4482, %v4565
        %v4567 = vcombine.high %v4566, %v4566
        %v4569 = vunpack.c.l.s4 1983009808
        %v4570 = vunpack.c.0.s8 %v4569
        %v4571 = vlaneseq
        %v4572 = vshrl.u32 %v4571, 7
        %v4573 = vsub.s32 %v4570, %v4572
        %v4574 = vrot.slane %v4481, %v4573
        %v4575 = vcombine.high %v4574, %v4574
        %v4577 = vunpack.c.l.s4 1983009808
        %v4578 = vunpack.c.0.s8 %v4577
        %v4579 = vlaneseq
        %v4580 = vshrl.u32 %v4579, 7
        %v4581 = vsub.s32 %v4578, %v4580
        %v4582 = vrot.slane %v4483, %v4581
        %v4583 = vcombine.high %v4582, %v4582
        %v4585 = vunpack.c.l.s4 1983009808
        %v4586 = vunpack.c.0.s8 %v4585
        %v4587 = vlaneseq
        %v4588 = vshrl.u32 %v4587, 7
        %v4589 = vsub.s32 %v4586, %v4588
        %v4590 = vrot.slane %v4492, %v4589
        %v4591 = vcombine.high %v4590, %v4590
        %v4593 = vunpack.c.l.s4 1983009808
        %v4594 = vunpack.c.0.s8 %v4593
        %v4595 = vlaneseq
        %v4596 = vshrl.u32 %v4595, 7
        %v4597 = vsub.s32 %v4594, %v4596
        %v4598 = vrot.slane %v4500, %v4597
        %v4599 = vcombine.high %v4598, %v4598
        %v4601 = vunpack.c.l.s4 1983009808
        %v4602 = vunpack.c.0.s8 %v4601
        %v4603 = vlaneseq
        %v4604 = vshrl.u32 %v4603, 7
        %v4605 = vsub.s32 %v4602, %v4604
        %v4606 = vrot.slane %v4499, %v4605
        %v4607 = vcombine.high %v4606, %v4606
        %v4609 = vunpack.c.l.s4 1983009808
        %v4610 = vunpack.c.0.s8 %v4609
        %v4611 = vlaneseq
        %v4612 = vshrl.u32 %v4611, 7
        %v4613 = vsub.s32 %v4610, %v4612
        %v4614 = vrot.slane %v4501, %v4613
        %v4615 = vcombine.high %v4614, %v4614
        %v4617 = vunpack.c.l.s4 1983009808
        %v4618 = vunpack.c.0.s8 %v4617
        %v4619 = vlaneseq
        %v4620 = vshrl.u32 %v4619, 7
        %v4621 = vsub.s32 %v4618, %v4620
        %v4622 = vrot.slane %v4510, %v4621
        %v4623 = vcombine.high %v4622, %v4622
        %v4625 = vunpack.c.l.s4 1983009808
        %v4626 = vunpack.c.0.s8 %v4625
        %v4627 = vlaneseq
        %v4628 = vshrl.u32 %v4627, 7
        %v4629 = vsub.s32 %v4626, %v4628
        %v4630 = vrot.slane %v4518, %v4629
        %v4631 = vcombine.high %v4630, %v4630
        %v4633 = vunpack.c.l.s4 1983009808
        %v4634 = vunpack.c.0.s8 %v4633
        %v4635 = vlaneseq
        %v4636 = vshrl.u32 %v4635, 7
        %v4637 = vsub.s32 %v4634, %v4636
        %v4638 = vrot.slane %v4517, %v4637
        %v4639 = vcombine.high %v4638, %v4638
        %v4641 = vunpack.c.l.s4 1983009808
        %v4642 = vunpack.c.0.s8 %v4641
        %v4643 = vlaneseq
        %v4644 = vshrl.u32 %v4643, 7
        %v4645 = vsub.s32 %v4642, %v4644
        %v4646 = vrot.slane %v4519, %v4645
        %v4647 = vcombine.high %v4646, %v4646
        %v4680 = vsel %vm1935, %v4526, -inf
        %v4681 = vrot.slane %v4680, 4
        %v4682 = vmax.f32 %v4680, %v4681
        %v4683 = vrot.slane %v4682, 2
        %v4684 = vmax.f32 %v4682, %v4683
        %v4685 = vrot.slane %v4684, 1
        %v4686 = vmax.f32 %v4684, %v4685
        %v4687 = vsel %vm1935, %v4527, -inf
        %v4688 = vrot.slane %v4687, 4
        %v4689 = vmax.f32 %v4687, %v4688
        %v4690 = vrot.slane %v4689, 2
        %v4691 = vmax.f32 %v4689, %v4690
        %v4692 = vrot.slane %v4691, 1
        %v4693 = vmax.f32 %v4691, %v4692
        %v4694 = vsel %vm1935, %v4534, -inf
        %v4695 = vrot.slane %v4694, 4
        %v4696 = vmax.f32 %v4694, %v4695
        %v4697 = vrot.slane %v4696, 2
        %v4698 = vmax.f32 %v4696, %v4697
        %v4699 = vrot.slane %v4698, 1
        %v4700 = vmax.f32 %v4698, %v4699
        %v4701 = vsel %vm1935, %v4535, -inf
        %v4702 = vrot.slane %v4701, 4
        %v4703 = vmax.f32 %v4701, %v4702
        %v4704 = vrot.slane %v4703, 2
        %v4705 = vmax.f32 %v4703, %v4704
        %v4706 = vrot.slane %v4705, 1
        %v4707 = vmax.f32 %v4705, %v4706
        %v4708 = vsel %vm1935, %v4542, -inf
        %v4709 = vrot.slane %v4708, 4
        %v4710 = vmax.f32 %v4708, %v4709
        %v4711 = vrot.slane %v4710, 2
        %v4712 = vmax.f32 %v4710, %v4711
        %v4713 = vrot.slane %v4712, 1
        %v4714 = vmax.f32 %v4712, %v4713
        %v4715 = vsel %vm1935, %v4543, -inf
        %v4716 = vrot.slane %v4715, 4
        %v4717 = vmax.f32 %v4715, %v4716
        %v4718 = vrot.slane %v4717, 2
        %v4719 = vmax.f32 %v4717, %v4718
        %v4720 = vrot.slane %v4719, 1
        %v4721 = vmax.f32 %v4719, %v4720
        %v4722 = vsel %vm1935, %v4550, -inf
        %v4723 = vrot.slane %v4722, 4
        %v4724 = vmax.f32 %v4722, %v4723
        %v4725 = vrot.slane %v4724, 2
        %v4726 = vmax.f32 %v4724, %v4725
        %v4727 = vrot.slane %v4726, 1
        %v4728 = vmax.f32 %v4726, %v4727
        %v4729 = vsel %vm1935, %v4551, -inf
        %v4730 = vrot.slane %v4729, 4
        %v4731 = vmax.f32 %v4729, %v4730
        %v4732 = vrot.slane %v4731, 2
        %v4733 = vmax.f32 %v4731, %v4732
        %v4734 = vrot.slane %v4733, 1
        %v4735 = vmax.f32 %v4733, %v4734
        %v4736 = vsel %vm1935, %v4558, -inf
        %v4737 = vrot.slane %v4736, 4
        %v4738 = vmax.f32 %v4736, %v4737
        %v4739 = vrot.slane %v4738, 2
        %v4740 = vmax.f32 %v4738, %v4739
        %v4741 = vrot.slane %v4740, 1
        %v4742 = vmax.f32 %v4740, %v4741
        %v4743 = vsel %vm1935, %v4559, -inf
        %v4744 = vrot.slane %v4743, 4
        %v4745 = vmax.f32 %v4743, %v4744
        %v4746 = vrot.slane %v4745, 2
        %v4747 = vmax.f32 %v4745, %v4746
        %v4748 = vrot.slane %v4747, 1
        %v4749 = vmax.f32 %v4747, %v4748
        %v4750 = vsel %vm1935, %v4566, -inf
        %v4751 = vrot.slane %v4750, 4
        %v4752 = vmax.f32 %v4750, %v4751
        %v4753 = vrot.slane %v4752, 2
        %v4754 = vmax.f32 %v4752, %v4753
        %v4755 = vrot.slane %v4754, 1
        %v4756 = vmax.f32 %v4754, %v4755
        %v4757 = vsel %vm1935, %v4567, -inf
        %v4758 = vrot.slane %v4757, 4
        %v4759 = vmax.f32 %v4757, %v4758
        %v4760 = vrot.slane %v4759, 2
        %v4761 = vmax.f32 %v4759, %v4760
        %v4762 = vrot.slane %v4761, 1
        %v4763 = vmax.f32 %v4761, %v4762
        %v4764 = vsel %vm1935, %v4574, -inf
        %v4765 = vrot.slane %v4764, 4
        %v4766 = vmax.f32 %v4764, %v4765
        %v4767 = vrot.slane %v4766, 2
        %v4768 = vmax.f32 %v4766, %v4767
        %v4769 = vrot.slane %v4768, 1
        %v4770 = vmax.f32 %v4768, %v4769
        %v4771 = vsel %vm1935, %v4575, -inf
        %v4772 = vrot.slane %v4771, 4
        %v4773 = vmax.f32 %v4771, %v4772
        %v4774 = vrot.slane %v4773, 2
        %v4775 = vmax.f32 %v4773, %v4774
        %v4776 = vrot.slane %v4775, 1
        %v4777 = vmax.f32 %v4775, %v4776
        %v4778 = vsel %vm1935, %v4582, -inf
        %v4779 = vrot.slane %v4778, 4
        %v4780 = vmax.f32 %v4778, %v4779
        %v4781 = vrot.slane %v4780, 2
        %v4782 = vmax.f32 %v4780, %v4781
        %v4783 = vrot.slane %v4782, 1
        %v4784 = vmax.f32 %v4782, %v4783
        %v4785 = vsel %vm1935, %v4583, -inf
        %v4786 = vrot.slane %v4785, 4
        %v4787 = vmax.f32 %v4785, %v4786
        %v4788 = vrot.slane %v4787, 2
        %v4789 = vmax.f32 %v4787, %v4788
        %v4790 = vrot.slane %v4789, 1
        %v4791 = vmax.f32 %v4789, %v4790
        %v4792 = vsel %vm1935, %v4590, -inf
        %v4793 = vrot.slane %v4792, 4
        %v4794 = vmax.f32 %v4792, %v4793
        %v4795 = vrot.slane %v4794, 2
        %v4796 = vmax.f32 %v4794, %v4795
        %v4797 = vrot.slane %v4796, 1
        %v4798 = vmax.f32 %v4796, %v4797
        %v4799 = vsel %vm1935, %v4591, -inf
        %v4800 = vrot.slane %v4799, 4
        %v4801 = vmax.f32 %v4799, %v4800
        %v4802 = vrot.slane %v4801, 2
        %v4803 = vmax.f32 %v4801, %v4802
        %v4804 = vrot.slane %v4803, 1
        %v4805 = vmax.f32 %v4803, %v4804
        %v4806 = vsel %vm1935, %v4598, -inf
        %v4807 = vrot.slane %v4806, 4
        %v4808 = vmax.f32 %v4806, %v4807
        %v4809 = vrot.slane %v4808, 2
        %v4810 = vmax.f32 %v4808, %v4809
        %v4811 = vrot.slane %v4810, 1
        %v4812 = vmax.f32 %v4810, %v4811
        %v4813 = vsel %vm1935, %v4599, -inf
        %v4814 = vrot.slane %v4813, 4
        %v4815 = vmax.f32 %v4813, %v4814
        %v4816 = vrot.slane %v4815, 2
        %v4817 = vmax.f32 %v4815, %v4816
        %v4818 = vrot.slane %v4817, 1
        %v4819 = vmax.f32 %v4817, %v4818
        %v4820 = vsel %vm1935, %v4606, -inf
        %v4821 = vrot.slane %v4820, 4
        %v4822 = vmax.f32 %v4820, %v4821
        %v4823 = vrot.slane %v4822, 2
        %v4824 = vmax.f32 %v4822, %v4823
        %v4825 = vrot.slane %v4824, 1
        %v4826 = vmax.f32 %v4824, %v4825
        %v4827 = vsel %vm1935, %v4607, -inf
        %v4828 = vrot.slane %v4827, 4
        %v4829 = vmax.f32 %v4827, %v4828
        %v4830 = vrot.slane %v4829, 2
        %v4831 = vmax.f32 %v4829, %v4830
        %v4832 = vrot.slane %v4831, 1
        %v4833 = vmax.f32 %v4831, %v4832
        %v4834 = vsel %vm1935, %v4614, -inf
        %v4835 = vrot.slane %v4834, 4
        %v4836 = vmax.f32 %v4834, %v4835
        %v4837 = vrot.slane %v4836, 2
        %v4838 = vmax.f32 %v4836, %v4837
        %v4839 = vrot.slane %v4838, 1
        %v4840 = vmax.f32 %v4838, %v4839
        %v4841 = vsel %vm1935, %v4615, -inf
        %v4842 = vrot.slane %v4841, 4
        %v4843 = vmax.f32 %v4841, %v4842
        %v4844 = vrot.slane %v4843, 2
        %v4845 = vmax.f32 %v4843, %v4844
        %v4846 = vrot.slane %v4845, 1
        %v4847 = vmax.f32 %v4845, %v4846
        %v4848 = vsel %vm1935, %v4622, -inf
        %v4849 = vrot.slane %v4848, 4
        %v4850 = vmax.f32 %v4848, %v4849
        %v4851 = vrot.slane %v4850, 2
        %v4852 = vmax.f32 %v4850, %v4851
        %v4853 = vrot.slane %v4852, 1
        %v4854 = vmax.f32 %v4852, %v4853
        %v4855 = vsel %vm1935, %v4623, -inf
        %v4856 = vrot.slane %v4855, 4
        %v4857 = vmax.f32 %v4855, %v4856
        %v4858 = vrot.slane %v4857, 2
        %v4859 = vmax.f32 %v4857, %v4858
        %v4860 = vrot.slane %v4859, 1
        %v4861 = vmax.f32 %v4859, %v4860
        %v4862 = vsel %vm1935, %v4630, -inf
        %v4863 = vrot.slane %v4862, 4
        %v4864 = vmax.f32 %v4862, %v4863
        %v4865 = vrot.slane %v4864, 2
        %v4866 = vmax.f32 %v4864, %v4865
        %v4867 = vrot.slane %v4866, 1
        %v4868 = vmax.f32 %v4866, %v4867
        %v4869 = vsel %vm1935, %v4631, -inf
        %v4870 = vrot.slane %v4869, 4
        %v4871 = vmax.f32 %v4869, %v4870
        %v4872 = vrot.slane %v4871, 2
        %v4873 = vmax.f32 %v4871, %v4872
        %v4874 = vrot.slane %v4873, 1
        %v4875 = vmax.f32 %v4873, %v4874
        %v4876 = vsel %vm1935, %v4638, -inf
        %v4877 = vrot.slane %v4876, 4
        %v4878 = vmax.f32 %v4876, %v4877
        %v4879 = vrot.slane %v4878, 2
        %v4880 = vmax.f32 %v4878, %v4879
        %v4881 = vrot.slane %v4880, 1
        %v4882 = vmax.f32 %v4880, %v4881
        %v4883 = vsel %vm1935, %v4639, -inf
        %v4884 = vrot.slane %v4883, 4
        %v4885 = vmax.f32 %v4883, %v4884
        %v4886 = vrot.slane %v4885, 2
        %v4887 = vmax.f32 %v4885, %v4886
        %v4888 = vrot.slane %v4887, 1
        %v4889 = vmax.f32 %v4887, %v4888
        %v4890 = vsel %vm1935, %v4646, -inf
        %v4891 = vrot.slane %v4890, 4
        %v4892 = vmax.f32 %v4890, %v4891
        %v4893 = vrot.slane %v4892, 2
        %v4894 = vmax.f32 %v4892, %v4893
        %v4895 = vrot.slane %v4894, 1
        %v4896 = vmax.f32 %v4894, %v4895
        %v4897 = vsel %vm1935, %v4647, -inf
        %v4898 = vrot.slane %v4897, 4
        %v4899 = vmax.f32 %v4897, %v4898
        %v4900 = vrot.slane %v4899, 2
        %v4901 = vmax.f32 %v4899, %v4900
        %v4902 = vrot.slane %v4901, 1
        %v4903 = vmax.f32 %v4901, %v4902
        %v4904 = vtanh.pop %v4686
        %v4905 = vtanh.pop %v4693
        %v4906 = vtanh.pop %v4700
        %v4907 = vtanh.pop %v4707
        %v4908 = vtanh.pop %v4714
        %v4909 = vtanh.pop %v4721
        %v4910 = vtanh.pop %v4728
        %v4911 = vtanh.pop %v4735
        %v4912 = vtanh.pop %v4742
        %v4913 = vtanh.pop %v4749
        %v4914 = vtanh.pop %v4756
        %v4915 = vtanh.pop %v4763
        %v4916 = vtanh.pop %v4770
        %v4917 = vtanh.pop %v4777
        %v4918 = vtanh.pop %v4784
        %v4919 = vtanh.pop %v4791
        %v4920 = vtanh.pop %v4798
        %v4921 = vtanh.pop %v4805
        %v4922 = vtanh.pop %v4812
        %v4923 = vtanh.pop %v4819
        %v4924 = vtanh.pop %v4826
        %v4925 = vtanh.pop %v4833
        %v4926 = vtanh.pop %v4840
        %v4927 = vtanh.pop %v4847
        %v4928 = vtanh.pop %v4854
        %v4929 = vtanh.pop %v4861
        %v4930 = vtanh.pop %v4868
        %v4931 = vtanh.pop %v4875
        %v4932 = vtanh.pop %v4882
        %v4933 = vtanh.pop %v4889
        %v4934 = vtanh.pop %v4896
        %v4935 = vtanh.pop %v4903
        %v4936 = vpack.c.bf16 %v4904, %v4904
        %v4937 = vpack.c.bf16 %v4905, %v4905
        %v4938 = vpack.c.bf16 %v4906, %v4906
        %v4939 = vpack.c.bf16 %v4907, %v4907
        %v4940 = vpack.c.bf16 %v4908, %v4908
        %v4941 = vpack.c.bf16 %v4909, %v4909
        %v4942 = vpack.c.bf16 %v4910, %v4910
        %v4943 = vpack.c.bf16 %v4911, %v4911
        %v4944 = vpack.c.bf16 %v4912, %v4912
        %v4945 = vpack.c.bf16 %v4913, %v4913
        %v4946 = vpack.c.bf16 %v4914, %v4914
        %v4947 = vpack.c.bf16 %v4915, %v4915
        %v4948 = vpack.c.bf16 %v4916, %v4916
        %v4949 = vpack.c.bf16 %v4917, %v4917
        %v4950 = vpack.c.bf16 %v4918, %v4918
        %v4951 = vpack.c.bf16 %v4919, %v4919
        %v4952 = vpack.c.bf16 %v4920, %v4920
        %v4953 = vpack.c.bf16 %v4921, %v4921
        %v4954 = vpack.c.bf16 %v4922, %v4922
        %v4955 = vpack.c.bf16 %v4923, %v4923
        %v4956 = vpack.c.bf16 %v4924, %v4924
        %v4957 = vpack.c.bf16 %v4925, %v4925
        %v4958 = vpack.c.bf16 %v4926, %v4926
        %v4959 = vpack.c.bf16 %v4927, %v4927
        %v4960 = vpack.c.bf16 %v4928, %v4928
        %v4961 = vpack.c.bf16 %v4929, %v4929
        %v4962 = vpack.c.bf16 %v4930, %v4930
        %v4963 = vpack.c.bf16 %v4931, %v4931
        %v4964 = vpack.c.bf16 %v4932, %v4932
        %v4965 = vpack.c.bf16 %v4933, %v4933
        %v4966 = vpack.c.bf16 %v4934, %v4934
        %v4967 = vpack.c.bf16 %v4935, %v4935
        %v4968 = vld [vmem:[#allocation5] sm:$0xf]
        %v4969 = vld [vmem:[#allocation5 + $0x4] sm:$0xf]
        %v4970 = vld [vmem:[#allocation5 + $0x8] sm:$0xf]
        %v4971 = vld [vmem:[#allocation5 + $0xc] sm:$0xf]
        %v4972 = vld [vmem:[#allocation5 + $0x10] sm:$0xf]
        %v4973 = vld [vmem:[#allocation5 + $0x14] sm:$0xf]
        %v4974 = vld [vmem:[#allocation5 + $0x18] sm:$0xf]
        %v4975 = vld [vmem:[#allocation5 + $0x1c] sm:$0xf]
        %v4976 = vld [vmem:[#allocation5 + $0x20] sm:$0xf]
        %v4977 = vld [vmem:[#allocation5 + $0x24] sm:$0xf]
        %v4978 = vld [vmem:[#allocation5 + $0x28] sm:$0xf]
        %v4979 = vld [vmem:[#allocation5 + $0x2c] sm:$0xf]
        %v4980 = vld [vmem:[#allocation5 + $0x30] sm:$0xf]
        %v4981 = vld [vmem:[#allocation5 + $0x34] sm:$0xf]
        %v4982 = vld [vmem:[#allocation5 + $0x38] sm:$0xf]
        %v4983 = vld [vmem:[#allocation5 + $0x3c] sm:$0xf]
        %v4984 = vld [vmem:[#allocation5 + $0x40] sm:$0xf]
        %v4985 = vld [vmem:[#allocation5 + $0x44] sm:$0xf]
        %v4986 = vld [vmem:[#allocation5 + $0x48] sm:$0xf]
        %v4987 = vld [vmem:[#allocation5 + $0x4c] sm:$0xf]
        %v4988 = vld [vmem:[#allocation5 + $0x50] sm:$0xf]
        %v4989 = vld [vmem:[#allocation5 + $0x54] sm:$0xf]
        %v4990 = vld [vmem:[#allocation5 + $0x58] sm:$0xf]
        %v4991 = vld [vmem:[#allocation5 + $0x5c] sm:$0xf]
        %v4992 = vld [vmem:[#allocation5 + $0x60] sm:$0xf]
        %v4993 = vld [vmem:[#allocation5 + $0x64] sm:$0xf]
        %v4994 = vld [vmem:[#allocation5 + $0x68] sm:$0xf]
        %v4995 = vld [vmem:[#allocation5 + $0x6c] sm:$0xf]
        %v4996 = vld [vmem:[#allocation5 + $0x70] sm:$0xf]
        %v4997 = vld [vmem:[#allocation5 + $0x74] sm:$0xf]
        %v4998 = vld [vmem:[#allocation5 + $0x78] sm:$0xf]
        %v4999 = vld [vmem:[#allocation5 + $0x7c] sm:$0xf]
        %v5032 = vunpack.c.l.b16 %v4936
        %v5033 = vunpack.c.l.b16 %v4937
        %v5034 = vunpack.c.l.b16 %v4938
        %v5035 = vunpack.c.l.b16 %v4939
        %v5036 = vunpack.c.l.b16 %v4940
        %v5037 = vunpack.c.l.b16 %v4941
        %v5038 = vunpack.c.l.b16 %v4942
        %v5039 = vunpack.c.l.b16 %v4943
        %v5040 = vunpack.c.l.b16 %v4944
        %v5041 = vunpack.c.l.b16 %v4945
        %v5042 = vunpack.c.l.b16 %v4946
        %v5043 = vunpack.c.l.b16 %v4947
        %v5044 = vunpack.c.l.b16 %v4948
        %v5045 = vunpack.c.l.b16 %v4949
        %v5046 = vunpack.c.l.b16 %v4950
        %v5047 = vunpack.c.l.b16 %v4951
        %v5048 = vunpack.c.l.b16 %v4952
        %v5049 = vunpack.c.l.b16 %v4953
        %v5050 = vunpack.c.l.b16 %v4954
        %v5051 = vunpack.c.l.b16 %v4955
        %v5052 = vunpack.c.l.b16 %v4956
        %v5053 = vunpack.c.l.b16 %v4957
        %v5054 = vunpack.c.l.b16 %v4958
        %v5055 = vunpack.c.l.b16 %v4959
        %v5056 = vunpack.c.l.b16 %v4960
        %v5057 = vunpack.c.l.b16 %v4961
        %v5058 = vunpack.c.l.b16 %v4962
        %v5059 = vunpack.c.l.b16 %v4963
        %v5060 = vunpack.c.l.b16 %v4964
        %v5061 = vunpack.c.l.b16 %v4965
        %v5062 = vunpack.c.l.b16 %v4966
        %v5063 = vunpack.c.l.b16 %v4967
        %v5064 = vsel %vm2656, %v5034, %v5032
        %v5065 = vsel %vm2658, %v5036, %v5064
        %v5066 = vsel %vm2660, %v5038, %v5065
        %v5067 = vsel %vm2662, %v5040, %v5066
        %v5068 = vsel %vm2664, %v5042, %v5067
        %v5069 = vsel %vm2666, %v5044, %v5068
        %v5070 = vsel %vm2668, %v5046, %v5069
        %v5071 = vsel %vm2656, %v5035, %v5033
        %v5072 = vsel %vm2658, %v5037, %v5071
        %v5073 = vsel %vm2660, %v5039, %v5072
        %v5074 = vsel %vm2662, %v5041, %v5073
        %v5075 = vsel %vm2664, %v5043, %v5074
        %v5076 = vsel %vm2666, %v5045, %v5075
        %v5077 = vsel %vm2668, %v5047, %v5076
        %v5078 = vsel %vm2656, %v5050, %v5048
        %v5079 = vsel %vm2658, %v5052, %v5078
        %v5080 = vsel %vm2660, %v5054, %v5079
        %v5081 = vsel %vm2662, %v5056, %v5080
        %v5082 = vsel %vm2664, %v5058, %v5081
        %v5083 = vsel %vm2666, %v5060, %v5082
        %v5084 = vsel %vm2668, %v5062, %v5083
        %v5085 = vsel %vm2656, %v5051, %v5049
        %v5086 = vsel %vm2658, %v5053, %v5085
        %v5087 = vsel %vm2660, %v5055, %v5086
        %v5088 = vsel %vm2662, %v5057, %v5087
        %v5089 = vsel %vm2664, %v5059, %v5088
        %v5090 = vsel %vm2666, %v5061, %v5089
        %v5091 = vsel %vm2668, %v5063, %v5090
        %v5092 = vpack.c.b16 %v5084, %v5070
        %v5093 = vpack.c.b16 %v5091, %v5077
        %v5128 = vunpack.c.l.b16 %v4968
        %v5129 = vunpack.c.l.b16 %v4969
        %v5130 = vunpack.c.l.b16 %v4970
        %v5131 = vunpack.c.l.b16 %v4971
        %v5132 = vunpack.c.l.b16 %v4972
        %v5133 = vunpack.c.l.b16 %v4973
        %v5134 = vunpack.c.l.b16 %v4974
        %v5135 = vunpack.c.l.b16 %v4975
        %v5136 = vunpack.c.l.b16 %v4976
        %v5137 = vunpack.c.l.b16 %v4977
        %v5138 = vunpack.c.l.b16 %v4978
        %v5139 = vunpack.c.l.b16 %v4979
        %v5140 = vunpack.c.l.b16 %v4980
        %v5141 = vunpack.c.l.b16 %v4981
        %v5142 = vunpack.c.l.b16 %v4982
        %v5143 = vunpack.c.l.b16 %v4983
        %v5144 = vunpack.c.l.b16 %v4984
        %v5145 = vunpack.c.l.b16 %v4985
        %v5146 = vunpack.c.l.b16 %v4986
        %v5147 = vunpack.c.l.b16 %v4987
        %v5148 = vunpack.c.l.b16 %v4988
        %v5149 = vunpack.c.l.b16 %v4989
        %v5150 = vunpack.c.l.b16 %v4990
        %v5151 = vunpack.c.l.b16 %v4991
        %v5152 = vunpack.c.l.b16 %v4992
        %v5153 = vunpack.c.l.b16 %v4993
        %v5154 = vunpack.c.l.b16 %v4994
        %v5155 = vunpack.c.l.b16 %v4995
        %v5156 = vunpack.c.l.b16 %v4996
        %v5157 = vunpack.c.l.b16 %v4997
        %v5158 = vunpack.c.l.b16 %v4998
        %v5159 = vunpack.c.l.b16 %v4999
        %v5160 = vpack.c.b16 %v5129, %v5128
        %v5161 = vpack.c.b16 %v5131, %v5130
        %v5162 = vpack.c.b16 %v5133, %v5132
        %v5163 = vpack.c.b16 %v5135, %v5134
        %v5164 = vpack.c.b16 %v5137, %v5136
        %v5165 = vpack.c.b16 %v5139, %v5138
        %v5166 = vpack.c.b16 %v5141, %v5140
        %v5167 = vpack.c.b16 %v5143, %v5142
        %v5168 = vpack.c.b16 %v5145, %v5144
        %v5169 = vpack.c.b16 %v5147, %v5146
        %v5170 = vpack.c.b16 %v5149, %v5148
        %v5171 = vpack.c.b16 %v5151, %v5150
        %v5172 = vpack.c.b16 %v5153, %v5152
        %v5173 = vpack.c.b16 %v5155, %v5154
        %v5174 = vpack.c.b16 %v5157, %v5156
        %v5175 = vpack.c.b16 %v5159, %v5158
        %5192 = vmatprep.subr.bf16.mxu0 0
        %5193 = vmatpush1.bf16.msra.mxu0 %v5167
        %5194 = vmatprep.subr.bf16.mxu0 0
        %5195 = vmatpush1.bf16.msra.mxu0 %v5166
        %5196 = vmatprep.subr.bf16.mxu0 0
        %5197 = vmatpush1.bf16.msra.mxu0 %v5165
        %5198 = vmatprep.subr.bf16.mxu0 0
        %5199 = vmatpush1.bf16.msra.mxu0 %v5164
        %5200 = vmatprep.subr.bf16.mxu0 0
        %5201 = vmatpush1.bf16.msra.mxu0 %v5163
        %5202 = vmatprep.subr.bf16.mxu0 0
        %5203 = vmatpush1.bf16.msra.mxu0 %v5162
        %5204 = vmatprep.subr.bf16.mxu0 0
        %5205 = vmatpush1.bf16.msra.mxu0 %v5161
        %5206 = vmatprep.subr.bf16.mxu0 0
        %5207 = vmatpush1.bf16.msra.mxu0 %v5160
        %5208 = vmatprep.subr.bf16.mxu0 0
        %5209 = vmatpush2.bf16.msra.mxu0 %v5175
        %5210 = vmatprep.subr.bf16.mxu0 0
        %5211 = vmatpush2.bf16.msra.mxu0 %v5174
        %5212 = vmatprep.subr.bf16.mxu0 0
        %5213 = vmatpush2.bf16.msra.mxu0 %v5173
        %5214 = vmatprep.subr.bf16.mxu0 0
        %5215 = vmatpush2.bf16.msra.mxu0 %v5172
        %5216 = vmatprep.subr.bf16.mxu0 0
        %5217 = vmatpush2.bf16.msra.mxu0 %v5171
        %5218 = vmatprep.subr.bf16.mxu0 0
        %5219 = vmatpush2.bf16.msra.mxu0 %v5170
        %5220 = vmatprep.subr.bf16.mxu0 0
        %5221 = vmatpush2.bf16.msra.mxu0 %v5169
        %5222 = vmatprep.subr.bf16.mxu0 0
        %5223 = vmatpush2.bf16.msra.mxu0 %v5168
        %5224 = vmatprep.mubr.bf16.mxu0 %v5093
        %5225 = vmatmul.mubr.bf16.gmra.mxu0 %v5092
        %v5226 = vpop.f32.mrf.mxu0
        %v5227 = vadd.f32 0.0, %v5226
        %v5228 = vpop.f32.mrf.mxu0
        %v5229 = vpop.f32.mrf.mxu0
        %v5230 = vadd.f32 0.0, %v5229
        %v5231 = vpop.f32.mrf.mxu0
        %5232 = vdwg.mxu0
        %s5233 = scalar_lea.vmem [#allocation5], 128
        %v5234 = vld [vmem:[%s5233] sm:$0xf]
        %v5235 = vld [vmem:[%s5233 + $0x4] sm:$0xf]
        %v5236 = vld [vmem:[%s5233 + $0x8] sm:$0xf]
        %v5237 = vld [vmem:[%s5233 + $0xc] sm:$0xf]
        %v5238 = vld [vmem:[%s5233 + $0x10] sm:$0xf]
        %v5239 = vld [vmem:[%s5233 + $0x14] sm:$0xf]
        %v5240 = vld [vmem:[%s5233 + $0x18] sm:$0xf]
        %v5241 = vld [vmem:[%s5233 + $0x1c] sm:$0xf]
        %v5242 = vld [vmem:[%s5233 + $0x20] sm:$0xf]
        %v5243 = vld [vmem:[%s5233 + $0x24] sm:$0xf]
        %v5244 = vld [vmem:[%s5233 + $0x28] sm:$0xf]
        %v5245 = vld [vmem:[%s5233 + $0x2c] sm:$0xf]
        %v5246 = vld [vmem:[%s5233 + $0x30] sm:$0xf]
        %v5247 = vld [vmem:[%s5233 + $0x34] sm:$0xf]
        %v5248 = vld [vmem:[%s5233 + $0x38] sm:$0xf]
        %v5249 = vld [vmem:[%s5233 + $0x3c] sm:$0xf]
        %v5250 = vld [vmem:[%s5233 + $0x40] sm:$0xf]
        %v5251 = vld [vmem:[%s5233 + $0x44] sm:$0xf]
        %v5252 = vld [vmem:[%s5233 + $0x48] sm:$0xf]
        %v5253 = vld [vmem:[%s5233 + $0x4c] sm:$0xf]
        %v5254 = vld [vmem:[%s5233 + $0x50] sm:$0xf]
        %v5255 = vld [vmem:[%s5233 + $0x54] sm:$0xf]
        %v5256 = vld [vmem:[%s5233 + $0x58] sm:$0xf]
        %v5257 = vld [vmem:[%s5233 + $0x5c] sm:$0xf]
        %v5258 = vld [vmem:[%s5233 + $0x60] sm:$0xf]
        %v5259 = vld [vmem:[%s5233 + $0x64] sm:$0xf]
        %v5260 = vld [vmem:[%s5233 + $0x68] sm:$0xf]
        %v5261 = vld [vmem:[%s5233 + $0x6c] sm:$0xf]
        %v5262 = vld [vmem:[%s5233 + $0x70] sm:$0xf]
        %v5263 = vld [vmem:[%s5233 + $0x74] sm:$0xf]
        %v5264 = vld [vmem:[%s5233 + $0x78] sm:$0xf]
        %v5265 = vld [vmem:[%s5233 + $0x7c] sm:$0xf]
        %v5298 = vunpack.c.l.b16 %v5234
        %v5299 = vunpack.c.l.b16 %v5235
        %v5300 = vunpack.c.l.b16 %v5236
        %v5301 = vunpack.c.l.b16 %v5237
        %v5302 = vunpack.c.l.b16 %v5238
        %v5303 = vunpack.c.l.b16 %v5239
        %v5304 = vunpack.c.l.b16 %v5240
        %v5305 = vunpack.c.l.b16 %v5241
        %v5306 = vunpack.c.l.b16 %v5242
        %v5307 = vunpack.c.l.b16 %v5243
        %v5308 = vunpack.c.l.b16 %v5244
        %v5309 = vunpack.c.l.b16 %v5245
        %v5310 = vunpack.c.l.b16 %v5246
        %v5311 = vunpack.c.l.b16 %v5247
        %v5312 = vunpack.c.l.b16 %v5248
        %v5313 = vunpack.c.l.b16 %v5249
        %v5314 = vunpack.c.l.b16 %v5250
        %v5315 = vunpack.c.l.b16 %v5251
        %v5316 = vunpack.c.l.b16 %v5252
        %v5317 = vunpack.c.l.b16 %v5253
        %v5318 = vunpack.c.l.b16 %v5254
        %v5319 = vunpack.c.l.b16 %v5255
        %v5320 = vunpack.c.l.b16 %v5256
        %v5321 = vunpack.c.l.b16 %v5257
        %v5322 = vunpack.c.l.b16 %v5258
        %v5323 = vunpack.c.l.b16 %v5259
        %v5324 = vunpack.c.l.b16 %v5260
        %v5325 = vunpack.c.l.b16 %v5261
        %v5326 = vunpack.c.l.b16 %v5262
        %v5327 = vunpack.c.l.b16 %v5263
        %v5328 = vunpack.c.l.b16 %v5264
        %v5329 = vunpack.c.l.b16 %v5265
        %v5330 = vpack.c.b16 %v5299, %v5298
        %v5331 = vpack.c.b16 %v5301, %v5300
        %v5332 = vpack.c.b16 %v5303, %v5302
        %v5333 = vpack.c.b16 %v5305, %v5304
        %v5334 = vpack.c.b16 %v5307, %v5306
        %v5335 = vpack.c.b16 %v5309, %v5308
        %v5336 = vpack.c.b16 %v5311, %v5310
        %v5337 = vpack.c.b16 %v5313, %v5312
        %v5338 = vpack.c.b16 %v5315, %v5314
        %v5339 = vpack.c.b16 %v5317, %v5316
        %v5340 = vpack.c.b16 %v5319, %v5318
        %v5341 = vpack.c.b16 %v5321, %v5320
        %v5342 = vpack.c.b16 %v5323, %v5322
        %v5343 = vpack.c.b16 %v5325, %v5324
        %v5344 = vpack.c.b16 %v5327, %v5326
        %v5345 = vpack.c.b16 %v5329, %v5328
        %5362 = vmatprep.subr.bf16.mxu0 0
        %5363 = vmatpush1.bf16.msra.mxu0 %v5337
        %5364 = vmatprep.subr.bf16.mxu0 0
        %5365 = vmatpush1.bf16.msra.mxu0 %v5336
        %5366 = vmatprep.subr.bf16.mxu0 0
        %5367 = vmatpush1.bf16.msra.mxu0 %v5335
        %5368 = vmatprep.subr.bf16.mxu0 0
        %5369 = vmatpush1.bf16.msra.mxu0 %v5334
        %5370 = vmatprep.subr.bf16.mxu0 0
        %5371 = vmatpush1.bf16.msra.mxu0 %v5333
        %5372 = vmatprep.subr.bf16.mxu0 0
        %5373 = vmatpush1.bf16.msra.mxu0 %v5332
        %5374 = vmatprep.subr.bf16.mxu0 0
        %5375 = vmatpush1.bf16.msra.mxu0 %v5331
        %5376 = vmatprep.subr.bf16.mxu0 0
        %5377 = vmatpush1.bf16.msra.mxu0 %v5330
        %5378 = vmatprep.subr.bf16.mxu0 0
        %5379 = vmatpush2.bf16.msra.mxu0 %v5345
        %5380 = vmatprep.subr.bf16.mxu0 0
        %5381 = vmatpush2.bf16.msra.mxu0 %v5344
        %5382 = vmatprep.subr.bf16.mxu0 0
        %5383 = vmatpush2.bf16.msra.mxu0 %v5343
        %5384 = vmatprep.subr.bf16.mxu0 0
        %5385 = vmatpush2.bf16.msra.mxu0 %v5342
        %5386 = vmatprep.subr.bf16.mxu0 0
        %5387 = vmatpush2.bf16.msra.mxu0 %v5341
        %5388 = vmatprep.subr.bf16.mxu0 0
        %5389 = vmatpush2.bf16.msra.mxu0 %v5340
        %5390 = vmatprep.subr.bf16.mxu0 0
        %5391 = vmatpush2.bf16.msra.mxu0 %v5339
        %5392 = vmatprep.subr.bf16.mxu0 0
        %5393 = vmatpush2.bf16.msra.mxu0 %v5338
        %5394 = vmatprep.mubr.bf16.mxu0 %v5093
        %5395 = vmatmul.mubr.bf16.gmra.mxu0 %v5092
        %v5396 = vpop.f32.mrf.mxu0
        %v5397 = vadd.f32 0.0, %v5396
        %v5398 = vpop.f32.mrf.mxu0
        %v5399 = vpop.f32.mrf.mxu0
        %v5400 = vadd.f32 0.0, %v5399
        %v5401 = vpop.f32.mrf.mxu0
        %5402 = vdwg.mxu0
        %s5403 = scalar_lea.vmem [#allocation5], 256
        %v5404 = vld [vmem:[%s5403] sm:$0xf]
        %v5405 = vld [vmem:[%s5403 + $0x4] sm:$0xf]
        %v5406 = vld [vmem:[%s5403 + $0x8] sm:$0xf]
        %v5407 = vld [vmem:[%s5403 + $0xc] sm:$0xf]
        %v5408 = vld [vmem:[%s5403 + $0x10] sm:$0xf]
        %v5409 = vld [vmem:[%s5403 + $0x14] sm:$0xf]
        %v5410 = vld [vmem:[%s5403 + $0x18] sm:$0xf]
        %v5411 = vld [vmem:[%s5403 + $0x1c] sm:$0xf]
        %v5412 = vld [vmem:[%s5403 + $0x20] sm:$0xf]
        %v5413 = vld [vmem:[%s5403 + $0x24] sm:$0xf]
        %v5414 = vld [vmem:[%s5403 + $0x28] sm:$0xf]
        %v5415 = vld [vmem:[%s5403 + $0x2c] sm:$0xf]
        %v5416 = vld [vmem:[%s5403 + $0x30] sm:$0xf]
        %v5417 = vld [vmem:[%s5403 + $0x34] sm:$0xf]
        %v5418 = vld [vmem:[%s5403 + $0x38] sm:$0xf]
        %v5419 = vld [vmem:[%s5403 + $0x3c] sm:$0xf]
        %v5420 = vld [vmem:[%s5403 + $0x40] sm:$0xf]
        %v5421 = vld [vmem:[%s5403 + $0x44] sm:$0xf]
        %v5422 = vld [vmem:[%s5403 + $0x48] sm:$0xf]
        %v5423 = vld [vmem:[%s5403 + $0x4c] sm:$0xf]
        %v5424 = vld [vmem:[%s5403 + $0x50] sm:$0xf]
        %v5425 = vld [vmem:[%s5403 + $0x54] sm:$0xf]
        %v5426 = vld [vmem:[%s5403 + $0x58] sm:$0xf]
        %v5427 = vld [vmem:[%s5403 + $0x5c] sm:$0xf]
        %v5428 = vld [vmem:[%s5403 + $0x60] sm:$0xf]
        %v5429 = vld [vmem:[%s5403 + $0x64] sm:$0xf]
        %v5430 = vld [vmem:[%s5403 + $0x68] sm:$0xf]
        %v5431 = vld [vmem:[%s5403 + $0x6c] sm:$0xf]
        %v5432 = vld [vmem:[%s5403 + $0x70] sm:$0xf]
        %v5433 = vld [vmem:[%s5403 + $0x74] sm:$0xf]
        %v5434 = vld [vmem:[%s5403 + $0x78] sm:$0xf]
        %v5435 = vld [vmem:[%s5403 + $0x7c] sm:$0xf]
        %v5468 = vunpack.c.l.b16 %v5404
        %v5469 = vunpack.c.l.b16 %v5405
        %v5470 = vunpack.c.l.b16 %v5406
        %v5471 = vunpack.c.l.b16 %v5407
        %v5472 = vunpack.c.l.b16 %v5408
        %v5473 = vunpack.c.l.b16 %v5409
        %v5474 = vunpack.c.l.b16 %v5410
        %v5475 = vunpack.c.l.b16 %v5411
        %v5476 = vunpack.c.l.b16 %v5412
        %v5477 = vunpack.c.l.b16 %v5413
        %v5478 = vunpack.c.l.b16 %v5414
        %v5479 = vunpack.c.l.b16 %v5415
        %v5480 = vunpack.c.l.b16 %v5416
        %v5481 = vunpack.c.l.b16 %v5417
        %v5482 = vunpack.c.l.b16 %v5418
        %v5483 = vunpack.c.l.b16 %v5419
        %v5484 = vunpack.c.l.b16 %v5420
        %v5485 = vunpack.c.l.b16 %v5421
        %v5486 = vunpack.c.l.b16 %v5422
        %v5487 = vunpack.c.l.b16 %v5423
        %v5488 = vunpack.c.l.b16 %v5424
        %v5489 = vunpack.c.l.b16 %v5425
        %v5490 = vunpack.c.l.b16 %v5426
        %v5491 = vunpack.c.l.b16 %v5427
        %v5492 = vunpack.c.l.b16 %v5428
        %v5493 = vunpack.c.l.b16 %v5429
        %v5494 = vunpack.c.l.b16 %v5430
        %v5495 = vunpack.c.l.b16 %v5431
        %v5496 = vunpack.c.l.b16 %v5432
        %v5497 = vunpack.c.l.b16 %v5433
        %v5498 = vunpack.c.l.b16 %v5434
        %v5499 = vunpack.c.l.b16 %v5435
        %v5500 = vpack.c.b16 %v5469, %v5468
        %v5501 = vpack.c.b16 %v5471, %v5470
        %v5502 = vpack.c.b16 %v5473, %v5472
        %v5503 = vpack.c.b16 %v5475, %v5474
        %v5504 = vpack.c.b16 %v5477, %v5476
        %v5505 = vpack.c.b16 %v5479, %v5478
        %v5506 = vpack.c.b16 %v5481, %v5480
        %v5507 = vpack.c.b16 %v5483, %v5482
        %v5508 = vpack.c.b16 %v5485, %v5484
        %v5509 = vpack.c.b16 %v5487, %v5486
        %v5510 = vpack.c.b16 %v5489, %v5488
        %v5511 = vpack.c.b16 %v5491, %v5490
        %v5512 = vpack.c.b16 %v5493, %v5492
        %v5513 = vpack.c.b16 %v5495, %v5494
        %v5514 = vpack.c.b16 %v5497, %v5496
        %v5515 = vpack.c.b16 %v5499, %v5498
        %5532 = vmatprep.subr.bf16.mxu0 0
        %5533 = vmatpush1.bf16.msra.mxu0 %v5507
        %5534 = vmatprep.subr.bf16.mxu0 0
        %5535 = vmatpush1.bf16.msra.mxu0 %v5506
        %5536 = vmatprep.subr.bf16.mxu0 0
        %5537 = vmatpush1.bf16.msra.mxu0 %v5505
        %5538 = vmatprep.subr.bf16.mxu0 0
        %5539 = vmatpush1.bf16.msra.mxu0 %v5504
        %5540 = vmatprep.subr.bf16.mxu0 0
        %5541 = vmatpush1.bf16.msra.mxu0 %v5503
        %5542 = vmatprep.subr.bf16.mxu0 0
        %5543 = vmatpush1.bf16.msra.mxu0 %v5502
        %5544 = vmatprep.subr.bf16.mxu0 0
        %5545 = vmatpush1.bf16.msra.mxu0 %v5501
        %5546 = vmatprep.subr.bf16.mxu0 0
        %5547 = vmatpush1.bf16.msra.mxu0 %v5500
        %5548 = vmatprep.subr.bf16.mxu0 0
        %5549 = vmatpush2.bf16.msra.mxu0 %v5515
        %5550 = vmatprep.subr.bf16.mxu0 0
        %5551 = vmatpush2.bf16.msra.mxu0 %v5514
        %5552 = vmatprep.subr.bf16.mxu0 0
        %5553 = vmatpush2.bf16.msra.mxu0 %v5513
        %5554 = vmatprep.subr.bf16.mxu0 0
        %5555 = vmatpush2.bf16.msra.mxu0 %v5512
        %5556 = vmatprep.subr.bf16.mxu0 0
        %5557 = vmatpush2.bf16.msra.mxu0 %v5511
        %5558 = vmatprep.subr.bf16.mxu0 0
        %5559 = vmatpush2.bf16.msra.mxu0 %v5510
        %5560 = vmatprep.subr.bf16.mxu0 0
        %5561 = vmatpush2.bf16.msra.mxu0 %v5509
        %5562 = vmatprep.subr.bf16.mxu0 0
        %5563 = vmatpush2.bf16.msra.mxu0 %v5508
        %5564 = vmatprep.mubr.bf16.mxu0 %v5093
        %5565 = vmatmul.mubr.bf16.gmra.mxu0 %v5092
        %v5566 = vpop.f32.mrf.mxu0
        %v5567 = vadd.f32 0.0, %v5566
        %v5568 = vpop.f32.mrf.mxu0
        %v5569 = vpop.f32.mrf.mxu0
        %v5570 = vadd.f32 0.0, %v5569
        %v5571 = vpop.f32.mrf.mxu0
        %5572 = vdwg.mxu0
        %v5573 = vrot.slane %v5227, 7
        %v5574 = vrot.slane %v5230, 7
        %v5575 = vsel %vm1207, %v5573, %v5574
        %v5576 = vsel %vm1207, %v5574, %v5573
        %vm5577 = vcmp.lt.s32.totalorder %v1206, 0
        %v5578 = vsub.s32 0, %v1206
        %v5579 = vsel %vm5577, %v5578, %v1206
        %v5580 = vshrl.u32 %v5579, 2
        %v5581 = vand.u32 %v5579, 3
        %v5582 = vsub.s32 0, %v5581
        %v5583 = vsel %vm5577, %v5582, %v5581
        %vm5584 = vcmp.lt.s32.totalorder %v1224, 0
        %v5585 = vsub.s32 0, %v1224
        %v5586 = vsel %vm5584, %v5585, %v1224
        %v5587 = vshrl.u32 %v5586, 2
        %v5588 = vand.u32 %v5586, 3
        %v5589 = vsub.s32 0, %v5588
        %v5590 = vsel %vm5584, %v5589, %v5588
        %vm5591 = vcmp.ne.s32.totalorder %v5583, 0
        %vm5592 = vcmp.ne.s32.totalorder %v5590, 0
        %vm5593 = vcmp.lt.s32.totalorder %v5583, 0
        %vm5594 = vcmp.lt.s32.totalorder %v5590, 0
        %vm5595 = vmand %vm5593, %vm5591
        %vm5596 = vmand %vm5594, %vm5592
        %v5597 = vadd.s32 %v5583, 4
        %v5598 = vadd.s32 %v5590, 4
        %v5599 = vsel %vm5595, %v5597, %v5583
        %v5600 = vsel %vm5596, %v5598, %v5590
        %vm5601 = vcmp.eq.s32.totalorder %v5599, 0
        %vm5602 = vcmp.eq.s32.totalorder %v5600, 0
        %v5603 = vsel %vm5601, 0.0, %v5576
        %v5604 = vsel %vm5602, 0.0, %v5575
        %v5605 = vadd.f32 %v5603, %v5397
        %v5606 = vadd.f32 %v5604, %v5400
        %v5607 = vrot.slane %v5567, 1
        %v5608 = vrot.slane %v5570, 1
        %v5609 = vsel %vm1495, %v5607, %v5608
        %v5610 = vsel %vm1495, %v5608, %v5607
        %vm5611 = vcmp.eq.s32.totalorder %v5599, 3
        %vm5612 = vcmp.eq.s32.totalorder %v5600, 3
        %v5613 = vsel %vm5611, 0.0, %v5609
        %v5614 = vsel %vm5612, 0.0, %v5610
        %v5615 = vadd.f32 %v5605, %v5613
        %v5616 = vadd.f32 %v5606, %v5614
        %v5617 = vld [vmem:[%s10] sm:$0x1]
        %v5619 = vlaneseq
        %v5620 = vshrl.u32 %v5619, 7
        %v5621 = vsub.s32 0, %v5620
        %v5622 = vrot.slane %v5617, %v5621
        %v5624 = vadd.f32 %v5615, %v5622
        %v5625 = vadd.f32 %v5616, %v5622
        %v5628 = vcombine.high %v5624, %v5624
        %v5630 = vunpack.c.l.s4 1983009808
        %v5631 = vunpack.c.0.s8 %v5630
        %v5632 = vlaneseq
        %v5633 = vshrl.u32 %v5632, 7
        %v5634 = vsub.s32 %v5631, %v5633
        %v5635 = vrot.slane %v5624, %v5634
        %v5637 = vunpack.c.l.s4 1983009808
        %v5638 = vunpack.c.0.s8 %v5637
        %v5639 = vlaneseq
        %v5640 = vshrl.u32 %v5639, 7
        %v5641 = vsub.s32 %v5638, %v5640
        %v5642 = vrot.slane %v5628, %v5641
        %v5643 = vcombine.high %v5635, %v5635
        %v5644 = vcombine.high %v5642, %v5642
        %v5645 = vcombine.high %v5625, %v5625
        %v5647 = vunpack.c.l.s4 1983009808
        %v5648 = vunpack.c.0.s8 %v5647
        %v5649 = vlaneseq
        %v5650 = vshrl.u32 %v5649, 7
        %v5651 = vsub.s32 %v5648, %v5650
        %v5652 = vrot.slane %v5625, %v5651
        %v5654 = vunpack.c.l.s4 1983009808
        %v5655 = vunpack.c.0.s8 %v5654
        %v5656 = vlaneseq
        %v5657 = vshrl.u32 %v5656, 7
        %v5658 = vsub.s32 %v5655, %v5657
        %v5659 = vrot.slane %v5645, %v5658
        %v5660 = vcombine.high %v5652, %v5652
        %v5661 = vcombine.high %v5659, %v5659
        %v5670 = vsel %vm1935, %v5635, -inf
        %v5671 = vrot.slane %v5670, 4
        %v5672 = vmax.f32 %v5670, %v5671
        %v5673 = vrot.slane %v5672, 2
        %v5674 = vmax.f32 %v5672, %v5673
        %v5675 = vrot.slane %v5674, 1
        %v5676 = vmax.f32 %v5674, %v5675
        %v5677 = vsel %vm1935, %v5643, -inf
        %v5678 = vrot.slane %v5677, 4
        %v5679 = vmax.f32 %v5677, %v5678
        %v5680 = vrot.slane %v5679, 2
        %v5681 = vmax.f32 %v5679, %v5680
        %v5682 = vrot.slane %v5681, 1
        %v5683 = vmax.f32 %v5681, %v5682
        %v5684 = vsel %vm1935, %v5642, -inf
        %v5685 = vrot.slane %v5684, 4
        %v5686 = vmax.f32 %v5684, %v5685
        %v5687 = vrot.slane %v5686, 2
        %v5688 = vmax.f32 %v5686, %v5687
        %v5689 = vrot.slane %v5688, 1
        %v5690 = vmax.f32 %v5688, %v5689
        %v5691 = vsel %vm1935, %v5644, -inf
        %v5692 = vrot.slane %v5691, 4
        %v5693 = vmax.f32 %v5691, %v5692
        %v5694 = vrot.slane %v5693, 2
        %v5695 = vmax.f32 %v5693, %v5694
        %v5696 = vrot.slane %v5695, 1
        %v5697 = vmax.f32 %v5695, %v5696
        %v5698 = vsel %vm1935, %v5652, -inf
        %v5699 = vrot.slane %v5698, 4
        %v5700 = vmax.f32 %v5698, %v5699
        %v5701 = vrot.slane %v5700, 2
        %v5702 = vmax.f32 %v5700, %v5701
        %v5703 = vrot.slane %v5702, 1
        %v5704 = vmax.f32 %v5702, %v5703
        %v5705 = vsel %vm1935, %v5660, -inf
        %v5706 = vrot.slane %v5705, 4
        %v5707 = vmax.f32 %v5705, %v5706
        %v5708 = vrot.slane %v5707, 2
        %v5709 = vmax.f32 %v5707, %v5708
        %v5710 = vrot.slane %v5709, 1
        %v5711 = vmax.f32 %v5709, %v5710
        %v5712 = vsel %vm1935, %v5659, -inf
        %v5713 = vrot.slane %v5712, 4
        %v5714 = vmax.f32 %v5712, %v5713
        %v5715 = vrot.slane %v5714, 2
        %v5716 = vmax.f32 %v5714, %v5715
        %v5717 = vrot.slane %v5716, 1
        %v5718 = vmax.f32 %v5716, %v5717
        %v5719 = vsel %vm1935, %v5661, -inf
        %v5720 = vrot.slane %v5719, 4
        %v5721 = vmax.f32 %v5719, %v5720
        %v5722 = vrot.slane %v5721, 2
        %v5723 = vmax.f32 %v5721, %v5722
        %v5724 = vrot.slane %v5723, 1
        %v5725 = vmax.f32 %v5723, %v5724
        %v5726 = vtanh.pop %v5676
        %v5727 = vtanh.pop %v5683
        %v5728 = vtanh.pop %v5690
        %v5729 = vtanh.pop %v5697
        %v5730 = vtanh.pop %v5704
        %v5731 = vtanh.pop %v5711
        %v5732 = vtanh.pop %v5718
        %v5733 = vtanh.pop %v5725
        %v5734 = vpack.c.bf16 %v5726, %v5726
        %v5735 = vpack.c.bf16 %v5727, %v5727
        %v5736 = vpack.c.bf16 %v5728, %v5728
        %v5737 = vpack.c.bf16 %v5729, %v5729
        %v5738 = vpack.c.bf16 %v5730, %v5730
        %v5739 = vpack.c.bf16 %v5731, %v5731
        %v5740 = vpack.c.bf16 %v5732, %v5732
        %v5741 = vpack.c.bf16 %v5733, %v5733
        %v5742 = vld [vmem:[%s11] sm:$0xf]
        %v5743 = vld [vmem:[%s11 + $0x4] sm:$0xf]
        %v5744 = vld [vmem:[%s11 + $0x8] sm:$0xf]
        %v5745 = vld [vmem:[%s11 + $0xc] sm:$0xf]
        %v5746 = vld [vmem:[%s11 + $0x10] sm:$0xf]
        %v5747 = vld [vmem:[%s11 + $0x14] sm:$0xf]
        %v5748 = vld [vmem:[%s11 + $0x18] sm:$0xf]
        %v5749 = vld [vmem:[%s11 + $0x1c] sm:$0xf]
        %v5750 = vld [vmem:[%s11 + $0x20] sm:$0xf]
        %v5751 = vld [vmem:[%s11 + $0x24] sm:$0xf]
        %v5752 = vld [vmem:[%s11 + $0x28] sm:$0xf]
        %v5753 = vld [vmem:[%s11 + $0x2c] sm:$0xf]
        %v5754 = vld [vmem:[%s11 + $0x30] sm:$0xf]
        %v5755 = vld [vmem:[%s11 + $0x34] sm:$0xf]
        %v5756 = vld [vmem:[%s11 + $0x38] sm:$0xf]
        %v5757 = vld [vmem:[%s11 + $0x3c] sm:$0xf]
        %v5766 = vunpack.c.l.b16 %v5734
        %v5767 = vunpack.c.l.b16 %v5735
        %v5768 = vunpack.c.l.b16 %v5736
        %v5769 = vunpack.c.l.b16 %v5737
        %v5770 = vunpack.c.l.b16 %v5738
        %v5771 = vunpack.c.l.b16 %v5739
        %v5772 = vunpack.c.l.b16 %v5740
        %v5773 = vunpack.c.l.b16 %v5741
        %v5774 = vsel %vm2656, %v5767, %v5766
        %v5775 = vsel %vm2658, %v5768, %v5774
        %v5776 = vsel %vm2660, %v5769, %v5775
        %v5777 = vsel %vm2662, %v5770, %v5776
        %v5778 = vsel %vm2664, %v5771, %v5777
        %v5779 = vsel %vm2666, %v5772, %v5778
        %v5780 = vsel %vm2668, %v5773, %v5779
        %v5781 = vpack.c.b16 %v5780, %v5780
        %v5799 = vunpack.c.l.b16 %v5742
        %v5800 = vunpack.c.l.b16 %v5743
        %v5801 = vunpack.c.l.b16 %v5744
        %v5802 = vunpack.c.l.b16 %v5745
        %v5803 = vunpack.c.l.b16 %v5746
        %v5804 = vunpack.c.l.b16 %v5747
        %v5805 = vunpack.c.l.b16 %v5748
        %v5806 = vunpack.c.l.b16 %v5749
        %v5807 = vunpack.c.l.b16 %v5750
        %v5808 = vunpack.c.l.b16 %v5751
        %v5809 = vunpack.c.l.b16 %v5752
        %v5810 = vunpack.c.l.b16 %v5753
        %v5811 = vunpack.c.l.b16 %v5754
        %v5812 = vunpack.c.l.b16 %v5755
        %v5813 = vunpack.c.l.b16 %v5756
        %v5814 = vunpack.c.l.b16 %v5757
        %v5815 = vpack.c.b16 %v5800, %v5799
        %v5816 = vpack.c.b16 %v5802, %v5801
        %v5817 = vpack.c.b16 %v5804, %v5803
        %v5818 = vpack.c.b16 %v5806, %v5805
        %v5819 = vpack.c.b16 %v5808, %v5807
        %v5820 = vpack.c.b16 %v5810, %v5809
        %v5821 = vpack.c.b16 %v5812, %v5811
        %v5822 = vpack.c.b16 %v5814, %v5813
        %5831 = vmatprep.subr.bf16.mxu0 0
        %5832 = vmatpush1.bf16.msra.mxu0 %v5822
        %5833 = vmatprep.subr.bf16.mxu0 0
        %5834 = vmatpush1.bf16.msra.mxu0 %v5821
        %5835 = vmatprep.subr.bf16.mxu0 0
        %5836 = vmatpush1.bf16.msra.mxu0 %v5820
        %5837 = vmatprep.subr.bf16.mxu0 0
        %5838 = vmatpush1.bf16.msra.mxu0 %v5819
        %5839 = vmatprep.subr.bf16.mxu0 0
        %5840 = vmatpush1.bf16.msra.mxu0 %v5818
        %5841 = vmatprep.subr.bf16.mxu0 0
        %5842 = vmatpush1.bf16.msra.mxu0 %v5817
        %5843 = vmatprep.subr.bf16.mxu0 0
        %5844 = vmatpush1.bf16.msra.mxu0 %v5816
        %5845 = vmatprep.subr.bf16.mxu0 0
        %5846 = vmatpush1.bf16.msra.mxu0 %v5815
        %5847 = vmatprep.subr.bf16.mxu0 0
        %5848 = vmatpush2.bf16.msra.mxu0 0
        %5849 = vmatprep.subr.bf16.mxu0 0
        %5850 = vmatpush2.bf16.msra.mxu0 0
        %5851 = vmatprep.subr.bf16.mxu0 0
        %5852 = vmatpush2.bf16.msra.mxu0 0
        %5853 = vmatprep.subr.bf16.mxu0 0
        %5854 = vmatpush2.bf16.msra.mxu0 0
        %5855 = vmatprep.subr.bf16.mxu0 0
        %5856 = vmatpush2.bf16.msra.mxu0 0
        %5857 = vmatprep.subr.bf16.mxu0 0
        %5858 = vmatpush2.bf16.msra.mxu0 0
        %5859 = vmatprep.subr.bf16.mxu0 0
        %5860 = vmatpush2.bf16.msra.mxu0 0
        %5861 = vmatprep.subr.bf16.mxu0 0
        %5862 = vmatpush2.bf16.msra.mxu0 0
        %5863 = vmatprep.mubr.bf16.mxu0 0
        %5864 = vmatmul.mubr.bf16.gmra.mxu0 %v5781
        %v5865 = vpop.f32.mrf.mxu0
        %v5866 = vadd.f32 0.0, %v5865
        %v5867 = vpop.f32.mrf.mxu0
        %v5868 = vpop.f32.mrf.mxu0
        %v5869 = vpop.f32.mrf.mxu0
        %5870 = vdwg.mxu0
        %s5871 = scalar_lea.vmem %s11, 64
        %v5872 = vld [vmem:[%s5871] sm:$0xf]
        %v5873 = vld [vmem:[%s5871 + $0x4] sm:$0xf]
        %v5874 = vld [vmem:[%s5871 + $0x8] sm:$0xf]
        %v5875 = vld [vmem:[%s5871 + $0xc] sm:$0xf]
        %v5876 = vld [vmem:[%s5871 + $0x10] sm:$0xf]
        %v5877 = vld [vmem:[%s5871 + $0x14] sm:$0xf]
        %v5878 = vld [vmem:[%s5871 + $0x18] sm:$0xf]
        %v5879 = vld [vmem:[%s5871 + $0x1c] sm:$0xf]
        %v5880 = vld [vmem:[%s5871 + $0x20] sm:$0xf]
        %v5881 = vld [vmem:[%s5871 + $0x24] sm:$0xf]
        %v5882 = vld [vmem:[%s5871 + $0x28] sm:$0xf]
        %v5883 = vld [vmem:[%s5871 + $0x2c] sm:$0xf]
        %v5884 = vld [vmem:[%s5871 + $0x30] sm:$0xf]
        %v5885 = vld [vmem:[%s5871 + $0x34] sm:$0xf]
        %v5886 = vld [vmem:[%s5871 + $0x38] sm:$0xf]
        %v5887 = vld [vmem:[%s5871 + $0x3c] sm:$0xf]
        %v5904 = vunpack.c.l.b16 %v5872
        %v5905 = vunpack.c.l.b16 %v5873
        %v5906 = vunpack.c.l.b16 %v5874
        %v5907 = vunpack.c.l.b16 %v5875
        %v5908 = vunpack.c.l.b16 %v5876
        %v5909 = vunpack.c.l.b16 %v5877
        %v5910 = vunpack.c.l.b16 %v5878
        %v5911 = vunpack.c.l.b16 %v5879
        %v5912 = vunpack.c.l.b16 %v5880
        %v5913 = vunpack.c.l.b16 %v5881
        %v5914 = vunpack.c.l.b16 %v5882
        %v5915 = vunpack.c.l.b16 %v5883
        %v5916 = vunpack.c.l.b16 %v5884
        %v5917 = vunpack.c.l.b16 %v5885
        %v5918 = vunpack.c.l.b16 %v5886
        %v5919 = vunpack.c.l.b16 %v5887
        %v5920 = vpack.c.b16 %v5905, %v5904
        %v5921 = vpack.c.b16 %v5907, %v5906
        %v5922 = vpack.c.b16 %v5909, %v5908
        %v5923 = vpack.c.b16 %v5911, %v5910
        %v5924 = vpack.c.b16 %v5913, %v5912
        %v5925 = vpack.c.b16 %v5915, %v5914
        %v5926 = vpack.c.b16 %v5917, %v5916
        %v5927 = vpack.c.b16 %v5919, %v5918
        %5936 = vmatprep.subr.bf16.mxu0 0
        %5937 = vmatpush1.bf16.msra.mxu0 %v5927
        %5938 = vmatprep.subr.bf16.mxu0 0
        %5939 = vmatpush1.bf16.msra.mxu0 %v5926
        %5940 = vmatprep.subr.bf16.mxu0 0
        %5941 = vmatpush1.bf16.msra.mxu0 %v5925
        %5942 = vmatprep.subr.bf16.mxu0 0
        %5943 = vmatpush1.bf16.msra.mxu0 %v5924
        %5944 = vmatprep.subr.bf16.mxu0 0
        %5945 = vmatpush1.bf16.msra.mxu0 %v5923
        %5946 = vmatprep.subr.bf16.mxu0 0
        %5947 = vmatpush1.bf16.msra.mxu0 %v5922
        %5948 = vmatprep.subr.bf16.mxu0 0
        %5949 = vmatpush1.bf16.msra.mxu0 %v5921
        %5950 = vmatprep.subr.bf16.mxu0 0
        %5951 = vmatpush1.bf16.msra.mxu0 %v5920
        %5952 = vmatprep.subr.bf16.mxu0 0
        %5953 = vmatpush2.bf16.msra.mxu0 0
        %5954 = vmatprep.subr.bf16.mxu0 0
        %5955 = vmatpush2.bf16.msra.mxu0 0
        %5956 = vmatprep.subr.bf16.mxu0 0
        %5957 = vmatpush2.bf16.msra.mxu0 0
        %5958 = vmatprep.subr.bf16.mxu0 0
        %5959 = vmatpush2.bf16.msra.mxu0 0
        %5960 = vmatprep.subr.bf16.mxu0 0
        %5961 = vmatpush2.bf16.msra.mxu0 0
        %5962 = vmatprep.subr.bf16.mxu0 0
        %5963 = vmatpush2.bf16.msra.mxu0 0
        %5964 = vmatprep.subr.bf16.mxu0 0
        %5965 = vmatpush2.bf16.msra.mxu0 0
        %5966 = vmatprep.subr.bf16.mxu0 0
        %5967 = vmatpush2.bf16.msra.mxu0 0
        %5968 = vmatprep.mubr.bf16.mxu0 0
        %5969 = vmatmul.mubr.bf16.gmra.mxu0 %v5781
        %v5970 = vpop.f32.mrf.mxu0
        %v5971 = vadd.f32 0.0, %v5970
        %v5972 = vpop.f32.mrf.mxu0
        %v5973 = vpop.f32.mrf.mxu0
        %v5974 = vpop.f32.mrf.mxu0
        %5975 = vdwg.mxu0
        %s5976 = scalar_lea.vmem %s11, 128
        %v5977 = vld [vmem:[%s5976] sm:$0xf]
        %v5978 = vld [vmem:[%s5976 + $0x4] sm:$0xf]
        %v5979 = vld [vmem:[%s5976 + $0x8] sm:$0xf]
        %v5980 = vld [vmem:[%s5976 + $0xc] sm:$0xf]
        %v5981 = vld [vmem:[%s5976 + $0x10] sm:$0xf]
        %v5982 = vld [vmem:[%s5976 + $0x14] sm:$0xf]
        %v5983 = vld [vmem:[%s5976 + $0x18] sm:$0xf]
        %v5984 = vld [vmem:[%s5976 + $0x1c] sm:$0xf]
        %v5985 = vld [vmem:[%s5976 + $0x20] sm:$0xf]
        %v5986 = vld [vmem:[%s5976 + $0x24] sm:$0xf]
        %v5987 = vld [vmem:[%s5976 + $0x28] sm:$0xf]
        %v5988 = vld [vmem:[%s5976 + $0x2c] sm:$0xf]
        %v5989 = vld [vmem:[%s5976 + $0x30] sm:$0xf]
        %v5990 = vld [vmem:[%s5976 + $0x34] sm:$0xf]
        %v5991 = vld [vmem:[%s5976 + $0x38] sm:$0xf]
        %v5992 = vld [vmem:[%s5976 + $0x3c] sm:$0xf]
        %v6009 = vunpack.c.l.b16 %v5977
        %v6010 = vunpack.c.l.b16 %v5978
        %v6011 = vunpack.c.l.b16 %v5979
        %v6012 = vunpack.c.l.b16 %v5980
        %v6013 = vunpack.c.l.b16 %v5981
        %v6014 = vunpack.c.l.b16 %v5982
        %v6015 = vunpack.c.l.b16 %v5983
        %v6016 = vunpack.c.l.b16 %v5984
        %v6017 = vunpack.c.l.b16 %v5985
        %v6018 = vunpack.c.l.b16 %v5986
        %v6019 = vunpack.c.l.b16 %v5987
        %v6020 = vunpack.c.l.b16 %v5988
        %v6021 = vunpack.c.l.b16 %v5989
        %v6022 = vunpack.c.l.b16 %v5990
        %v6023 = vunpack.c.l.b16 %v5991
        %v6024 = vunpack.c.l.b16 %v5992
        %v6025 = vpack.c.b16 %v6010, %v6009
        %v6026 = vpack.c.b16 %v6012, %v6011
        %v6027 = vpack.c.b16 %v6014, %v6013
        %v6028 = vpack.c.b16 %v6016, %v6015
        %v6029 = vpack.c.b16 %v6018, %v6017
        %v6030 = vpack.c.b16 %v6020, %v6019
        %v6031 = vpack.c.b16 %v6022, %v6021
        %v6032 = vpack.c.b16 %v6024, %v6023
        %6041 = vmatprep.subr.bf16.mxu0 0
        %6042 = vmatpush1.bf16.msra.mxu0 %v6032
        %6043 = vmatprep.subr.bf16.mxu0 0
        %6044 = vmatpush1.bf16.msra.mxu0 %v6031
        %6045 = vmatprep.subr.bf16.mxu0 0
        %6046 = vmatpush1.bf16.msra.mxu0 %v6030
        %6047 = vmatprep.subr.bf16.mxu0 0
        %6048 = vmatpush1.bf16.msra.mxu0 %v6029
        %6049 = vmatprep.subr.bf16.mxu0 0
        %6050 = vmatpush1.bf16.msra.mxu0 %v6028
        %6051 = vmatprep.subr.bf16.mxu0 0
        %6052 = vmatpush1.bf16.msra.mxu0 %v6027
        %6053 = vmatprep.subr.bf16.mxu0 0
        %6054 = vmatpush1.bf16.msra.mxu0 %v6026
        %6055 = vmatprep.subr.bf16.mxu0 0
        %6056 = vmatpush1.bf16.msra.mxu0 %v6025
        %6057 = vmatprep.subr.bf16.mxu0 0
        %6058 = vmatpush2.bf16.msra.mxu0 0
        %6059 = vmatprep.subr.bf16.mxu0 0
        %6060 = vmatpush2.bf16.msra.mxu0 0
        %6061 = vmatprep.subr.bf16.mxu0 0
        %6062 = vmatpush2.bf16.msra.mxu0 0
        %6063 = vmatprep.subr.bf16.mxu0 0
        %6064 = vmatpush2.bf16.msra.mxu0 0
        %6065 = vmatprep.subr.bf16.mxu0 0
        %6066 = vmatpush2.bf16.msra.mxu0 0
        %6067 = vmatprep.subr.bf16.mxu0 0
        %6068 = vmatpush2.bf16.msra.mxu0 0
        %6069 = vmatprep.subr.bf16.mxu0 0
        %6070 = vmatpush2.bf16.msra.mxu0 0
        %6071 = vmatprep.subr.bf16.mxu0 0
        %6072 = vmatpush2.bf16.msra.mxu0 0
        %6073 = vmatprep.mubr.bf16.mxu0 0
        %6074 = vmatmul.mubr.bf16.gmra.mxu0 %v5781
        %v6075 = vpop.f32.mrf.mxu0
        %v6076 = vadd.f32 0.0, %v6075
        %v6077 = vpop.f32.mrf.mxu0
        %v6078 = vpop.f32.mrf.mxu0
        %v6079 = vpop.f32.mrf.mxu0
        %6080 = vdwg.mxu0
        %v6081 = vrot.slane %v5866, 7
        %vm6082 = vcmp.lt.s32.totalorder %v1206, 0
        %v6083 = vsub.s32 0, %v1206
        %v6084 = vsel %vm6082, %v6083, %v1206
        %v6085 = vshrl.u32 %v6084, 1
        %v6086 = vand.u32 %v6084, 1
        %v6087 = vsub.s32 0, %v6086
        %v6088 = vsel %vm6082, %v6087, %v6086
        %vm6089 = vcmp.ne.s32.totalorder %v6088, 0
        %vm6090 = vcmp.lt.s32.totalorder %v6088, 0
        %vm6091 = vmand %vm6090, %vm6089
        %v6092 = vadd.s32 %v6088, 2
        %v6093 = vsel %vm6091, %v6092, %v6088
        %vm6094 = vcmp.eq.s32.totalorder %v6093, 0
        %v6095 = vsel %vm6094, 0.0, %v6081
        %v6096 = vadd.f32 %v6095, %v5971
        %v6097 = vrot.slane %v6076, 1
        %vm6098 = vcmp.eq.s32.totalorder %v6093, 1
        %v6099 = vsel %vm6098, 0.0, %v6097
        %v6100 = vadd.f32 %v6096, %v6099
        %v6101 = vld [vmem:[%s12] sm:$0x1]
        %v6103 = vlaneseq
        %v6104 = vshrl.u32 %v6103, 7
        %v6105 = vsub.s32 0, %v6104
        %v6106 = vrot.slane %v6101, %v6105
        %v6108 = vadd.f32 %v6100, %v6106
        %v6109 = vtanh.pop %v6108
        %v6110 = vld [vmem:[%s13] sm:$0x1]
        %v6112 = vlaneseq
        %v6113 = vshrl.u32 %v6112, 7
        %v6114 = vsub.s32 0, %v6113
        %v6115 = vrot.slane %v6110, %v6114
        %v6117 = vmul.f32 %v6109, %v6115
        %v6118 = vsel %vm807, %v6117, 0.0
        %6119 = vadd.xlane.f32.xlu0 %v6118
        %v6120 = vpop.xlane.xlu0 %6119
        %v6121 = vld [vmem:[#allocation2] sm:$0x1]
        %v6123 = vlaneseq
        %v6124 = vshrl.u32 %v6123, 7
        %v6125 = vsub.s32 0, %v6124
        %v6126 = vrot.slane %v6121, %v6125
        %v6128 = vadd.f32 %v6120, %v6126
        %vm6129 = vcmask 7168
        %6130 = vst.msk [vmem:[%s524] sm:$0xff] %vm6129, %v6128
        %p6131 = scmp.lt.s32.totalorder %s30, 1
        %s6132 = scalar_select %p6131, %s30, 1
        %s6133 = smul.addr %s6132, 8
        %s6134 = scalar_lea.vmem %s15, %s6133
        // Predicated region
        $region89: #{forward.1} parent=79 // pred_check
          %p6135 = pneg %p368
        $region90: #{forward.1} parent=79 // pred_check_branch
          %6137 = sbr.rel (%p6135) target = $region92
        $region91: #{forward.1} parent=79 // pred_region
          _
        $region92: #{forward.1} parent=79 // pred_fallthru
          _
      $region80: #{forward.1} parent=5 // pred_fallthru
        _
      %p6138 = scmp.le.s32.totalorder 2, %s25
      // Predicated region
      $region93: #{forward.1} parent=5 // pred_check
        %p6139 = pneg %p6138
      $region94: #{forward.1} parent=5 // pred_check_branch
        %6141 = sbr.rel (%p6139) target = $region96
      $region95: #{forward.1} parent=5 // pred_region
        %s6142 = ssub.s32 %s25, 2
        // Predicated region
        $region97: #{forward.1} parent=95 // pred_check
          %p6143 = pneg %p374
        $region98: #{forward.1} parent=95 // pred_check_branch
          %6145 = sbr.rel (%p6143) target = $region100
        $region99: #{forward.1} parent=95 // pred_region
          %p6146 = scmp.lt.s32.totalorder %s31, 1
          %s6147 = scalar_select %p6146, %s31, 1
          %s6148 = smul.addr %s6147, 8
          %s6149 = scalar_lea.vmem %s15, %s6148
        $region100: #{forward.1} parent=95 // pred_fallthru
          _
      $region96: #{forward.1} parent=5 // pred_fallthru
        _
    $region6: #{forward.1} parent=1 // loop_footer
      %s29 = sadd.s32 1, %s25
    $region7: #{forward.1} parent=1 // loop_footer_branch
      %24 = sbr.rel target = $region3
    $region8: #{forward.1} parent=1 // loop_exit
      _
    %6150 = vsyncpa [#allocation4], 1
    %s6151 = scalar_lea.sflag [#allocation4], 1
    %6152 = vsyncpa %s6151, 1
    %6153 = vsyncpa [#allocation6], 1

</llo_original>
